<compile_context>
chip_gen: v6e
topology: v6e:2x2x1
jax: 0.10.0
libtpu: 0.0.40
codegen_flags: <defaults>
</compile_context>

<pallas_src>
import jax
import jax.numpy as jnp
from jax import lax
from jax.experimental import pallas as pl
from jax.experimental.pallas import tpu as pltpu

HIDDEN = 200       # nn.LSTM(hidden_size=200)
HIDDEN_PAD = 256   # padded so every gate slab is 128-lane aligned


def lstm_linear_kernel(x_ref, w_h_ref, w_ih_ref, b_ref, w_lin_ref, b_lin_ref,
                       out_ref, h_ref, c_ref):
    """One (batch-block, time-block) grid step of the LSTM + Linear forward.

    x_ref     : (B_BLK, T_BLK)   lane-dense input block (time on lanes)
    w_h_ref   : (HP, 4*HP)       recurrent weights, gate slabs [i|f|g|o] of 256
    w_ih_ref  : (1, 4*HP)        input-projection row (input_size == 1)
    b_ref     : (1, 4*HP)        b_ih + b_hh, gate-padded
    w_lin_ref : (1, HP)          linear.weight, zero-padded
    b_lin_ref : (1, 1)           linear.bias
    out_ref   : (B_BLK, T_BLK)   lane-dense per-timestep scalar output block
    h_ref     : (B_BLK, HP)      scratch: hidden state (persists across t blocks)
    c_ref     : (B_BLK, HP)      scratch: cell state   (persists across t blocks)
    """
    B, HP = h_ref.shape
    t_blk = x_ref.shape[1]

    # Reset recurrent state at the first time block of every batch block.
    @pl.when(pl.program_id(1) == 0)
    def _():
        h_ref[...] = jnp.zeros_like(h_ref)
        c_ref[...] = jnp.zeros_like(c_ref)

    # Loop-invariant values, hoisted (JAX does not CSE broadcasts in loops).
    w_h = w_h_ref[...]                                        # (HP, 4*HP)
    w_ih_row = w_ih_ref[...]                                  # (1, 4*HP)
    b_row = b_ref[...]                                        # (1, 4*HP)
    w_lin_b = jnp.broadcast_to(w_lin_ref[...], (B, HP))       # (B, HP)
    b_lin_b = jnp.broadcast_to(b_lin_ref[...], (B, 1))        # (B, 1)
    x_blk = x_ref[...]                                        # (B, T_BLK)
    t_iota = lax.broadcasted_iota(jnp.int32, (B, t_blk), 1)   # (B, T_BLK)

    def sigmoid(z):  # exact identity; one native EUP tanh per slab
        return 0.5 * jnp.tanh(0.5 * z) + 0.5

    def step(t, carry):
        h, c, acc = carry
        sel = t_iota == t                                     # (B, T_BLK) lane mask

        # x_t via mask + cross-lane reduce (XLU slot; no dynamic lane slicing).
        x_t = jnp.sum(jnp.where(sel, x_blk, 0.0), axis=1, keepdims=True)   # (B, 1)

        # Gate pre-activations: one fused MXU dot; input projection is a
        # rank-1 VPU update (input_size == 1); bias is a VPU add.
        gates = jnp.dot(h, w_h, preferred_element_type=jnp.float32)        # (B, 4*HP)
        gates = gates + x_t * w_ih_row + b_row

        i_g = sigmoid(gates[:, 0 * HP:1 * HP])
        f_g = sigmoid(gates[:, 1 * HP:2 * HP])
        g_g = jnp.tanh(gates[:, 2 * HP:3 * HP])
        o_g = sigmoid(gates[:, 3 * HP:4 * HP])

        c_new = f_g * c + i_g * g_g
        h_new = o_g * jnp.tanh(c_new)

        # Output projection: VPU multiply + cross-lane (XLU) reduce.
        y = jnp.sum(h_new * w_lin_b, axis=1, keepdims=True) + b_lin_b      # (B, 1)
        acc = jnp.where(sel, y, acc)                          # scatter into lane t
        return h_new, c_new, acc

    h0 = h_ref[...]
    c0 = c_ref[...]
    acc0 = jnp.zeros((B, t_blk), jnp.float32)
    h_f, c_f, acc_f = lax.fori_loop(0, t_blk, step, (h0, c0, acc0), unroll=8)

    # Persist state for the next time block; one dense store of the out block.
    h_ref[...] = h_f
    c_ref[...] = c_f
    out_ref[...] = acc_f


def air_model_forward(x, params, *, t_blk=512):
    """x: (B, T, 1) float32  ->  (B, T, 1) float32, matching the PyTorch module."""
    w_ih, w_hh, b_ih, b_hh, w_lin, b_lin = params
    B, T, _ = x.shape
    H, HP = HIDDEN, HIDDEN_PAD
    f32 = jnp.float32

    # Lane-dense layout: batch on sublanes, time on lanes.
    x2d = x.reshape(B, T).astype(f32)

    # Recurrent weights -> (HP, 4*HP): rows are the incoming h index, columns
    # are gate-padded slabs [i | f | g | o], each zero-padded 200 -> 256 so
    # gate slices land on 128-lane vreg boundaries.  gates = h @ W_h.
    w_hh_g = jnp.transpose(w_hh.astype(f32).reshape(4, H, H), (0, 2, 1))   # (4, Hin, Hout)
    w_h4 = jnp.zeros((4, HP, HP), f32).at[:, :H, :H].set(w_hh_g)
    w_h = jnp.transpose(w_h4, (1, 0, 2)).reshape(HP, 4 * HP)               # (HP, 4*HP)

    # Input projection row (input_size == 1) and combined bias, gate-padded.
    w_ih_row = jnp.zeros((4, HP), f32).at[:, :H].set(
        w_ih.astype(f32).reshape(4, H)).reshape(1, 4 * HP)
    b_row = jnp.zeros((4, HP), f32).at[:, :H].set(
        (b_ih + b_hh).astype(f32).reshape(4, H)).reshape(1, 4 * HP)

    w_lin_row = jnp.zeros((1, HP), f32).at[:, :H].set(w_lin.astype(f32).reshape(1, H))
    b_lin_s = b_lin.astype(f32).reshape(1, 1)

    T_BLK = T if T <= t_blk else t_blk      # 512-lane blocks, or full T if small
    B_BLK = B if B <= 8 else 8              # batch rides sublanes
    grid = (pl.cdiv(B, B_BLK), pl.cdiv(T, T_BLK))

    out2d = pl.pallas_call(
        lstm_linear_kernel,
        out_shape=jax.ShapeDtypeStruct((B, T), f32),
        grid_spec=pltpu.PrefetchScalarGridSpec(
            num_scalar_prefetch=0,
            grid=grid,
            in_specs=[
                pl.BlockSpec((B_BLK, T_BLK), lambda b, t: (b, t)),      # x
                pl.BlockSpec((HP, 4 * HP), lambda b, t: (0, 0)),        # W_h
                pl.BlockSpec((1, 4 * HP), lambda b, t: (0, 0)),         # w_ih row
                pl.BlockSpec((1, 4 * HP), lambda b, t: (0, 0)),         # bias row
                pl.BlockSpec((1, HP), lambda b, t: (0, 0)),             # linear.weight
                pl.BlockSpec((1, 1), lambda b, t: (0, 0)),              # linear.bias
            ],
            out_specs=pl.BlockSpec((B_BLK, T_BLK), lambda b, t: (b, t)),
            scratch_shapes=[
                pltpu.VMEM((B_BLK, HP), f32),   # h
                pltpu.VMEM((B_BLK, HP), f32),   # c
            ],
        ),
        compiler_params=pltpu.CompilerParams(
            dimension_semantics=("parallel", "arbitrary")),
    )(x2d, w_h, w_ih_row, b_row, w_lin_row, b_lin_s)

    return out2d.reshape(B, T, 1)


def make_params(key, H=HIDDEN):
    """Deterministic init with PyTorch LSTM/Linear parameter shapes."""
    ks = jax.random.split(key, 6)
    bound = 1.0 / jnp.sqrt(jnp.float32(H))
    u = lambda k, shape: jax.random.uniform(k, shape, jnp.float32, -bound, bound)
    w_ih = u(ks[0], (4 * H, 1))       # weight_ih_l0
    w_hh = u(ks[1], (4 * H, H))       # weight_hh_l0
    b_ih = u(ks[2], (4 * H,))         # bias_ih_l0
    b_hh = u(ks[3], (4 * H,))         # bias_hh_l0
    w_lin = u(ks[4], (1, H))          # linear.weight
    b_lin = u(ks[5], (1,))            # linear.bias
    return (w_ih, w_hh, b_ih, b_hh, w_lin, b_lin)


def air_model_reference(x, params):
    """Pure-JAX reference (PyTorch LSTM gate order i, f, g, o)."""
    w_ih, w_hh, b_ih, b_hh, w_lin, b_lin = params
    B, T, _ = x.shape
    H = HIDDEN
    h = jnp.zeros((B, H), jnp.float32)
    c = jnp.zeros((B, H), jnp.float32)
    ys = []
    for t in range(T):
        gates = x[:, t, :] @ w_ih.T + h @ w_hh.T + b_ih + b_hh
        i = jax.nn.sigmoid(gates[:, 0 * H:1 * H])
        f = jax.nn.sigmoid(gates[:, 1 * H:2 * H])
        g = jnp.tanh(gates[:, 2 * H:3 * H])
        o = jax.nn.sigmoid(gates[:, 3 * H:4 * H])
        c = f * c + i * g
        h = o * jnp.tanh(c)
        ys.append(h @ w_lin.T + b_lin)
    return jnp.stack(ys, axis=1)                                          # (B, T, 1)


if __name__ == "__main__":
    import numpy as np

    key = jax.random.PRNGKey(0)
    kx, kp = jax.random.split(key)

    B, T = 2, 8
    x = jax.random.normal(kx, (B, T, 1), dtype=jnp.float32)               # (batch, seq, 1)
    params = make_params(kp)

    out = jax.block_until_ready(air_model_forward(x, params))

    ref = jax.block_until_ready(air_model_reference(x, params))
    np.testing.assert_allclose(np.asarray(out), np.asarray(ref),
                               rtol=1e-4, atol=1e-4)     # f32 everywhere; order of adds differs
    assert out.shape == (B, T, 1)

    print("KERNEL_OK")
</pallas_src>

<mosaic_0001>
module attributes {stable_mosaic.version = 11 : i64} {
  func.func @lstm_linear_kernel(%arg0: i32, %arg1: i32, %arg2: memref<2x8xf32, #tpu.memory_space<vmem>>, %arg3: memref<256x1024xf32, #tpu.memory_space<vmem>>, %arg4: memref<1x1024xf32, #tpu.memory_space<vmem>>, %arg5: memref<1x1024xf32, #tpu.memory_space<vmem>>, %arg6: memref<1x256xf32, #tpu.memory_space<vmem>>, %arg7: memref<1x1xf32, #tpu.memory_space<vmem>>, %arg8: memref<2x8xf32, #tpu.memory_space<vmem>>, %arg9: memref<2x256xf32, #tpu.memory_space<vmem>>, %arg10: memref<2x256xf32, #tpu.memory_space<vmem>>) attributes {dimension_semantics = [#tpu.dimension_semantics<parallel>, #tpu.dimension_semantics<arbitrary>], iteration_bounds = array<i64: 1, 1>, scalar_prefetch = 0 : i64, scratch_operands = 2 : i64, tpu.core_type = #tpu.core_type<tc>, window_params = [{transform_indices = @transform_0, window_bounds = array<i64: 2, 8>}, {pipeline_mode = #tpu.pipeline_mode<synchronous>, transform_indices = @transform_1, window_bounds = array<i64: 256, 1024>}, {pipeline_mode = #tpu.pipeline_mode<synchronous>, transform_indices = @transform_2, window_bounds = array<i64: 1, 1024>}, {pipeline_mode = #tpu.pipeline_mode<synchronous>, transform_indices = @transform_3, window_bounds = array<i64: 1, 1024>}, {pipeline_mode = #tpu.pipeline_mode<synchronous>, transform_indices = @transform_4, window_bounds = array<i64: 1, 256>}, {pipeline_mode = #tpu.pipeline_mode<synchronous>, transform_indices = @transform_5, window_bounds = array<i64: 1, 1>}, {transform_indices = @transform_6, window_bounds = array<i64: 2, 8>}]} {
    %c0_i32 = arith.constant 0 : i32
    %0 = arith.cmpi eq, %arg1, %c0_i32 : i32
    %1 = arith.extui %0 : i1 to i32
    %c0_i32_0 = arith.constant 0 : i32
    %2 = arith.cmpi ne, %1, %c0_i32_0 : i32
    scf.if %2 {
      %cst_127 = arith.constant 0.000000e+00 : f32
      %428 = vector.broadcast %cst_127 : f32 to vector<2x256xf32>
      %c0_128 = arith.constant 0 : index
      %c0_129 = arith.constant 0 : index
      %429 = vector.load %arg9[%c0_128, %c0_129] : memref<2x256xf32, #tpu.memory_space<vmem>>, vector<2x256xf32>
      tpu.vector_store %arg9[%c0_128, %c0_129], %428 {strides = array<i32>} : memref<2x256xf32, #tpu.memory_space<vmem>>, vector<2x256xf32>,
      %cst_130 = arith.constant 0.000000e+00 : f32
      %430 = vector.broadcast %cst_130 : f32 to vector<2x256xf32>
      %c0_131 = arith.constant 0 : index
      %c0_132 = arith.constant 0 : index
      %431 = vector.load %arg10[%c0_131, %c0_132] : memref<2x256xf32, #tpu.memory_space<vmem>>, vector<2x256xf32>
      tpu.vector_store %arg10[%c0_131, %c0_132], %430 {strides = array<i32>} : memref<2x256xf32, #tpu.memory_space<vmem>>, vector<2x256xf32>,
    } else {
    }
    %c0 = arith.constant 0 : index
    %c0_1 = arith.constant 0 : index
    %3 = vector.load %arg3[%c0, %c0_1] : memref<256x1024xf32, #tpu.memory_space<vmem>>, vector<256x1024xf32>
    %c0_2 = arith.constant 0 : index
    %c0_3 = arith.constant 0 : index
    %4 = vector.load %arg4[%c0_2, %c0_3] : memref<1x1024xf32, #tpu.memory_space<vmem>>, vector<1x1024xf32>
    %c0_4 = arith.constant 0 : index
    %c0_5 = arith.constant 0 : index
    %5 = vector.load %arg5[%c0_4, %c0_5] : memref<1x1024xf32, #tpu.memory_space<vmem>>, vector<1x1024xf32>
    %c0_6 = arith.constant 0 : index
    %c0_7 = arith.constant 0 : index
    %6 = vector.load %arg6[%c0_6, %c0_7] : memref<1x256xf32, #tpu.memory_space<vmem>>, vector<1x256xf32>
    %7 = vector.shape_cast %6 : vector<1x256xf32> to vector<1x256xf32>
    %8 = vector.broadcast %7 : vector<1x256xf32> to vector<2x256xf32>
    %c0_8 = arith.constant 0 : index
    %c0_9 = arith.constant 0 : index
    %9 = vector.load %arg7[%c0_8, %c0_9] : memref<1x1xf32, #tpu.memory_space<vmem>>, vector<1x1xf32>
    %10 = vector.shape_cast %9 : vector<1x1xf32> to vector<1x1xf32>
    %11 = vector.broadcast %10 : vector<1x1xf32> to vector<2x1xf32>
    %c0_10 = arith.constant 0 : index
    %c0_11 = arith.constant 0 : index
    %12 = vector.load %arg2[%c0_10, %c0_11] : memref<2x8xf32, #tpu.memory_space<vmem>>, vector<2x8xf32>
    %13 = tpu.iota {dimensions = array<i32: 1>} : vector<2x8xi32>
    %c0_12 = arith.constant 0 : index
    %c0_13 = arith.constant 0 : index
    %14 = vector.load %arg9[%c0_12, %c0_13] : memref<2x256xf32, #tpu.memory_space<vmem>>, vector<2x256xf32>
    %c0_14 = arith.constant 0 : index
    %c0_15 = arith.constant 0 : index
    %15 = vector.load %arg10[%c0_14, %c0_15] : memref<2x256xf32, #tpu.memory_space<vmem>>, vector<2x256xf32>
    %cst = arith.constant 0.000000e+00 : f32
    %16 = vector.broadcast %cst : f32 to vector<2x8xf32>
    %c0_i32_16 = arith.constant 0 : i32
    %17 = vector.broadcast %c0_i32_16 : i32 to vector<2x8xi32>
    %18 = arith.cmpi eq, %13, %17 : vector<2x8xi32>
    %cst_17 = arith.constant 0.000000e+00 : f32
    %19 = vector.broadcast %cst_17 : f32 to vector<2x8xf32>
    %20 = arith.select %18, %12, %19 : vector<2x8xi1>, vector<2x8xf32>
    %cst_18 = arith.constant dense<0.000000e+00> : vector<2xf32>
    %21 = vector.multi_reduction <add>, %20, %cst_18 [1] : vector<2x8xf32> to vector<2xf32>
    %22 = vector.shape_cast %21 : vector<2xf32> to vector<2x1xf32>
    %cst_19 = arith.constant dense<0.000000e+00> : vector<2x1024xf32>
    %23 = tpu.matmul %14, %3, %cst_19 {dimension_numbers = #tpu.dot_dimension_numbers<[1], [0], [0], [1], [0, 0, 1, 1], [], []>} : vector<2x256xf32>, vector<256x1024xf32>, vector<2x1024xf32> -> vector<2x1024xf32>
    %24 = vector.broadcast %22 : vector<2x1xf32> to vector<2x1024xf32>
    %25 = vector.broadcast %4 : vector<1x1024xf32> to vector<2x1024xf32>
    %26 = arith.mulf %24, %25 : vector<2x1024xf32>
    %27 = arith.addf %23, %26 : vector<2x1024xf32>
    %28 = vector.broadcast %5 : vector<1x1024xf32> to vector<2x1024xf32>
    %29 = arith.addf %27, %28 : vector<2x1024xf32>
    %30 = vector.extract_strided_slice %29 {offsets = [0, 0], sizes = [2, 256], strides = [1, 1]} : vector<2x1024xf32> to vector<2x256xf32>
    %cst_20 = arith.constant 5.000000e-01 : f32
    %31 = vector.broadcast %cst_20 : f32 to vector<2x256xf32>
    %32 = arith.mulf %31, %30 : vector<2x256xf32>
    %33 = math.tanh %32 : vector<2x256xf32>
    %cst_21 = arith.constant 5.000000e-01 : f32
    %34 = vector.broadcast %cst_21 : f32 to vector<2x256xf32>
    %35 = arith.mulf %34, %33 : vector<2x256xf32>
    %cst_22 = arith.constant 5.000000e-01 : f32
    %36 = vector.broadcast %cst_22 : f32 to vector<2x256xf32>
    %37 = arith.addf %35, %36 : vector<2x256xf32>
    %38 = vector.extract_strided_slice %29 {offsets = [0, 256], sizes = [2, 256], strides = [1, 1]} : vector<2x1024xf32> to vector<2x256xf32>
    %cst_23 = arith.constant 5.000000e-01 : f32
    %39 = vector.broadcast %cst_23 : f32 to vector<2x256xf32>
    %40 = arith.mulf %39, %38 : vector<2x256xf32>
    %41 = math.tanh %40 : vector<2x256xf32>
    %cst_24 = arith.constant 5.000000e-01 : f32
    %42 = vector.broadcast %cst_24 : f32 to vector<2x256xf32>
    %43 = arith.mulf %42, %41 : vector<2x256xf32>
    %cst_25 = arith.constant 5.000000e-01 : f32
    %44 = vector.broadcast %cst_25 : f32 to vector<2x256xf32>
    %45 = arith.addf %43, %44 : vector<2x256xf32>
    %46 = vector.extract_strided_slice %29 {offsets = [0, 512], sizes = [2, 256], strides = [1, 1]} : vector<2x1024xf32> to vector<2x256xf32>
    %47 = math.tanh %46 : vector<2x256xf32>
    %48 = vector.extract_strided_slice %29 {offsets = [0, 768], sizes = [2, 256], strides = [1, 1]} : vector<2x1024xf32> to vector<2x256xf32>
    %cst_26 = arith.constant 5.000000e-01 : f32
    %49 = vector.broadcast %cst_26 : f32 to vector<2x256xf32>
    %50 = arith.mulf %49, %48 : vector<2x256xf32>
    %51 = math.tanh %50 : vector<2x256xf32>
    %cst_27 = arith.constant 5.000000e-01 : f32
    %52 = vector.broadcast %cst_27 : f32 to vector<2x256xf32>
    %53 = arith.mulf %52, %51 : vector<2x256xf32>
    %cst_28 = arith.constant 5.000000e-01 : f32
    %54 = vector.broadcast %cst_28 : f32 to vector<2x256xf32>
    %55 = arith.addf %53, %54 : vector<2x256xf32>
    %56 = arith.mulf %45, %15 : vector<2x256xf32>
    %57 = arith.mulf %37, %47 : vector<2x256xf32>
    %58 = arith.addf %56, %57 : vector<2x256xf32>
    %59 = math.tanh %58 : vector<2x256xf32>
    %60 = arith.mulf %55, %59 : vector<2x256xf32>
    %61 = arith.mulf %60, %8 : vector<2x256xf32>
    %cst_29 = arith.constant dense<0.000000e+00> : vector<2xf32>
    %62 = vector.multi_reduction <add>, %61, %cst_29 [1] : vector<2x256xf32> to vector<2xf32>
    %63 = vector.shape_cast %62 : vector<2xf32> to vector<2x1xf32>
    %64 = arith.addf %63, %11 : vector<2x1xf32>
    %65 = vector.shape_cast %64 : vector<2x1xf32> to vector<2x1xf32>
    %66 = vector.broadcast %65 : vector<2x1xf32> to vector<2x8xf32>
    %67 = arith.select %18, %66, %16 : vector<2x8xi1>, vector<2x8xf32>
    %c1_i32 = arith.constant 1 : i32
    %68 = vector.broadcast %c1_i32 : i32 to vector<2x8xi32>
    %69 = arith.cmpi eq, %13, %68 : vector<2x8xi32>
    %cst_30 = arith.constant 0.000000e+00 : f32
    %70 = vector.broadcast %cst_30 : f32 to vector<2x8xf32>
    %71 = arith.select %69, %12, %70 : vector<2x8xi1>, vector<2x8xf32>
    %cst_31 = arith.constant dense<0.000000e+00> : vector<2xf32>
    %72 = vector.multi_reduction <add>, %71, %cst_31 [1] : vector<2x8xf32> to vector<2xf32>
    %73 = vector.shape_cast %72 : vector<2xf32> to vector<2x1xf32>
    %cst_32 = arith.constant dense<0.000000e+00> : vector<2x1024xf32>
    %74 = tpu.matmul %60, %3, %cst_32 {dimension_numbers = #tpu.dot_dimension_numbers<[1], [0], [0], [1], [0, 0, 1, 1], [], []>} : vector<2x256xf32>, vector<256x1024xf32>, vector<2x1024xf32> -> vector<2x1024xf32>
    %75 = vector.broadcast %73 : vector<2x1xf32> to vector<2x1024xf32>
    %76 = vector.broadcast %4 : vector<1x1024xf32> to vector<2x1024xf32>
    %77 = arith.mulf %75, %76 : vector<2x1024xf32>
    %78 = arith.addf %74, %77 : vector<2x1024xf32>
    %79 = vector.broadcast %5 : vector<1x1024xf32> to vector<2x1024xf32>
    %80 = arith.addf %78, %79 : vector<2x1024xf32>
    %81 = vector.extract_strided_slice %80 {offsets = [0, 0], sizes = [2, 256], strides = [1, 1]} : vector<2x1024xf32> to vector<2x256xf32>
    %cst_33 = arith.constant 5.000000e-01 : f32
    %82 = vector.broadcast %cst_33 : f32 to vector<2x256xf32>
    %83 = arith.mulf %82, %81 : vector<2x256xf32>
    %84 = math.tanh %83 : vector<2x256xf32>
    %cst_34 = arith.constant 5.000000e-01 : f32
    %85 = vector.broadcast %cst_34 : f32 to vector<2x256xf32>
    %86 = arith.mulf %85, %84 : vector<2x256xf32>
    %cst_35 = arith.constant 5.000000e-01 : f32
    %87 = vector.broadcast %cst_35 : f32 to vector<2x256xf32>
    %88 = arith.addf %86, %87 : vector<2x256xf32>
    %89 = vector.extract_strided_slice %80 {offsets = [0, 256], sizes = [2, 256], strides = [1, 1]} : vector<2x1024xf32> to vector<2x256xf32>
    %cst_36 = arith.constant 5.000000e-01 : f32
    %90 = vector.broadcast %cst_36 : f32 to vector<2x256xf32>
    %91 = arith.mulf %90, %89 : vector<2x256xf32>
    %92 = math.tanh %91 : vector<2x256xf32>
    %cst_37 = arith.constant 5.000000e-01 : f32
    %93 = vector.broadcast %cst_37 : f32 to vector<2x256xf32>
    %94 = arith.mulf %93, %92 : vector<2x256xf32>
    %cst_38 = arith.constant 5.000000e-01 : f32
    %95 = vector.broadcast %cst_38 : f32 to vector<2x256xf32>
    %96 = arith.addf %94, %95 : vector<2x256xf32>
    %97 = vector.extract_strided_slice %80 {offsets = [0, 512], sizes = [2, 256], strides = [1, 1]} : vector<2x1024xf32> to vector<2x256xf32>
    %98 = math.tanh %97 : vector<2x256xf32>
    %99 = vector.extract_strided_slice %80 {offsets = [0, 768], sizes = [2, 256], strides = [1, 1]} : vector<2x1024xf32> to vector<2x256xf32>
    %cst_39 = arith.constant 5.000000e-01 : f32
    %100 = vector.broadcast %cst_39 : f32 to vector<2x256xf32>
    %101 = arith.mulf %100, %99 : vector<2x256xf32>
    %102 = math.tanh %101 : vector<2x256xf32>
    %cst_40 = arith.constant 5.000000e-01 : f32
    %103 = vector.broadcast %cst_40 : f32 to vector<2x256xf32>
    %104 = arith.mulf %103, %102 : vector<2x256xf32>
    %cst_41 = arith.constant 5.000000e-01 : f32
    %105 = vector.broadcast %cst_41 : f32 to vector<2x256xf32>
    %106 = arith.addf %104, %105 : vector<2x256xf32>
    %107 = arith.mulf %96, %58 : vector<2x256xf32>
    %108 = arith.mulf %88, %98 : vector<2x256xf32>
    %109 = arith.addf %107, %108 : vector<2x256xf32>
    %110 = math.tanh %109 : vector<2x256xf32>
    %111 = arith.mulf %106, %110 : vector<2x256xf32>
    %112 = arith.mulf %111, %8 : vector<2x256xf32>
    %cst_42 = arith.constant dense<0.000000e+00> : vector<2xf32>
    %113 = vector.multi_reduction <add>, %112, %cst_42 [1] : vector<2x256xf32> to vector<2xf32>
    %114 = vector.shape_cast %113 : vector<2xf32> to vector<2x1xf32>
    %115 = arith.addf %114, %11 : vector<2x1xf32>
    %116 = vector.shape_cast %115 : vector<2x1xf32> to vector<2x1xf32>
    %117 = vector.broadcast %116 : vector<2x1xf32> to vector<2x8xf32>
    %118 = arith.select %69, %117, %67 : vector<2x8xi1>, vector<2x8xf32>
    %c2_i32 = arith.constant 2 : i32
    %119 = vector.broadcast %c2_i32 : i32 to vector<2x8xi32>
    %120 = arith.cmpi eq, %13, %119 : vector<2x8xi32>
    %cst_43 = arith.constant 0.000000e+00 : f32
    %121 = vector.broadcast %cst_43 : f32 to vector<2x8xf32>
    %122 = arith.select %120, %12, %121 : vector<2x8xi1>, vector<2x8xf32>
    %cst_44 = arith.constant dense<0.000000e+00> : vector<2xf32>
    %123 = vector.multi_reduction <add>, %122, %cst_44 [1] : vector<2x8xf32> to vector<2xf32>
    %124 = vector.shape_cast %123 : vector<2xf32> to vector<2x1xf32>
    %cst_45 = arith.constant dense<0.000000e+00> : vector<2x1024xf32>
    %125 = tpu.matmul %111, %3, %cst_45 {dimension_numbers = #tpu.dot_dimension_numbers<[1], [0], [0], [1], [0, 0, 1, 1], [], []>} : vector<2x256xf32>, vector<256x1024xf32>, vector<2x1024xf32> -> vector<2x1024xf32>
    %126 = vector.broadcast %124 : vector<2x1xf32> to vector<2x1024xf32>
    %127 = vector.broadcast %4 : vector<1x1024xf32> to vector<2x1024xf32>
    %128 = arith.mulf %126, %127 : vector<2x1024xf32>
    %129 = arith.addf %125, %128 : vector<2x1024xf32>
    %130 = vector.broadcast %5 : vector<1x1024xf32> to vector<2x1024xf32>
    %131 = arith.addf %129, %130 : vector<2x1024xf32>
    %132 = vector.extract_strided_slice %131 {offsets = [0, 0], sizes = [2, 256], strides = [1, 1]} : vector<2x1024xf32> to vector<2x256xf32>
    %cst_46 = arith.constant 5.000000e-01 : f32
    %133 = vector.broadcast %cst_46 : f32 to vector<2x256xf32>
    %134 = arith.mulf %133, %132 : vector<2x256xf32>
    %135 = math.tanh %134 : vector<2x256xf32>
    %cst_47 = arith.constant 5.000000e-01 : f32
    %136 = vector.broadcast %cst_47 : f32 to vector<2x256xf32>
    %137 = arith.mulf %136, %135 : vector<2x256xf32>
    %cst_48 = arith.constant 5.000000e-01 : f32
    %138 = vector.broadcast %cst_48 : f32 to vector<2x256xf32>
    %139 = arith.addf %137, %138 : vector<2x256xf32>
    %140 = vector.extract_strided_slice %131 {offsets = [0, 256], sizes = [2, 256], strides = [1, 1]} : vector<2x1024xf32> to vector<2x256xf32>
    %cst_49 = arith.constant 5.000000e-01 : f32
    %141 = vector.broadcast %cst_49 : f32 to vector<2x256xf32>
    %142 = arith.mulf %141, %140 : vector<2x256xf32>
    %143 = math.tanh %142 : vector<2x256xf32>
    %cst_50 = arith.constant 5.000000e-01 : f32
    %144 = vector.broadcast %cst_50 : f32 to vector<2x256xf32>
    %145 = arith.mulf %144, %143 : vector<2x256xf32>
    %cst_51 = arith.constant 5.000000e-01 : f32
    %146 = vector.broadcast %cst_51 : f32 to vector<2x256xf32>
    %147 = arith.addf %145, %146 : vector<2x256xf32>
    %148 = vector.extract_strided_slice %131 {offsets = [0, 512], sizes = [2, 256], strides = [1, 1]} : vector<2x1024xf32> to vector<2x256xf32>
    %149 = math.tanh %148 : vector<2x256xf32>
    %150 = vector.extract_strided_slice %131 {offsets = [0, 768], sizes = [2, 256], strides = [1, 1]} : vector<2x1024xf32> to vector<2x256xf32>
    %cst_52 = arith.constant 5.000000e-01 : f32
    %151 = vector.broadcast %cst_52 : f32 to vector<2x256xf32>
    %152 = arith.mulf %151, %150 : vector<2x256xf32>
    %153 = math.tanh %152 : vector<2x256xf32>
    %cst_53 = arith.constant 5.000000e-01 : f32
    %154 = vector.broadcast %cst_53 : f32 to vector<2x256xf32>
    %155 = arith.mulf %154, %153 : vector<2x256xf32>
    %cst_54 = arith.constant 5.000000e-01 : f32
    %156 = vector.broadcast %cst_54 : f32 to vector<2x256xf32>
    %157 = arith.addf %155, %156 : vector<2x256xf32>
    %158 = arith.mulf %147, %109 : vector<2x256xf32>
    %159 = arith.mulf %139, %149 : vector<2x256xf32>
    %160 = arith.addf %158, %159 : vector<2x256xf32>
    %161 = math.tanh %160 : vector<2x256xf32>
    %162 = arith.mulf %157, %161 : vector<2x256xf32>
    %163 = arith.mulf %162, %8 : vector<2x256xf32>
    %cst_55 = arith.constant dense<0.000000e+00> : vector<2xf32>
    %164 = vector.multi_reduction <add>, %163, %cst_55 [1] : vector<2x256xf32> to vector<2xf32>
    %165 = vector.shape_cast %164 : vector<2xf32> to vector<2x1xf32>
    %166 = arith.addf %165, %11 : vector<2x1xf32>
    %167 = vector.shape_cast %166 : vector<2x1xf32> to vector<2x1xf32>
    %168 = vector.broadcast %167 : vector<2x1xf32> to vector<2x8xf32>
    %169 = arith.select %120, %168, %118 : vector<2x8xi1>, vector<2x8xf32>
    %c3_i32 = arith.constant 3 : i32
    %170 = vector.broadcast %c3_i32 : i32 to vector<2x8xi32>
    %171 = arith.cmpi eq, %13, %170 : vector<2x8xi32>
    %cst_56 = arith.constant 0.000000e+00 : f32
    %172 = vector.broadcast %cst_56 : f32 to vector<2x8xf32>
    %173 = arith.select %171, %12, %172 : vector<2x8xi1>, vector<2x8xf32>
    %cst_57 = arith.constant dense<0.000000e+00> : vector<2xf32>
    %174 = vector.multi_reduction <add>, %173, %cst_57 [1] : vector<2x8xf32> to vector<2xf32>
    %175 = vector.shape_cast %174 : vector<2xf32> to vector<2x1xf32>
    %cst_58 = arith.constant dense<0.000000e+00> : vector<2x1024xf32>
    %176 = tpu.matmul %162, %3, %cst_58 {dimension_numbers = #tpu.dot_dimension_numbers<[1], [0], [0], [1], [0, 0, 1, 1], [], []>} : vector<2x256xf32>, vector<256x1024xf32>, vector<2x1024xf32> -> vector<2x1024xf32>
    %177 = vector.broadcast %175 : vector<2x1xf32> to vector<2x1024xf32>
    %178 = vector.broadcast %4 : vector<1x1024xf32> to vector<2x1024xf32>
    %179 = arith.mulf %177, %178 : vector<2x1024xf32>
    %180 = arith.addf %176, %179 : vector<2x1024xf32>
    %181 = vector.broadcast %5 : vector<1x1024xf32> to vector<2x1024xf32>
    %182 = arith.addf %180, %181 : vector<2x1024xf32>
    %183 = vector.extract_strided_slice %182 {offsets = [0, 0], sizes = [2, 256], strides = [1, 1]} : vector<2x1024xf32> to vector<2x256xf32>
    %cst_59 = arith.constant 5.000000e-01 : f32
    %184 = vector.broadcast %cst_59 : f32 to vector<2x256xf32>
    %185 = arith.mulf %184, %183 : vector<2x256xf32>
    %186 = math.tanh %185 : vector<2x256xf32>
    %cst_60 = arith.constant 5.000000e-01 : f32
    %187 = vector.broadcast %cst_60 : f32 to vector<2x256xf32>
    %188 = arith.mulf %187, %186 : vector<2x256xf32>
    %cst_61 = arith.constant 5.000000e-01 : f32
    %189 = vector.broadcast %cst_61 : f32 to vector<2x256xf32>
    %190 = arith.addf %188, %189 : vector<2x256xf32>
    %191 = vector.extract_strided_slice %182 {offsets = [0, 256], sizes = [2, 256], strides = [1, 1]} : vector<2x1024xf32> to vector<2x256xf32>
    %cst_62 = arith.constant 5.000000e-01 : f32
    %192 = vector.broadcast %cst_62 : f32 to vector<2x256xf32>
    %193 = arith.mulf %192, %191 : vector<2x256xf32>
    %194 = math.tanh %193 : vector<2x256xf32>
    %cst_63 = arith.constant 5.000000e-01 : f32
    %195 = vector.broadcast %cst_63 : f32 to vector<2x256xf32>
    %196 = arith.mulf %195, %194 : vector<2x256xf32>
    %cst_64 = arith.constant 5.000000e-01 : f32
    %197 = vector.broadcast %cst_64 : f32 to vector<2x256xf32>
    %198 = arith.addf %196, %197 : vector<2x256xf32>
    %199 = vector.extract_strided_slice %182 {offsets = [0, 512], sizes = [2, 256], strides = [1, 1]} : vector<2x1024xf32> to vector<2x256xf32>
    %200 = math.tanh %199 : vector<2x256xf32>
    %201 = vector.extract_strided_slice %182 {offsets = [0, 768], sizes = [2, 256], strides = [1, 1]} : vector<2x1024xf32> to vector<2x256xf32>
    %cst_65 = arith.constant 5.000000e-01 : f32
    %202 = vector.broadcast %cst_65 : f32 to vector<2x256xf32>
    %203 = arith.mulf %202, %201 : vector<2x256xf32>
    %204 = math.tanh %203 : vector<2x256xf32>
    %cst_66 = arith.constant 5.000000e-01 : f32
    %205 = vector.broadcast %cst_66 : f32 to vector<2x256xf32>
    %206 = arith.mulf %205, %204 : vector<2x256xf32>
    %cst_67 = arith.constant 5.000000e-01 : f32
    %207 = vector.broadcast %cst_67 : f32 to vector<2x256xf32>
    %208 = arith.addf %206, %207 : vector<2x256xf32>
    %209 = arith.mulf %198, %160 : vector<2x256xf32>
    %210 = arith.mulf %190, %200 : vector<2x256xf32>
    %211 = arith.addf %209, %210 : vector<2x256xf32>
    %212 = math.tanh %211 : vector<2x256xf32>
    %213 = arith.mulf %208, %212 : vector<2x256xf32>
    %214 = arith.mulf %213, %8 : vector<2x256xf32>
    %cst_68 = arith.constant dense<0.000000e+00> : vector<2xf32>
    %215 = vector.multi_reduction <add>, %214, %cst_68 [1] : vector<2x256xf32> to vector<2xf32>
    %216 = vector.shape_cast %215 : vector<2xf32> to vector<2x1xf32>
    %217 = arith.addf %216, %11 : vector<2x1xf32>
    %218 = vector.shape_cast %217 : vector<2x1xf32> to vector<2x1xf32>
    %219 = vector.broadcast %218 : vector<2x1xf32> to vector<2x8xf32>
    %220 = arith.select %171, %219, %169 : vector<2x8xi1>, vector<2x8xf32>
    %c4_i32 = arith.constant 4 : i32
    %221 = vector.broadcast %c4_i32 : i32 to vector<2x8xi32>
    %222 = arith.cmpi eq, %13, %221 : vector<2x8xi32>
    %cst_69 = arith.constant 0.000000e+00 : f32
    %223 = vector.broadcast %cst_69 : f32 to vector<2x8xf32>
    %224 = arith.select %222, %12, %223 : vector<2x8xi1>, vector<2x8xf32>
    %cst_70 = arith.constant dense<0.000000e+00> : vector<2xf32>
    %225 = vector.multi_reduction <add>, %224, %cst_70 [1] : vector<2x8xf32> to vector<2xf32>
    %226 = vector.shape_cast %225 : vector<2xf32> to vector<2x1xf32>
    %cst_71 = arith.constant dense<0.000000e+00> : vector<2x1024xf32>
    %227 = tpu.matmul %213, %3, %cst_71 {dimension_numbers = #tpu.dot_dimension_numbers<[1], [0], [0], [1], [0, 0, 1, 1], [], []>} : vector<2x256xf32>, vector<256x1024xf32>, vector<2x1024xf32> -> vector<2x1024xf32>
    %228 = vector.broadcast %226 : vector<2x1xf32> to vector<2x1024xf32>
    %229 = vector.broadcast %4 : vector<1x1024xf32> to vector<2x1024xf32>
    %230 = arith.mulf %228, %229 : vector<2x1024xf32>
    %231 = arith.addf %227, %230 : vector<2x1024xf32>
    %232 = vector.broadcast %5 : vector<1x1024xf32> to vector<2x1024xf32>
    %233 = arith.addf %231, %232 : vector<2x1024xf32>
    %234 = vector.extract_strided_slice %233 {offsets = [0, 0], sizes = [2, 256], strides = [1, 1]} : vector<2x1024xf32> to vector<2x256xf32>
    %cst_72 = arith.constant 5.000000e-01 : f32
    %235 = vector.broadcast %cst_72 : f32 to vector<2x256xf32>
    %236 = arith.mulf %235, %234 : vector<2x256xf32>
    %237 = math.tanh %236 : vector<2x256xf32>
    %cst_73 = arith.constant 5.000000e-01 : f32
    %238 = vector.broadcast %cst_73 : f32 to vector<2x256xf32>
    %239 = arith.mulf %238, %237 : vector<2x256xf32>
    %cst_74 = arith.constant 5.000000e-01 : f32
    %240 = vector.broadcast %cst_74 : f32 to vector<2x256xf32>
    %241 = arith.addf %239, %240 : vector<2x256xf32>
    %242 = vector.extract_strided_slice %233 {offsets = [0, 256], sizes = [2, 256], strides = [1, 1]} : vector<2x1024xf32> to vector<2x256xf32>
    %cst_75 = arith.constant 5.000000e-01 : f32
    %243 = vector.broadcast %cst_75 : f32 to vector<2x256xf32>
    %244 = arith.mulf %243, %242 : vector<2x256xf32>
    %245 = math.tanh %244 : vector<2x256xf32>
    %cst_76 = arith.constant 5.000000e-01 : f32
    %246 = vector.broadcast %cst_76 : f32 to vector<2x256xf32>
    %247 = arith.mulf %246, %245 : vector<2x256xf32>
    %cst_77 = arith.constant 5.000000e-01 : f32
    %248 = vector.broadcast %cst_77 : f32 to vector<2x256xf32>
    %249 = arith.addf %247, %248 : vector<2x256xf32>
    %250 = vector.extract_strided_slice %233 {offsets = [0, 512], sizes = [2, 256], strides = [1, 1]} : vector<2x1024xf32> to vector<2x256xf32>
    %251 = math.tanh %250 : vector<2x256xf32>
    %252 = vector.extract_strided_slice %233 {offsets = [0, 768], sizes = [2, 256], strides = [1, 1]} : vector<2x1024xf32> to vector<2x256xf32>
    %cst_78 = arith.constant 5.000000e-01 : f32
    %253 = vector.broadcast %cst_78 : f32 to vector<2x256xf32>
    %254 = arith.mulf %253, %252 : vector<2x256xf32>
    %255 = math.tanh %254 : vector<2x256xf32>
    %cst_79 = arith.constant 5.000000e-01 : f32
    %256 = vector.broadcast %cst_79 : f32 to vector<2x256xf32>
    %257 = arith.mulf %256, %255 : vector<2x256xf32>
    %cst_80 = arith.constant 5.000000e-01 : f32
    %258 = vector.broadcast %cst_80 : f32 to vector<2x256xf32>
    %259 = arith.addf %257, %258 : vector<2x256xf32>
    %260 = arith.mulf %249, %211 : vector<2x256xf32>
    %261 = arith.mulf %241, %251 : vector<2x256xf32>
    %262 = arith.addf %260, %261 : vector<2x256xf32>
    %263 = math.tanh %262 : vector<2x256xf32>
    %264 = arith.mulf %259, %263 : vector<2x256xf32>
    %265 = arith.mulf %264, %8 : vector<2x256xf32>
    %cst_81 = arith.constant dense<0.000000e+00> : vector<2xf32>
    %266 = vector.multi_reduction <add>, %265, %cst_81 [1] : vector<2x256xf32> to vector<2xf32>
    %267 = vector.shape_cast %266 : vector<2xf32> to vector<2x1xf32>
    %268 = arith.addf %267, %11 : vector<2x1xf32>
    %269 = vector.shape_cast %268 : vector<2x1xf32> to vector<2x1xf32>
    %270 = vector.broadcast %269 : vector<2x1xf32> to vector<2x8xf32>
    %271 = arith.select %222, %270, %220 : vector<2x8xi1>, vector<2x8xf32>
    %c5_i32 = arith.constant 5 : i32
    %272 = vector.broadcast %c5_i32 : i32 to vector<2x8xi32>
    %273 = arith.cmpi eq, %13, %272 : vector<2x8xi32>
    %cst_82 = arith.constant 0.000000e+00 : f32
    %274 = vector.broadcast %cst_82 : f32 to vector<2x8xf32>
    %275 = arith.select %273, %12, %274 : vector<2x8xi1>, vector<2x8xf32>
    %cst_83 = arith.constant dense<0.000000e+00> : vector<2xf32>
    %276 = vector.multi_reduction <add>, %275, %cst_83 [1] : vector<2x8xf32> to vector<2xf32>
    %277 = vector.shape_cast %276 : vector<2xf32> to vector<2x1xf32>
    %cst_84 = arith.constant dense<0.000000e+00> : vector<2x1024xf32>
    %278 = tpu.matmul %264, %3, %cst_84 {dimension_numbers = #tpu.dot_dimension_numbers<[1], [0], [0], [1], [0, 0, 1, 1], [], []>} : vector<2x256xf32>, vector<256x1024xf32>, vector<2x1024xf32> -> vector<2x1024xf32>
    %279 = vector.broadcast %277 : vector<2x1xf32> to vector<2x1024xf32>
    %280 = vector.broadcast %4 : vector<1x1024xf32> to vector<2x1024xf32>
    %281 = arith.mulf %279, %280 : vector<2x1024xf32>
    %282 = arith.addf %278, %281 : vector<2x1024xf32>
    %283 = vector.broadcast %5 : vector<1x1024xf32> to vector<2x1024xf32>
    %284 = arith.addf %282, %283 : vector<2x1024xf32>
    %285 = vector.extract_strided_slice %284 {offsets = [0, 0], sizes = [2, 256], strides = [1, 1]} : vector<2x1024xf32> to vector<2x256xf32>
    %cst_85 = arith.constant 5.000000e-01 : f32
    %286 = vector.broadcast %cst_85 : f32 to vector<2x256xf32>
    %287 = arith.mulf %286, %285 : vector<2x256xf32>
    %288 = math.tanh %287 : vector<2x256xf32>
    %cst_86 = arith.constant 5.000000e-01 : f32
    %289 = vector.broadcast %cst_86 : f32 to vector<2x256xf32>
    %290 = arith.mulf %289, %288 : vector<2x256xf32>
    %cst_87 = arith.constant 5.000000e-01 : f32
    %291 = vector.broadcast %cst_87 : f32 to vector<2x256xf32>
    %292 = arith.addf %290, %291 : vector<2x256xf32>
    %293 = vector.extract_strided_slice %284 {offsets = [0, 256], sizes = [2, 256], strides = [1, 1]} : vector<2x1024xf32> to vector<2x256xf32>
    %cst_88 = arith.constant 5.000000e-01 : f32
    %294 = vector.broadcast %cst_88 : f32 to vector<2x256xf32>
    %295 = arith.mulf %294, %293 : vector<2x256xf32>
    %296 = math.tanh %295 : vector<2x256xf32>
    %cst_89 = arith.constant 5.000000e-01 : f32
    %297 = vector.broadcast %cst_89 : f32 to vector<2x256xf32>
    %298 = arith.mulf %297, %296 : vector<2x256xf32>
    %cst_90 = arith.constant 5.000000e-01 : f32
    %299 = vector.broadcast %cst_90 : f32 to vector<2x256xf32>
    %300 = arith.addf %298, %299 : vector<2x256xf32>
    %301 = vector.extract_strided_slice %284 {offsets = [0, 512], sizes = [2, 256], strides = [1, 1]} : vector<2x1024xf32> to vector<2x256xf32>
    %302 = math.tanh %301 : vector<2x256xf32>
    %303 = vector.extract_strided_slice %284 {offsets = [0, 768], sizes = [2, 256], strides = [1, 1]} : vector<2x1024xf32> to vector<2x256xf32>
    %cst_91 = arith.constant 5.000000e-01 : f32
    %304 = vector.broadcast %cst_91 : f32 to vector<2x256xf32>
    %305 = arith.mulf %304, %303 : vector<2x256xf32>
    %306 = math.tanh %305 : vector<2x256xf32>
    %cst_92 = arith.constant 5.000000e-01 : f32
    %307 = vector.broadcast %cst_92 : f32 to vector<2x256xf32>
    %308 = arith.mulf %307, %306 : vector<2x256xf32>
    %cst_93 = arith.constant 5.000000e-01 : f32
    %309 = vector.broadcast %cst_93 : f32 to vector<2x256xf32>
    %310 = arith.addf %308, %309 : vector<2x256xf32>
    %311 = arith.mulf %300, %262 : vector<2x256xf32>
    %312 = arith.mulf %292, %302 : vector<2x256xf32>
    %313 = arith.addf %311, %312 : vector<2x256xf32>
    %314 = math.tanh %313 : vector<2x256xf32>
    %315 = arith.mulf %310, %314 : vector<2x256xf32>
    %316 = arith.mulf %315, %8 : vector<2x256xf32>
    %cst_94 = arith.constant dense<0.000000e+00> : vector<2xf32>
    %317 = vector.multi_reduction <add>, %316, %cst_94 [1] : vector<2x256xf32> to vector<2xf32>
    %318 = vector.shape_cast %317 : vector<2xf32> to vector<2x1xf32>
    %319 = arith.addf %318, %11 : vector<2x1xf32>
    %320 = vector.shape_cast %319 : vector<2x1xf32> to vector<2x1xf32>
    %321 = vector.broadcast %320 : vector<2x1xf32> to vector<2x8xf32>
    %322 = arith.select %273, %321, %271 : vector<2x8xi1>, vector<2x8xf32>
    %c6_i32 = arith.constant 6 : i32
    %323 = vector.broadcast %c6_i32 : i32 to vector<2x8xi32>
    %324 = arith.cmpi eq, %13, %323 : vector<2x8xi32>
    %cst_95 = arith.constant 0.000000e+00 : f32
    %325 = vector.broadcast %cst_95 : f32 to vector<2x8xf32>
    %326 = arith.select %324, %12, %325 : vector<2x8xi1>, vector<2x8xf32>
    %cst_96 = arith.constant dense<0.000000e+00> : vector<2xf32>
    %327 = vector.multi_reduction <add>, %326, %cst_96 [1] : vector<2x8xf32> to vector<2xf32>
    %328 = vector.shape_cast %327 : vector<2xf32> to vector<2x1xf32>
    %cst_97 = arith.constant dense<0.000000e+00> : vector<2x1024xf32>
    %329 = tpu.matmul %315, %3, %cst_97 {dimension_numbers = #tpu.dot_dimension_numbers<[1], [0], [0], [1], [0, 0, 1, 1], [], []>} : vector<2x256xf32>, vector<256x1024xf32>, vector<2x1024xf32> -> vector<2x1024xf32>
    %330 = vector.broadcast %328 : vector<2x1xf32> to vector<2x1024xf32>
    %331 = vector.broadcast %4 : vector<1x1024xf32> to vector<2x1024xf32>
    %332 = arith.mulf %330, %331 : vector<2x1024xf32>
    %333 = arith.addf %329, %332 : vector<2x1024xf32>
    %334 = vector.broadcast %5 : vector<1x1024xf32> to vector<2x1024xf32>
    %335 = arith.addf %333, %334 : vector<2x1024xf32>
    %336 = vector.extract_strided_slice %335 {offsets = [0, 0], sizes = [2, 256], strides = [1, 1]} : vector<2x1024xf32> to vector<2x256xf32>
    %cst_98 = arith.constant 5.000000e-01 : f32
    %337 = vector.broadcast %cst_98 : f32 to vector<2x256xf32>
    %338 = arith.mulf %337, %336 : vector<2x256xf32>
    %339 = math.tanh %338 : vector<2x256xf32>
    %cst_99 = arith.constant 5.000000e-01 : f32
    %340 = vector.broadcast %cst_99 : f32 to vector<2x256xf32>
    %341 = arith.mulf %340, %339 : vector<2x256xf32>
    %cst_100 = arith.constant 5.000000e-01 : f32
    %342 = vector.broadcast %cst_100 : f32 to vector<2x256xf32>
    %343 = arith.addf %341, %342 : vector<2x256xf32>
    %344 = vector.extract_strided_slice %335 {offsets = [0, 256], sizes = [2, 256], strides = [1, 1]} : vector<2x1024xf32> to vector<2x256xf32>
    %cst_101 = arith.constant 5.000000e-01 : f32
    %345 = vector.broadcast %cst_101 : f32 to vector<2x256xf32>
    %346 = arith.mulf %345, %344 : vector<2x256xf32>
    %347 = math.tanh %346 : vector<2x256xf32>
    %cst_102 = arith.constant 5.000000e-01 : f32
    %348 = vector.broadcast %cst_102 : f32 to vector<2x256xf32>
    %349 = arith.mulf %348, %347 : vector<2x256xf32>
    %cst_103 = arith.constant 5.000000e-01 : f32
    %350 = vector.broadcast %cst_103 : f32 to vector<2x256xf32>
    %351 = arith.addf %349, %350 : vector<2x256xf32>
    %352 = vector.extract_strided_slice %335 {offsets = [0, 512], sizes = [2, 256], strides = [1, 1]} : vector<2x1024xf32> to vector<2x256xf32>
    %353 = math.tanh %352 : vector<2x256xf32>
    %354 = vector.extract_strided_slice %335 {offsets = [0, 768], sizes = [2, 256], strides = [1, 1]} : vector<2x1024xf32> to vector<2x256xf32>
    %cst_104 = arith.constant 5.000000e-01 : f32
    %355 = vector.broadcast %cst_104 : f32 to vector<2x256xf32>
    %356 = arith.mulf %355, %354 : vector<2x256xf32>
    %357 = math.tanh %356 : vector<2x256xf32>
    %cst_105 = arith.constant 5.000000e-01 : f32
    %358 = vector.broadcast %cst_105 : f32 to vector<2x256xf32>
    %359 = arith.mulf %358, %357 : vector<2x256xf32>
    %cst_106 = arith.constant 5.000000e-01 : f32
    %360 = vector.broadcast %cst_106 : f32 to vector<2x256xf32>
    %361 = arith.addf %359, %360 : vector<2x256xf32>
    %362 = arith.mulf %351, %313 : vector<2x256xf32>
    %363 = arith.mulf %343, %353 : vector<2x256xf32>
    %364 = arith.addf %362, %363 : vector<2x256xf32>
    %365 = math.tanh %364 : vector<2x256xf32>
    %366 = arith.mulf %361, %365 : vector<2x256xf32>
    %367 = arith.mulf %366, %8 : vector<2x256xf32>
    %cst_107 = arith.constant dense<0.000000e+00> : vector<2xf32>
    %368 = vector.multi_reduction <add>, %367, %cst_107 [1] : vector<2x256xf32> to vector<2xf32>
    %369 = vector.shape_cast %368 : vector<2xf32> to vector<2x1xf32>
    %370 = arith.addf %369, %11 : vector<2x1xf32>
    %371 = vector.shape_cast %370 : vector<2x1xf32> to vector<2x1xf32>
    %372 = vector.broadcast %371 : vector<2x1xf32> to vector<2x8xf32>
    %373 = arith.select %324, %372, %322 : vector<2x8xi1>, vector<2x8xf32>
    %c7_i32 = arith.constant 7 : i32
    %374 = vector.broadcast %c7_i32 : i32 to vector<2x8xi32>
    %375 = arith.cmpi eq, %13, %374 : vector<2x8xi32>
    %cst_108 = arith.constant 0.000000e+00 : f32
    %376 = vector.broadcast %cst_108 : f32 to vector<2x8xf32>
    %377 = arith.select %375, %12, %376 : vector<2x8xi1>, vector<2x8xf32>
    %cst_109 = arith.constant dense<0.000000e+00> : vector<2xf32>
    %378 = vector.multi_reduction <add>, %377, %cst_109 [1] : vector<2x8xf32> to vector<2xf32>
    %379 = vector.shape_cast %378 : vector<2xf32> to vector<2x1xf32>
    %cst_110 = arith.constant dense<0.000000e+00> : vector<2x1024xf32>
    %380 = tpu.matmul %366, %3, %cst_110 {dimension_numbers = #tpu.dot_dimension_numbers<[1], [0], [0], [1], [0, 0, 1, 1], [], []>} : vector<2x256xf32>, vector<256x1024xf32>, vector<2x1024xf32> -> vector<2x1024xf32>
    %381 = vector.broadcast %379 : vector<2x1xf32> to vector<2x1024xf32>
    %382 = vector.broadcast %4 : vector<1x1024xf32> to vector<2x1024xf32>
    %383 = arith.mulf %381, %382 : vector<2x1024xf32>
    %384 = arith.addf %380, %383 : vector<2x1024xf32>
    %385 = vector.broadcast %5 : vector<1x1024xf32> to vector<2x1024xf32>
    %386 = arith.addf %384, %385 : vector<2x1024xf32>
    %387 = vector.extract_strided_slice %386 {offsets = [0, 0], sizes = [2, 256], strides = [1, 1]} : vector<2x1024xf32> to vector<2x256xf32>
    %cst_111 = arith.constant 5.000000e-01 : f32
    %388 = vector.broadcast %cst_111 : f32 to vector<2x256xf32>
    %389 = arith.mulf %388, %387 : vector<2x256xf32>
    %390 = math.tanh %389 : vector<2x256xf32>
    %cst_112 = arith.constant 5.000000e-01 : f32
    %391 = vector.broadcast %cst_112 : f32 to vector<2x256xf32>
    %392 = arith.mulf %391, %390 : vector<2x256xf32>
    %cst_113 = arith.constant 5.000000e-01 : f32
    %393 = vector.broadcast %cst_113 : f32 to vector<2x256xf32>
    %394 = arith.addf %392, %393 : vector<2x256xf32>
    %395 = vector.extract_strided_slice %386 {offsets = [0, 256], sizes = [2, 256], strides = [1, 1]} : vector<2x1024xf32> to vector<2x256xf32>
    %cst_114 = arith.constant 5.000000e-01 : f32
    %396 = vector.broadcast %cst_114 : f32 to vector<2x256xf32>
    %397 = arith.mulf %396, %395 : vector<2x256xf32>
    %398 = math.tanh %397 : vector<2x256xf32>
    %cst_115 = arith.constant 5.000000e-01 : f32
    %399 = vector.broadcast %cst_115 : f32 to vector<2x256xf32>
    %400 = arith.mulf %399, %398 : vector<2x256xf32>
    %cst_116 = arith.constant 5.000000e-01 : f32
    %401 = vector.broadcast %cst_116 : f32 to vector<2x256xf32>
    %402 = arith.addf %400, %401 : vector<2x256xf32>
    %403 = vector.extract_strided_slice %386 {offsets = [0, 512], sizes = [2, 256], strides = [1, 1]} : vector<2x1024xf32> to vector<2x256xf32>
    %404 = math.tanh %403 : vector<2x256xf32>
    %405 = vector.extract_strided_slice %386 {offsets = [0, 768], sizes = [2, 256], strides = [1, 1]} : vector<2x1024xf32> to vector<2x256xf32>
    %cst_117 = arith.constant 5.000000e-01 : f32
    %406 = vector.broadcast %cst_117 : f32 to vector<2x256xf32>
    %407 = arith.mulf %406, %405 : vector<2x256xf32>
    %408 = math.tanh %407 : vector<2x256xf32>
    %cst_118 = arith.constant 5.000000e-01 : f32
    %409 = vector.broadcast %cst_118 : f32 to vector<2x256xf32>
    %410 = arith.mulf %409, %408 : vector<2x256xf32>
    %cst_119 = arith.constant 5.000000e-01 : f32
    %411 = vector.broadcast %cst_119 : f32 to vector<2x256xf32>
    %412 = arith.addf %410, %411 : vector<2x256xf32>
    %413 = arith.mulf %402, %364 : vector<2x256xf32>
    %414 = arith.mulf %394, %404 : vector<2x256xf32>
    %415 = arith.addf %413, %414 : vector<2x256xf32>
    %416 = math.tanh %415 : vector<2x256xf32>
    %417 = arith.mulf %412, %416 : vector<2x256xf32>
    %418 = arith.mulf %417, %8 : vector<2x256xf32>
    %cst_120 = arith.constant dense<0.000000e+00> : vector<2xf32>
    %419 = vector.multi_reduction <add>, %418, %cst_120 [1] : vector<2x256xf32> to vector<2xf32>
    %420 = vector.shape_cast %419 : vector<2xf32> to vector<2x1xf32>
    %421 = arith.addf %420, %11 : vector<2x1xf32>
    %422 = vector.shape_cast %421 : vector<2x1xf32> to vector<2x1xf32>
    %423 = vector.broadcast %422 : vector<2x1xf32> to vector<2x8xf32>
    %424 = arith.select %375, %423, %373 : vector<2x8xi1>, vector<2x8xf32>
    %c8_i32 = arith.constant 8 : i32
    %c0_121 = arith.constant 0 : index
    %c0_122 = arith.constant 0 : index
    %425 = vector.load %arg9[%c0_121, %c0_122] : memref<2x256xf32, #tpu.memory_space<vmem>>, vector<2x256xf32>
    tpu.vector_store %arg9[%c0_121, %c0_122], %417 {strides = array<i32>} : memref<2x256xf32, #tpu.memory_space<vmem>>, vector<2x256xf32>,
    %c0_123 = arith.constant 0 : index
    %c0_124 = arith.constant 0 : index
    %426 = vector.load %arg10[%c0_123, %c0_124] : memref<2x256xf32, #tpu.memory_space<vmem>>, vector<2x256xf32>
    tpu.vector_store %arg10[%c0_123, %c0_124], %415 {strides = array<i32>} : memref<2x256xf32, #tpu.memory_space<vmem>>, vector<2x256xf32>,
    %c0_125 = arith.constant 0 : index
    %c0_126 = arith.constant 0 : index
    %427 = vector.load %arg8[%c0_125, %c0_126] : memref<2x8xf32, #tpu.memory_space<vmem>>, vector<2x8xf32>
    tpu.vector_store %arg8[%c0_125, %c0_126], %424 {strides = array<i32>} : memref<2x8xf32, #tpu.memory_space<vmem>>, vector<2x8xf32>,
    return
  }
  func.func @transform_0(%arg0: i32, %arg1: i32) -> (i32, i32) {
    %c0_i32 = arith.constant 0 : i32
    return %arg0, %arg1 : i32, i32
  }
  func.func @transform_1(%arg0: i32, %arg1: i32) -> (i32, i32) {
    %c0_i32 = arith.constant 0 : i32
    %c0_i32_0 = arith.constant 0 : i32
    %c0_i32_1 = arith.constant 0 : i32
    return %c0_i32, %c0_i32_0 : i32, i32
  }
  func.func @transform_2(%arg0: i32, %arg1: i32) -> (i32, i32) {
    %c0_i32 = arith.constant 0 : i32
    %c0_i32_0 = arith.constant 0 : i32
    %c0_i32_1 = arith.constant 0 : i32
    return %c0_i32, %c0_i32_0 : i32, i32
  }
  func.func @transform_3(%arg0: i32, %arg1: i32) -> (i32, i32) {
    %c0_i32 = arith.constant 0 : i32
    %c0_i32_0 = arith.constant 0 : i32
    %c0_i32_1 = arith.constant 0 : i32
    return %c0_i32, %c0_i32_0 : i32, i32
  }
  func.func @transform_4(%arg0: i32, %arg1: i32) -> (i32, i32) {
    %c0_i32 = arith.constant 0 : i32
    %c0_i32_0 = arith.constant 0 : i32
    %c0_i32_1 = arith.constant 0 : i32
    return %c0_i32, %c0_i32_0 : i32, i32
  }
  func.func @transform_5(%arg0: i32, %arg1: i32) -> (i32, i32) {
    %c0_i32 = arith.constant 0 : i32
    %c0_i32_0 = arith.constant 0 : i32
    %c0_i32_1 = arith.constant 0 : i32
    return %c0_i32, %c0_i32_0 : i32, i32
  }
  func.func @transform_6(%arg0: i32, %arg1: i32) -> (i32, i32) {
    %c0_i32 = arith.constant 0 : i32
    return %arg0, %arg1 : i32, i32
  }
}

</mosaic_0001>

<llo_original>
// kernel: tpu_custom_call.1
$region0: #{tpu_custom_call.1}
  #allocation0 [shape = 'u32[]', space=smem, size = 0x4, offset = 0x4, fixed_abs, tag = 'smem constant byte address 0x4 - core index']
  #allocation1 [shape = 'u32[144,128]{1,0:T(1,128)}', space=vmem, size = 0x12000, scoped, tag = 'internal scratch']
  #allocation2 [shape = 'f32[2,256]{1,0:T(2,128)}', space=vmem, size = 0x800, scoped, tag = 'scratch operand']
  #allocation3 [shape = 'f32[2,256]{1,0:T(2,128)}', space=vmem, size = 0x800, scoped, tag = 'scratch operand']
  #allocation4 [shape = 'f32[1,1]{1,0:T(1,128)S(1)}', space=vmem, size = 0x200, scoped, tag = 'scoped memory for tpu_custom_call.1']
  %s0 = inlined_call_operand.vmem [shape: f32[2,8], index: 0, kind: input, shape index: {}]
  %s1 = inlined_call_operand.hbm [shape: f32[256,1024], index: 1, kind: input, shape index: {}]
  %s2 = inlined_call_operand.hbm [shape: f32[1,1024], index: 2, kind: input, shape index: {}]
  %s3 = inlined_call_operand.hbm [shape: f32[1,1024], index: 3, kind: input, shape index: {}]
  %s4 = inlined_call_operand.vmem [shape: f32[1,256], index: 4, kind: input, shape index: {}]
  %s5 = inlined_call_operand.<no memory space> [shape: f32[1,1], index: 5, kind: input, shape index: {}]
  %s6 = inlined_call_operand.hbm [shape: f32[2,8], index: 6, kind: output, shape index: {}]
  %s7 = sld [smem:[#allocation0]]
  $region50: #{tpu_custom_call.1} parent=0
    _
  %s9 = ssub.s32 1, %s7
  %s10 = scalar_select 0, %s9, %s7
  %v11 = vstv %s5
  %12 = vst [vmem:[#allocation4] sm:$0x1] %v11
  $region1: #{tpu_custom_call.1} parent=0
    #allocation5 [shape = 'u8[1048576]{0}', space=vmem, size = 0x100000, scoped, tag = 'input window, operand 1, single buffered']
    #allocation6 [shape = 's32[1]{0}', space=sflag, size = 0x4, scoped, tag = 'scoped memory for tpu_custom_call.1']
    #allocation7 [shape = 's32[1]{0}', space=sflag, size = 0x4, scoped, tag = 'scoped memory for tpu_custom_call.1']
    #allocation8 [shape = 'u8[4096]{0}', space=vmem, size = 0x1000, scoped, tag = 'input window, operand 2, single buffered']
    #allocation9 [shape = 's32[1]{0}', space=sflag, size = 0x4, scoped, tag = 'scoped memory for tpu_custom_call.1']
    #allocation10 [shape = 'u8[4096]{0}', space=vmem, size = 0x1000, scoped, tag = 'input window, operand 3, single buffered']
    #allocation11 [shape = 'u8[1024]{0}', space=vmem, size = 0x400, scoped, tag = 'output window, operand 0, single buffered']
    %13 = vsyncpa [#allocation6], 0
    %14 = vsyncpa [#allocation9], 0
    %15 = vsyncpa [#allocation7], 0
    // Predicated region
    $region2: #{tpu_custom_call.1} parent=1 // pred_check
      _
    $region3: #{tpu_custom_call.1} parent=1 // pred_check_branch
      %17 = sbr.rel (0) target = $region5
    $region4: #{tpu_custom_call.1} parent=1 // pred_region
      _
    $region5: #{tpu_custom_call.1} parent=1 // pred_fallthru
      _
    // Predicated region
    $region6: #{tpu_custom_call.1} parent=1 // pred_check
      _
    $region7: #{tpu_custom_call.1} parent=1 // pred_check_branch
      %19 = sbr.rel (0) target = $region9
    $region8: #{tpu_custom_call.1} parent=1 // pred_region
      %s21 = ssub.s32 32768, 32768
      %22 = vsyncadd [#allocation6], %s21
      %s23 = sshll.u32 [#allocation5], 4
      %s24 = int_to_ptr.vmem [resolvable:$true] %s23
      %29 = dma.hbm_to_vmem [thread:$0]  %s1, 32768, %s24, [#allocation6], 1024, 1024, 64
    $region9: #{tpu_custom_call.1} parent=1 // pred_fallthru
      _
    // Predicated region
    $region10: #{tpu_custom_call.1} parent=1 // pred_check
      _
    $region11: #{tpu_custom_call.1} parent=1 // pred_check_branch
      %31 = sbr.rel (0) target = $region13
    $region12: #{tpu_custom_call.1} parent=1 // pred_region
      %s33 = ssub.s32 128, 128
      %34 = vsyncadd [#allocation9], %s33
      %s36 = sshll.u32 [#allocation8], 4
      %s37 = int_to_ptr.vmem [resolvable:$true] %s36
      %39 = dma.hbm_to_vmem [thread:$0]  %s2, 128, %s37, [#allocation9]
    $region13: #{tpu_custom_call.1} parent=1 // pred_fallthru
      _
    // Predicated region
    $region14: #{tpu_custom_call.1} parent=1 // pred_check
      _
    $region15: #{tpu_custom_call.1} parent=1 // pred_check_branch
      %41 = sbr.rel (0) target = $region17
    $region16: #{tpu_custom_call.1} parent=1 // pred_region
      %s43 = ssub.s32 128, 128
      %44 = vsyncadd [#allocation9], %s43
      %s46 = sshll.u32 [#allocation10], 4
      %s47 = int_to_ptr.vmem [resolvable:$true] %s46
      %49 = dma.hbm_to_vmem [thread:$0]  %s3, 128, %s47, [#allocation9]
    $region17: #{tpu_custom_call.1} parent=1 // pred_fallthru
      _
    // Predicated region
    $region18: #{tpu_custom_call.1} parent=1 // pred_check
      _
    $region19: #{tpu_custom_call.1} parent=1 // pred_check_branch
      %51 = sbr.rel (0) target = $region21
    $region20: #{tpu_custom_call.1} parent=1 // pred_region
      _
    $region21: #{tpu_custom_call.1} parent=1 // pred_fallthru
      _
    // Predicated region
    $region22: #{tpu_custom_call.1} parent=1 // pred_check
      _
    $region23: #{tpu_custom_call.1} parent=1 // pred_check_branch
      %53 = sbr.rel (0) target = $region25
    $region24: #{tpu_custom_call.1} parent=1 // pred_region
      _
    $region25: #{tpu_custom_call.1} parent=1 // pred_fallthru
      _
    // Predicated region
    $region26: #{tpu_custom_call.1} parent=1 // pred_check
      _
    $region27: #{tpu_custom_call.1} parent=1 // pred_check_branch
      %55 = sbr.rel (0) target = $region29
    $region28: #{tpu_custom_call.1} parent=1 // pred_region
      %56 = dma.done [#allocation6], 32768
    $region29: #{tpu_custom_call.1} parent=1 // pred_fallthru
      _
    // Predicated region
    $region30: #{tpu_custom_call.1} parent=1 // pred_check
      _
    $region31: #{tpu_custom_call.1} parent=1 // pred_check_branch
      %58 = sbr.rel (0) target = $region33
    $region32: #{tpu_custom_call.1} parent=1 // pred_region
      %59 = dma.done [#allocation9], 128
    $region33: #{tpu_custom_call.1} parent=1 // pred_fallthru
      _
    // Predicated region
    $region34: #{tpu_custom_call.1} parent=1 // pred_check
      _
    $region35: #{tpu_custom_call.1} parent=1 // pred_check_branch
      %61 = sbr.rel (0) target = $region37
    $region36: #{tpu_custom_call.1} parent=1 // pred_region
      %62 = dma.done [#allocation9], 128
    $region37: #{tpu_custom_call.1} parent=1 // pred_fallthru
      _
    %p63 = scmp.eq.s32.totalorder 0, 0
    // Predicated region
    $region38: #{tpu_custom_call.1} parent=1 // pred_check
      %p64 = pneg %p63
    $region39: #{tpu_custom_call.1} parent=1 // pred_check_branch
      %66 = sbr.rel (%p64) target = $region41
    $region40: #{tpu_custom_call.1} parent=1 // pred_region
      %67 = vst [vmem:[#allocation2] sm:$0xf] 0.0
      %68 = vst [vmem:[#allocation3] sm:$0xf] 0.0
    $region41: #{tpu_custom_call.1} parent=1 // pred_fallthru
      _
    %v69 = vld [vmem:[#allocation5] sm:$0xff]
    %v70 = vld [vmem:[#allocation5 + $0x8] sm:$0xff]
    %v71 = vld [vmem:[#allocation5 + $0x10] sm:$0xff]
    %v72 = vld [vmem:[#allocation5 + $0x18] sm:$0xff]
    %v73 = vld [vmem:[#allocation5 + $0x20] sm:$0xff]
    %v74 = vld [vmem:[#allocation5 + $0x28] sm:$0xff]
    %v75 = vld [vmem:[#allocation5 + $0x30] sm:$0xff]
    %v76 = vld [vmem:[#allocation5 + $0x38] sm:$0xff]
    %v77 = vld [vmem:[#allocation5 + $0x40] sm:$0xff]
    %v78 = vld [vmem:[#allocation5 + $0x48] sm:$0xff]
    %v79 = vld [vmem:[#allocation5 + $0x50] sm:$0xff]
    %v80 = vld [vmem:[#allocation5 + $0x58] sm:$0xff]
    %v81 = vld [vmem:[#allocation5 + $0x60] sm:$0xff]
    %v82 = vld [vmem:[#allocation5 + $0x68] sm:$0xff]
    %v83 = vld [vmem:[#allocation5 + $0x70] sm:$0xff]
    %v84 = vld [vmem:[#allocation5 + $0x78] sm:$0xff]
    %v85 = vld [vmem:[#allocation5 + $0x80] sm:$0xff]
    %v86 = vld [vmem:[#allocation5 + $0x88] sm:$0xff]
    %v87 = vld [vmem:[#allocation5 + $0x90] sm:$0xff]
    %v88 = vld [vmem:[#allocation5 + $0x98] sm:$0xff]
    %v89 = vld [vmem:[#allocation5 + $0xa0] sm:$0xff]
    %v90 = vld [vmem:[#allocation5 + $0xa8] sm:$0xff]
    %v91 = vld [vmem:[#allocation5 + $0xb0] sm:$0xff]
    %v92 = vld [vmem:[#allocation5 + $0xb8] sm:$0xff]
    %v93 = vld [vmem:[#allocation5 + $0xc0] sm:$0xff]
    %v94 = vld [vmem:[#allocation5 + $0xc8] sm:$0xff]
    %v95 = vld [vmem:[#allocation5 + $0xd0] sm:$0xff]
    %v96 = vld [vmem:[#allocation5 + $0xd8] sm:$0xff]
    %v97 = vld [vmem:[#allocation5 + $0xe0] sm:$0xff]
    %v98 = vld [vmem:[#allocation5 + $0xe8] sm:$0xff]
    %v99 = vld [vmem:[#allocation5 + $0xf0] sm:$0xff]
    %v100 = vld [vmem:[#allocation5 + $0xf8] sm:$0xff]
    %v101 = vld [vmem:[#allocation5 + $0x100] sm:$0xff]
    %v102 = vld [vmem:[#allocation5 + $0x108] sm:$0xff]
    %v103 = vld [vmem:[#allocation5 + $0x110] sm:$0xff]
    %v104 = vld [vmem:[#allocation5 + $0x118] sm:$0xff]
    %v105 = vld [vmem:[#allocation5 + $0x120] sm:$0xff]
    %v106 = vld [vmem:[#allocation5 + $0x128] sm:$0xff]
    %v107 = vld [vmem:[#allocation5 + $0x130] sm:$0xff]
    %v108 = vld [vmem:[#allocation5 + $0x138] sm:$0xff]
    %v109 = vld [vmem:[#allocation5 + $0x140] sm:$0xff]
    %v110 = vld [vmem:[#allocation5 + $0x148] sm:$0xff]
    %v111 = vld [vmem:[#allocation5 + $0x150] sm:$0xff]
    %v112 = vld [vmem:[#allocation5 + $0x158] sm:$0xff]
    %v113 = vld [vmem:[#allocation5 + $0x160] sm:$0xff]
    %v114 = vld [vmem:[#allocation5 + $0x168] sm:$0xff]
    %v115 = vld [vmem:[#allocation5 + $0x170] sm:$0xff]
    %v116 = vld [vmem:[#allocation5 + $0x178] sm:$0xff]
    %v117 = vld [vmem:[#allocation5 + $0x180] sm:$0xff]
    %v118 = vld [vmem:[#allocation5 + $0x188] sm:$0xff]
    %v119 = vld [vmem:[#allocation5 + $0x190] sm:$0xff]
    %v120 = vld [vmem:[#allocation5 + $0x198] sm:$0xff]
    %v121 = vld [vmem:[#allocation5 + $0x1a0] sm:$0xff]
    %v122 = vld [vmem:[#allocation5 + $0x1a8] sm:$0xff]
    %v123 = vld [vmem:[#allocation5 + $0x1b0] sm:$0xff]
    %v124 = vld [vmem:[#allocation5 + $0x1b8] sm:$0xff]
    %v125 = vld [vmem:[#allocation5 + $0x1c0] sm:$0xff]
    %v126 = vld [vmem:[#allocation5 + $0x1c8] sm:$0xff]
    %v127 = vld [vmem:[#allocation5 + $0x1d0] sm:$0xff]
    %v128 = vld [vmem:[#allocation5 + $0x1d8] sm:$0xff]
    %v129 = vld [vmem:[#allocation5 + $0x1e0] sm:$0xff]
    %v130 = vld [vmem:[#allocation5 + $0x1e8] sm:$0xff]
    %v131 = vld [vmem:[#allocation5 + $0x1f0] sm:$0xff]
    %v132 = vld [vmem:[#allocation5 + $0x1f8] sm:$0xff]
    %v133 = vld [vmem:[#allocation5 + $0x200] sm:$0xff]
    %v134 = vld [vmem:[#allocation5 + $0x208] sm:$0xff]
    %v135 = vld [vmem:[#allocation5 + $0x210] sm:$0xff]
    %v136 = vld [vmem:[#allocation5 + $0x218] sm:$0xff]
    %v137 = vld [vmem:[#allocation5 + $0x220] sm:$0xff]
    %v138 = vld [vmem:[#allocation5 + $0x228] sm:$0xff]
    %v139 = vld [vmem:[#allocation5 + $0x230] sm:$0xff]
    %v140 = vld [vmem:[#allocation5 + $0x238] sm:$0xff]
    %v141 = vld [vmem:[#allocation5 + $0x240] sm:$0xff]
    %v142 = vld [vmem:[#allocation5 + $0x248] sm:$0xff]
    %v143 = vld [vmem:[#allocation5 + $0x250] sm:$0xff]
    %v144 = vld [vmem:[#allocation5 + $0x258] sm:$0xff]
    %v145 = vld [vmem:[#allocation5 + $0x260] sm:$0xff]
    %v146 = vld [vmem:[#allocation5 + $0x268] sm:$0xff]
    %v147 = vld [vmem:[#allocation5 + $0x270] sm:$0xff]
    %v148 = vld [vmem:[#allocation5 + $0x278] sm:$0xff]
    %v149 = vld [vmem:[#allocation5 + $0x280] sm:$0xff]
    %v150 = vld [vmem:[#allocation5 + $0x288] sm:$0xff]
    %v151 = vld [vmem:[#allocation5 + $0x290] sm:$0xff]
    %v152 = vld [vmem:[#allocation5 + $0x298] sm:$0xff]
    %v153 = vld [vmem:[#allocation5 + $0x2a0] sm:$0xff]
    %v154 = vld [vmem:[#allocation5 + $0x2a8] sm:$0xff]
    %v155 = vld [vmem:[#allocation5 + $0x2b0] sm:$0xff]
    %v156 = vld [vmem:[#allocation5 + $0x2b8] sm:$0xff]
    %v157 = vld [vmem:[#allocation5 + $0x2c0] sm:$0xff]
    %v158 = vld [vmem:[#allocation5 + $0x2c8] sm:$0xff]
    %v159 = vld [vmem:[#allocation5 + $0x2d0] sm:$0xff]
    %v160 = vld [vmem:[#allocation5 + $0x2d8] sm:$0xff]
    %v161 = vld [vmem:[#allocation5 + $0x2e0] sm:$0xff]
    %v162 = vld [vmem:[#allocation5 + $0x2e8] sm:$0xff]
    %v163 = vld [vmem:[#allocation5 + $0x2f0] sm:$0xff]
    %v164 = vld [vmem:[#allocation5 + $0x2f8] sm:$0xff]
    %v165 = vld [vmem:[#allocation5 + $0x300] sm:$0xff]
    %v166 = vld [vmem:[#allocation5 + $0x308] sm:$0xff]
    %v167 = vld [vmem:[#allocation5 + $0x310] sm:$0xff]
    %v168 = vld [vmem:[#allocation5 + $0x318] sm:$0xff]
    %v169 = vld [vmem:[#allocation5 + $0x320] sm:$0xff]
    %v170 = vld [vmem:[#allocation5 + $0x328] sm:$0xff]
    %v171 = vld [vmem:[#allocation5 + $0x330] sm:$0xff]
    %v172 = vld [vmem:[#allocation5 + $0x338] sm:$0xff]
    %v173 = vld [vmem:[#allocation5 + $0x340] sm:$0xff]
    %v174 = vld [vmem:[#allocation5 + $0x348] sm:$0xff]
    %v175 = vld [vmem:[#allocation5 + $0x350] sm:$0xff]
    %v176 = vld [vmem:[#allocation5 + $0x358] sm:$0xff]
    %v177 = vld [vmem:[#allocation5 + $0x360] sm:$0xff]
    %v178 = vld [vmem:[#allocation5 + $0x368] sm:$0xff]
    %v179 = vld [vmem:[#allocation5 + $0x370] sm:$0xff]
    %v180 = vld [vmem:[#allocation5 + $0x378] sm:$0xff]
    %v181 = vld [vmem:[#allocation5 + $0x380] sm:$0xff]
    %v182 = vld [vmem:[#allocation5 + $0x388] sm:$0xff]
    %v183 = vld [vmem:[#allocation5 + $0x390] sm:$0xff]
    %v184 = vld [vmem:[#allocation5 + $0x398] sm:$0xff]
    %v185 = vld [vmem:[#allocation5 + $0x3a0] sm:$0xff]
    %v186 = vld [vmem:[#allocation5 + $0x3a8] sm:$0xff]
    %v187 = vld [vmem:[#allocation5 + $0x3b0] sm:$0xff]
    %v188 = vld [vmem:[#allocation5 + $0x3b8] sm:$0xff]
    %v189 = vld [vmem:[#allocation5 + $0x3c0] sm:$0xff]
    %v190 = vld [vmem:[#allocation5 + $0x3c8] sm:$0xff]
    %v191 = vld [vmem:[#allocation5 + $0x3d0] sm:$0xff]
    %v192 = vld [vmem:[#allocation5 + $0x3d8] sm:$0xff]
    %v193 = vld [vmem:[#allocation5 + $0x3e0] sm:$0xff]
    %v194 = vld [vmem:[#allocation5 + $0x3e8] sm:$0xff]
    %v195 = vld [vmem:[#allocation5 + $0x3f0] sm:$0xff]
    %v196 = vld [vmem:[#allocation5 + $0x3f8] sm:$0xff]
    %v197 = vld [vmem:[#allocation5 + $0x400] sm:$0xff]
    %v198 = vld [vmem:[#allocation5 + $0x408] sm:$0xff]
    %v199 = vld [vmem:[#allocation5 + $0x410] sm:$0xff]
    %v200 = vld [vmem:[#allocation5 + $0x418] sm:$0xff]
    %v201 = vld [vmem:[#allocation5 + $0x420] sm:$0xff]
    %v202 = vld [vmem:[#allocation5 + $0x428] sm:$0xff]
    %v203 = vld [vmem:[#allocation5 + $0x430] sm:$0xff]
    %v204 = vld [vmem:[#allocation5 + $0x438] sm:$0xff]
    %v205 = vld [vmem:[#allocation5 + $0x440] sm:$0xff]
    %v206 = vld [vmem:[#allocation5 + $0x448] sm:$0xff]
    %v207 = vld [vmem:[#allocation5 + $0x450] sm:$0xff]
    %v208 = vld [vmem:[#allocation5 + $0x458] sm:$0xff]
    %v209 = vld [vmem:[#allocation5 + $0x460] sm:$0xff]
    %v210 = vld [vmem:[#allocation5 + $0x468] sm:$0xff]
    %v211 = vld [vmem:[#allocation5 + $0x470] sm:$0xff]
    %v212 = vld [vmem:[#allocation5 + $0x478] sm:$0xff]
    %v213 = vld [vmem:[#allocation5 + $0x480] sm:$0xff]
    %v214 = vld [vmem:[#allocation5 + $0x488] sm:$0xff]
    %v215 = vld [vmem:[#allocation5 + $0x490] sm:$0xff]
    %v216 = vld [vmem:[#allocation5 + $0x498] sm:$0xff]
    %v217 = vld [vmem:[#allocation5 + $0x4a0] sm:$0xff]
    %v218 = vld [vmem:[#allocation5 + $0x4a8] sm:$0xff]
    %v219 = vld [vmem:[#allocation5 + $0x4b0] sm:$0xff]
    %v220 = vld [vmem:[#allocation5 + $0x4b8] sm:$0xff]
    %v221 = vld [vmem:[#allocation5 + $0x4c0] sm:$0xff]
    %v222 = vld [vmem:[#allocation5 + $0x4c8] sm:$0xff]
    %v223 = vld [vmem:[#allocation5 + $0x4d0] sm:$0xff]
    %v224 = vld [vmem:[#allocation5 + $0x4d8] sm:$0xff]
    %v225 = vld [vmem:[#allocation5 + $0x4e0] sm:$0xff]
    %v226 = vld [vmem:[#allocation5 + $0x4e8] sm:$0xff]
    %v227 = vld [vmem:[#allocation5 + $0x4f0] sm:$0xff]
    %v228 = vld [vmem:[#allocation5 + $0x4f8] sm:$0xff]
    %v229 = vld [vmem:[#allocation5 + $0x500] sm:$0xff]
    %v230 = vld [vmem:[#allocation5 + $0x508] sm:$0xff]
    %v231 = vld [vmem:[#allocation5 + $0x510] sm:$0xff]
    %v232 = vld [vmem:[#allocation5 + $0x518] sm:$0xff]
    %v233 = vld [vmem:[#allocation5 + $0x520] sm:$0xff]
    %v234 = vld [vmem:[#allocation5 + $0x528] sm:$0xff]
    %v235 = vld [vmem:[#allocation5 + $0x530] sm:$0xff]
    %v236 = vld [vmem:[#allocation5 + $0x538] sm:$0xff]
    %v237 = vld [vmem:[#allocation5 + $0x540] sm:$0xff]
    %v238 = vld [vmem:[#allocation5 + $0x548] sm:$0xff]
    %v239 = vld [vmem:[#allocation5 + $0x550] sm:$0xff]
    %v240 = vld [vmem:[#allocation5 + $0x558] sm:$0xff]
    %v241 = vld [vmem:[#allocation5 + $0x560] sm:$0xff]
    %v242 = vld [vmem:[#allocation5 + $0x568] sm:$0xff]
    %v243 = vld [vmem:[#allocation5 + $0x570] sm:$0xff]
    %v244 = vld [vmem:[#allocation5 + $0x578] sm:$0xff]
    %v245 = vld [vmem:[#allocation5 + $0x580] sm:$0xff]
    %v246 = vld [vmem:[#allocation5 + $0x588] sm:$0xff]
    %v247 = vld [vmem:[#allocation5 + $0x590] sm:$0xff]
    %v248 = vld [vmem:[#allocation5 + $0x598] sm:$0xff]
    %v249 = vld [vmem:[#allocation5 + $0x5a0] sm:$0xff]
    %v250 = vld [vmem:[#allocation5 + $0x5a8] sm:$0xff]
    %v251 = vld [vmem:[#allocation5 + $0x5b0] sm:$0xff]
    %v252 = vld [vmem:[#allocation5 + $0x5b8] sm:$0xff]
    %v253 = vld [vmem:[#allocation5 + $0x5c0] sm:$0xff]
    %v254 = vld [vmem:[#allocation5 + $0x5c8] sm:$0xff]
    %v255 = vld [vmem:[#allocation5 + $0x5d0] sm:$0xff]
    %v256 = vld [vmem:[#allocation5 + $0x5d8] sm:$0xff]
    %v257 = vld [vmem:[#allocation5 + $0x5e0] sm:$0xff]
    %v258 = vld [vmem:[#allocation5 + $0x5e8] sm:$0xff]
    %v259 = vld [vmem:[#allocation5 + $0x5f0] sm:$0xff]
    %v260 = vld [vmem:[#allocation5 + $0x5f8] sm:$0xff]
    %v261 = vld [vmem:[#allocation5 + $0x600] sm:$0xff]
    %v262 = vld [vmem:[#allocation5 + $0x608] sm:$0xff]
    %v263 = vld [vmem:[#allocation5 + $0x610] sm:$0xff]
    %v264 = vld [vmem:[#allocation5 + $0x618] sm:$0xff]
    %v265 = vld [vmem:[#allocation5 + $0x620] sm:$0xff]
    %v266 = vld [vmem:[#allocation5 + $0x628] sm:$0xff]
    %v267 = vld [vmem:[#allocation5 + $0x630] sm:$0xff]
    %v268 = vld [vmem:[#allocation5 + $0x638] sm:$0xff]
    %v269 = vld [vmem:[#allocation5 + $0x640] sm:$0xff]
    %v270 = vld [vmem:[#allocation5 + $0x648] sm:$0xff]
    %v271 = vld [vmem:[#allocation5 + $0x650] sm:$0xff]
    %v272 = vld [vmem:[#allocation5 + $0x658] sm:$0xff]
    %v273 = vld [vmem:[#allocation5 + $0x660] sm:$0xff]
    %v274 = vld [vmem:[#allocation5 + $0x668] sm:$0xff]
    %v275 = vld [vmem:[#allocation5 + $0x670] sm:$0xff]
    %v276 = vld [vmem:[#allocation5 + $0x678] sm:$0xff]
    %v277 = vld [vmem:[#allocation5 + $0x680] sm:$0xff]
    %v278 = vld [vmem:[#allocation5 + $0x688] sm:$0xff]
    %v279 = vld [vmem:[#allocation5 + $0x690] sm:$0xff]
    %v280 = vld [vmem:[#allocation5 + $0x698] sm:$0xff]
    %v281 = vld [vmem:[#allocation5 + $0x6a0] sm:$0xff]
    %v282 = vld [vmem:[#allocation5 + $0x6a8] sm:$0xff]
    %v283 = vld [vmem:[#allocation5 + $0x6b0] sm:$0xff]
    %v284 = vld [vmem:[#allocation5 + $0x6b8] sm:$0xff]
    %v285 = vld [vmem:[#allocation5 + $0x6c0] sm:$0xff]
    %v286 = vld [vmem:[#allocation5 + $0x6c8] sm:$0xff]
    %v287 = vld [vmem:[#allocation5 + $0x6d0] sm:$0xff]
    %v288 = vld [vmem:[#allocation5 + $0x6d8] sm:$0xff]
    %v289 = vld [vmem:[#allocation5 + $0x6e0] sm:$0xff]
    %v290 = vld [vmem:[#allocation5 + $0x6e8] sm:$0xff]
    %v291 = vld [vmem:[#allocation5 + $0x6f0] sm:$0xff]
    %v292 = vld [vmem:[#allocation5 + $0x6f8] sm:$0xff]
    %v293 = vld [vmem:[#allocation5 + $0x700] sm:$0xff]
    %v294 = vld [vmem:[#allocation5 + $0x708] sm:$0xff]
    %v295 = vld [vmem:[#allocation5 + $0x710] sm:$0xff]
    %v296 = vld [vmem:[#allocation5 + $0x718] sm:$0xff]
    %v297 = vld [vmem:[#allocation5 + $0x720] sm:$0xff]
    %v298 = vld [vmem:[#allocation5 + $0x728] sm:$0xff]
    %v299 = vld [vmem:[#allocation5 + $0x730] sm:$0xff]
    %v300 = vld [vmem:[#allocation5 + $0x738] sm:$0xff]
    %v301 = vld [vmem:[#allocation5 + $0x740] sm:$0xff]
    %v302 = vld [vmem:[#allocation5 + $0x748] sm:$0xff]
    %v303 = vld [vmem:[#allocation5 + $0x750] sm:$0xff]
    %v304 = vld [vmem:[#allocation5 + $0x758] sm:$0xff]
    %v305 = vld [vmem:[#allocation5 + $0x760] sm:$0xff]
    %v306 = vld [vmem:[#allocation5 + $0x768] sm:$0xff]
    %v307 = vld [vmem:[#allocation5 + $0x770] sm:$0xff]
    %v308 = vld [vmem:[#allocation5 + $0x778] sm:$0xff]
    %v309 = vld [vmem:[#allocation5 + $0x780] sm:$0xff]
    %v310 = vld [vmem:[#allocation5 + $0x788] sm:$0xff]
    %v311 = vld [vmem:[#allocation5 + $0x790] sm:$0xff]
    %v312 = vld [vmem:[#allocation5 + $0x798] sm:$0xff]
    %v313 = vld [vmem:[#allocation5 + $0x7a0] sm:$0xff]
    %v314 = vld [vmem:[#allocation5 + $0x7a8] sm:$0xff]
    %v315 = vld [vmem:[#allocation5 + $0x7b0] sm:$0xff]
    %v316 = vld [vmem:[#allocation5 + $0x7b8] sm:$0xff]
    %v317 = vld [vmem:[#allocation5 + $0x7c0] sm:$0xff]
    %v318 = vld [vmem:[#allocation5 + $0x7c8] sm:$0xff]
    %v319 = vld [vmem:[#allocation5 + $0x7d0] sm:$0xff]
    %v320 = vld [vmem:[#allocation5 + $0x7d8] sm:$0xff]
    %v321 = vld [vmem:[#allocation5 + $0x7e0] sm:$0xff]
    %v322 = vld [vmem:[#allocation5 + $0x7e8] sm:$0xff]
    %v323 = vld [vmem:[#allocation5 + $0x7f0] sm:$0xff]
    %v324 = vld [vmem:[#allocation5 + $0x7f8] sm:$0xff]
    %v325 = vld [vmem:[#allocation8] sm:$0xff]
    %v326 = vld [vmem:[#allocation10] sm:$0xff]
    %v327 = vld [vmem:[%s4] sm:$0x3]
    %v329 = vlaneseq
    %v330 = vshrl.u32 %v329, 7
    %v331 = vsub.s32 0, %v330
    %v332 = vrot.slane %v327, %v331
    %v333 = vlaneseq
    %v334 = vshrl.u32 %v333, 7
    %v335 = vsub.s32 1, %v334
    %v336 = vrot.slane %v327, %v335
    %v339 = vld [vmem:[#allocation4] sm:$0x1]
    %v341 = vlaneseq
    %v342 = vshrl.u32 %v341, 7
    %v343 = vsub.s32 0, %v342
    %v344 = vrot.slane %v339, %v343
    %v346 = vld [vmem:[%s0] sm:$0x3]
    %v347 = vlaneseq
    %v348 = vand.u32 %v347, 127
    %v349 = vld [vmem:[#allocation2] sm:$0xf]
    %v350 = vld [vmem:[#allocation3] sm:$0xf]
    %vm351 = vcmp.eq.s32.totalorder %v348, 0
    %v352 = vsel %vm351, %v346, 0.0
    %vm353 = vcmask 58368
    %v354 = vsel %vm353, %v352, 0.0
    %355 = vadd.xlane.f32.xlu0 %v354
    %v356 = vpop.xlane.xlu0 %355
    %v358 = vlaneseq
    %v359 = vshrl.u32 %v358, 7
    %v360 = vsub.s32 0, %v359
    %v361 = vrot.slane %v325, %v360
    %v362 = vlaneseq
    %v363 = vshrl.u32 %v362, 7
    %v364 = vsub.s32 1, %v363
    %v365 = vrot.slane %v325, %v364
    %v366 = vlaneseq
    %v367 = vshrl.u32 %v366, 7
    %v368 = vsub.s32 2, %v367
    %v369 = vrot.slane %v325, %v368
    %v370 = vlaneseq
    %v371 = vshrl.u32 %v370, 7
    %v372 = vsub.s32 3, %v371
    %v373 = vrot.slane %v325, %v372
    %v374 = vlaneseq
    %v375 = vshrl.u32 %v374, 7
    %v376 = vsub.s32 4, %v375
    %v377 = vrot.slane %v325, %v376
    %v378 = vlaneseq
    %v379 = vshrl.u32 %v378, 7
    %v380 = vsub.s32 5, %v379
    %v381 = vrot.slane %v325, %v380
    %v382 = vlaneseq
    %v383 = vshrl.u32 %v382, 7
    %v384 = vsub.s32 6, %v383
    %v385 = vrot.slane %v325, %v384
    %v386 = vlaneseq
    %v387 = vshrl.u32 %v386, 7
    %v388 = vsub.s32 7, %v387
    %v389 = vrot.slane %v325, %v388
    %v398 = vmul.f32 %v356, %v361
    %v399 = vmul.f32 %v356, %v365
    %v400 = vmul.f32 %v356, %v369
    %v401 = vmul.f32 %v356, %v373
    %v402 = vmul.f32 %v356, %v377
    %v403 = vmul.f32 %v356, %v381
    %v404 = vmul.f32 %v356, %v385
    %v405 = vmul.f32 %v356, %v389
    %v408 = vunpack.c.l.s4 1983009808
    %v409 = vunpack.c.0.s8 %v408
    %v410 = vlaneseq
    %v411 = vshrl.u32 %v410, 7
    %v412 = vsub.s32 %v409, %v411
    %v413 = vrot.slane %v349, %v412
    %v414 = vcombine.high %v413, %v413
    %417 = vmatprep.subr.mxu0 %v190
    %418 = vmatpush1.msra.mxu0 %v189
    %419 = vmatprep.subr.mxu0 %v182
    %420 = vmatpush1.msra.mxu0 %v181
    %421 = vmatprep.subr.mxu0 %v174
    %422 = vmatpush1.msra.mxu0 %v173
    %423 = vmatprep.subr.mxu0 %v166
    %424 = vmatpush1.msra.mxu0 %v165
    %425 = vmatprep.subr.mxu0 %v158
    %426 = vmatpush1.msra.mxu0 %v157
    %427 = vmatprep.subr.mxu0 %v150
    %428 = vmatpush1.msra.mxu0 %v149
    %429 = vmatprep.subr.mxu0 %v142
    %430 = vmatpush1.msra.mxu0 %v141
    %431 = vmatprep.subr.mxu0 %v134
    %432 = vmatpush1.msra.mxu0 %v133
    %433 = vmatprep.subr.mxu0 %v126
    %434 = vmatpush1.msra.mxu0 %v125
    %435 = vmatprep.subr.mxu0 %v118
    %436 = vmatpush1.msra.mxu0 %v117
    %437 = vmatprep.subr.mxu0 %v110
    %438 = vmatpush1.msra.mxu0 %v109
    %439 = vmatprep.subr.mxu0 %v102
    %440 = vmatpush1.msra.mxu0 %v101
    %441 = vmatprep.subr.mxu0 %v94
    %442 = vmatpush1.msra.mxu0 %v93
    %443 = vmatprep.subr.mxu0 %v86
    %444 = vmatpush1.msra.mxu0 %v85
    %445 = vmatprep.subr.mxu0 %v78
    %446 = vmatpush1.msra.mxu0 %v77
    %447 = vmatprep.subr.mxu0 %v70
    %448 = vmatpush1.msra.mxu0 %v69
    %449 = vmatprep.subr.mxu0 %v318
    %450 = vmatpush2.msra.mxu0 %v317
    %451 = vmatprep.subr.mxu0 %v310
    %452 = vmatpush2.msra.mxu0 %v309
    %453 = vmatprep.subr.mxu0 %v302
    %454 = vmatpush2.msra.mxu0 %v301
    %455 = vmatprep.subr.mxu0 %v294
    %456 = vmatpush2.msra.mxu0 %v293
    %457 = vmatprep.subr.mxu0 %v286
    %458 = vmatpush2.msra.mxu0 %v285
    %459 = vmatprep.subr.mxu0 %v278
    %460 = vmatpush2.msra.mxu0 %v277
    %461 = vmatprep.subr.mxu0 %v270
    %462 = vmatpush2.msra.mxu0 %v269
    %463 = vmatprep.subr.mxu0 %v262
    %464 = vmatpush2.msra.mxu0 %v261
    %465 = vmatprep.subr.mxu0 %v254
    %466 = vmatpush2.msra.mxu0 %v253
    %467 = vmatprep.subr.mxu0 %v246
    %468 = vmatpush2.msra.mxu0 %v245
    %469 = vmatprep.subr.mxu0 %v238
    %470 = vmatpush2.msra.mxu0 %v237
    %471 = vmatprep.subr.mxu0 %v230
    %472 = vmatpush2.msra.mxu0 %v229
    %473 = vmatprep.subr.mxu0 %v222
    %474 = vmatpush2.msra.mxu0 %v221
    %475 = vmatprep.subr.mxu0 %v214
    %476 = vmatpush2.msra.mxu0 %v213
    %477 = vmatprep.subr.mxu0 %v206
    %478 = vmatpush2.msra.mxu0 %v205
    %479 = vmatprep.subr.mxu0 %v198
    %480 = vmatpush2.msra.mxu0 %v197
    %481 = vmatprep.mubr.f32.mxu0 %v414
    %482 = vmatmul.mubr.f32.gmra.mxu0 %v413
    %v483 = vpop.f32.mrf.mxu0
    %v484 = vadd.f32 %v398, %v483
    %v485 = vpop.f32.mrf.mxu0
    %v486 = vadd.f32 %v399, %v485
    %487 = vdwg.mxu0
    %488 = vmatprep.subr.mxu0 %v192
    %489 = vmatpush1.msra.mxu0 %v191
    %490 = vmatprep.subr.mxu0 %v184
    %491 = vmatpush1.msra.mxu0 %v183
    %492 = vmatprep.subr.mxu0 %v176
    %493 = vmatpush1.msra.mxu0 %v175
    %494 = vmatprep.subr.mxu0 %v168
    %495 = vmatpush1.msra.mxu0 %v167
    %496 = vmatprep.subr.mxu0 %v160
    %497 = vmatpush1.msra.mxu0 %v159
    %498 = vmatprep.subr.mxu0 %v152
    %499 = vmatpush1.msra.mxu0 %v151
    %500 = vmatprep.subr.mxu0 %v144
    %501 = vmatpush1.msra.mxu0 %v143
    %502 = vmatprep.subr.mxu0 %v136
    %503 = vmatpush1.msra.mxu0 %v135
    %504 = vmatprep.subr.mxu0 %v128
    %505 = vmatpush1.msra.mxu0 %v127
    %506 = vmatprep.subr.mxu0 %v120
    %507 = vmatpush1.msra.mxu0 %v119
    %508 = vmatprep.subr.mxu0 %v112
    %509 = vmatpush1.msra.mxu0 %v111
    %510 = vmatprep.subr.mxu0 %v104
    %511 = vmatpush1.msra.mxu0 %v103
    %512 = vmatprep.subr.mxu0 %v96
    %513 = vmatpush1.msra.mxu0 %v95
    %514 = vmatprep.subr.mxu0 %v88
    %515 = vmatpush1.msra.mxu0 %v87
    %516 = vmatprep.subr.mxu0 %v80
    %517 = vmatpush1.msra.mxu0 %v79
    %518 = vmatprep.subr.mxu0 %v72
    %519 = vmatpush1.msra.mxu0 %v71
    %520 = vmatprep.subr.mxu0 %v320
    %521 = vmatpush2.msra.mxu0 %v319
    %522 = vmatprep.subr.mxu0 %v312
    %523 = vmatpush2.msra.mxu0 %v311
    %524 = vmatprep.subr.mxu0 %v304
    %525 = vmatpush2.msra.mxu0 %v303
    %526 = vmatprep.subr.mxu0 %v296
    %527 = vmatpush2.msra.mxu0 %v295
    %528 = vmatprep.subr.mxu0 %v288
    %529 = vmatpush2.msra.mxu0 %v287
    %530 = vmatprep.subr.mxu0 %v280
    %531 = vmatpush2.msra.mxu0 %v279
    %532 = vmatprep.subr.mxu0 %v272
    %533 = vmatpush2.msra.mxu0 %v271
    %534 = vmatprep.subr.mxu0 %v264
    %535 = vmatpush2.msra.mxu0 %v263
    %536 = vmatprep.subr.mxu0 %v256
    %537 = vmatpush2.msra.mxu0 %v255
    %538 = vmatprep.subr.mxu0 %v248
    %539 = vmatpush2.msra.mxu0 %v247
    %540 = vmatprep.subr.mxu0 %v240
    %541 = vmatpush2.msra.mxu0 %v239
    %542 = vmatprep.subr.mxu0 %v232
    %543 = vmatpush2.msra.mxu0 %v231
    %544 = vmatprep.subr.mxu0 %v224
    %545 = vmatpush2.msra.mxu0 %v223
    %546 = vmatprep.subr.mxu0 %v216
    %547 = vmatpush2.msra.mxu0 %v215
    %548 = vmatprep.subr.mxu0 %v208
    %549 = vmatpush2.msra.mxu0 %v207
    %550 = vmatprep.subr.mxu0 %v200
    %551 = vmatpush2.msra.mxu0 %v199
    %552 = vmatprep.mubr.f32.mxu0 %v414
    %553 = vmatmul.mubr.f32.gmra.mxu0 %v413
    %v554 = vpop.f32.mrf.mxu0
    %v555 = vadd.f32 %v400, %v554
    %v556 = vpop.f32.mrf.mxu0
    %v557 = vadd.f32 %v401, %v556
    %558 = vdwg.mxu0
    %559 = vmatprep.subr.mxu0 %v194
    %560 = vmatpush1.msra.mxu0 %v193
    %561 = vmatprep.subr.mxu0 %v186
    %562 = vmatpush1.msra.mxu0 %v185
    %563 = vmatprep.subr.mxu0 %v178
    %564 = vmatpush1.msra.mxu0 %v177
    %565 = vmatprep.subr.mxu0 %v170
    %566 = vmatpush1.msra.mxu0 %v169
    %567 = vmatprep.subr.mxu0 %v162
    %568 = vmatpush1.msra.mxu0 %v161
    %569 = vmatprep.subr.mxu0 %v154
    %570 = vmatpush1.msra.mxu0 %v153
    %571 = vmatprep.subr.mxu0 %v146
    %572 = vmatpush1.msra.mxu0 %v145
    %573 = vmatprep.subr.mxu0 %v138
    %574 = vmatpush1.msra.mxu0 %v137
    %575 = vmatprep.subr.mxu0 %v130
    %576 = vmatpush1.msra.mxu0 %v129
    %577 = vmatprep.subr.mxu0 %v122
    %578 = vmatpush1.msra.mxu0 %v121
    %579 = vmatprep.subr.mxu0 %v114
    %580 = vmatpush1.msra.mxu0 %v113
    %581 = vmatprep.subr.mxu0 %v106
    %582 = vmatpush1.msra.mxu0 %v105
    %583 = vmatprep.subr.mxu0 %v98
    %584 = vmatpush1.msra.mxu0 %v97
    %585 = vmatprep.subr.mxu0 %v90
    %586 = vmatpush1.msra.mxu0 %v89
    %587 = vmatprep.subr.mxu0 %v82
    %588 = vmatpush1.msra.mxu0 %v81
    %589 = vmatprep.subr.mxu0 %v74
    %590 = vmatpush1.msra.mxu0 %v73
    %591 = vmatprep.subr.mxu0 %v322
    %592 = vmatpush2.msra.mxu0 %v321
    %593 = vmatprep.subr.mxu0 %v314
    %594 = vmatpush2.msra.mxu0 %v313
    %595 = vmatprep.subr.mxu0 %v306
    %596 = vmatpush2.msra.mxu0 %v305
    %597 = vmatprep.subr.mxu0 %v298
    %598 = vmatpush2.msra.mxu0 %v297
    %599 = vmatprep.subr.mxu0 %v290
    %600 = vmatpush2.msra.mxu0 %v289
    %601 = vmatprep.subr.mxu0 %v282
    %602 = vmatpush2.msra.mxu0 %v281
    %603 = vmatprep.subr.mxu0 %v274
    %604 = vmatpush2.msra.mxu0 %v273
    %605 = vmatprep.subr.mxu0 %v266
    %606 = vmatpush2.msra.mxu0 %v265
    %607 = vmatprep.subr.mxu0 %v258
    %608 = vmatpush2.msra.mxu0 %v257
    %609 = vmatprep.subr.mxu0 %v250
    %610 = vmatpush2.msra.mxu0 %v249
    %611 = vmatprep.subr.mxu0 %v242
    %612 = vmatpush2.msra.mxu0 %v241
    %613 = vmatprep.subr.mxu0 %v234
    %614 = vmatpush2.msra.mxu0 %v233
    %615 = vmatprep.subr.mxu0 %v226
    %616 = vmatpush2.msra.mxu0 %v225
    %617 = vmatprep.subr.mxu0 %v218
    %618 = vmatpush2.msra.mxu0 %v217
    %619 = vmatprep.subr.mxu0 %v210
    %620 = vmatpush2.msra.mxu0 %v209
    %621 = vmatprep.subr.mxu0 %v202
    %622 = vmatpush2.msra.mxu0 %v201
    %623 = vmatprep.mubr.f32.mxu0 %v414
    %624 = vmatmul.mubr.f32.gmra.mxu0 %v413
    %v625 = vpop.f32.mrf.mxu0
    %v626 = vadd.f32 %v402, %v625
    %v627 = vpop.f32.mrf.mxu0
    %v628 = vadd.f32 %v403, %v627
    %629 = vdwg.mxu0
    %630 = vmatprep.subr.mxu0 %v196
    %631 = vmatpush1.msra.mxu0 %v195
    %632 = vmatprep.subr.mxu0 %v188
    %633 = vmatpush1.msra.mxu0 %v187
    %634 = vmatprep.subr.mxu0 %v180
    %635 = vmatpush1.msra.mxu0 %v179
    %636 = vmatprep.subr.mxu0 %v172
    %637 = vmatpush1.msra.mxu0 %v171
    %638 = vmatprep.subr.mxu0 %v164
    %639 = vmatpush1.msra.mxu0 %v163
    %640 = vmatprep.subr.mxu0 %v156
    %641 = vmatpush1.msra.mxu0 %v155
    %642 = vmatprep.subr.mxu0 %v148
    %643 = vmatpush1.msra.mxu0 %v147
    %644 = vmatprep.subr.mxu0 %v140
    %645 = vmatpush1.msra.mxu0 %v139
    %646 = vmatprep.subr.mxu0 %v132
    %647 = vmatpush1.msra.mxu0 %v131
    %648 = vmatprep.subr.mxu0 %v124
    %649 = vmatpush1.msra.mxu0 %v123
    %650 = vmatprep.subr.mxu0 %v116
    %651 = vmatpush1.msra.mxu0 %v115
    %652 = vmatprep.subr.mxu0 %v108
    %653 = vmatpush1.msra.mxu0 %v107
    %654 = vmatprep.subr.mxu0 %v100
    %655 = vmatpush1.msra.mxu0 %v99
    %656 = vmatprep.subr.mxu0 %v92
    %657 = vmatpush1.msra.mxu0 %v91
    %658 = vmatprep.subr.mxu0 %v84
    %659 = vmatpush1.msra.mxu0 %v83
    %660 = vmatprep.subr.mxu0 %v76
    %661 = vmatpush1.msra.mxu0 %v75
    %662 = vmatprep.subr.mxu0 %v324
    %663 = vmatpush2.msra.mxu0 %v323
    %664 = vmatprep.subr.mxu0 %v316
    %665 = vmatpush2.msra.mxu0 %v315
    %666 = vmatprep.subr.mxu0 %v308
    %667 = vmatpush2.msra.mxu0 %v307
    %668 = vmatprep.subr.mxu0 %v300
    %669 = vmatpush2.msra.mxu0 %v299
    %670 = vmatprep.subr.mxu0 %v292
    %671 = vmatpush2.msra.mxu0 %v291
    %672 = vmatprep.subr.mxu0 %v284
    %673 = vmatpush2.msra.mxu0 %v283
    %674 = vmatprep.subr.mxu0 %v276
    %675 = vmatpush2.msra.mxu0 %v275
    %676 = vmatprep.subr.mxu0 %v268
    %677 = vmatpush2.msra.mxu0 %v267
    %678 = vmatprep.subr.mxu0 %v260
    %679 = vmatpush2.msra.mxu0 %v259
    %680 = vmatprep.subr.mxu0 %v252
    %681 = vmatpush2.msra.mxu0 %v251
    %682 = vmatprep.subr.mxu0 %v244
    %683 = vmatpush2.msra.mxu0 %v243
    %684 = vmatprep.subr.mxu0 %v236
    %685 = vmatpush2.msra.mxu0 %v235
    %686 = vmatprep.subr.mxu0 %v228
    %687 = vmatpush2.msra.mxu0 %v227
    %688 = vmatprep.subr.mxu0 %v220
    %689 = vmatpush2.msra.mxu0 %v219
    %690 = vmatprep.subr.mxu0 %v212
    %691 = vmatpush2.msra.mxu0 %v211
    %692 = vmatprep.subr.mxu0 %v204
    %693 = vmatpush2.msra.mxu0 %v203
    %694 = vmatprep.mubr.f32.mxu0 %v414
    %695 = vmatmul.mubr.f32.gmra.mxu0 %v413
    %v696 = vpop.f32.mrf.mxu0
    %v697 = vadd.f32 %v404, %v696
    %v698 = vpop.f32.mrf.mxu0
    %v699 = vadd.f32 %v405, %v698
    %700 = vdwg.mxu0
    %v702 = vlaneseq
    %v703 = vshrl.u32 %v702, 7
    %v704 = vsub.s32 0, %v703
    %v705 = vrot.slane %v326, %v704
    %v706 = vlaneseq
    %v707 = vshrl.u32 %v706, 7
    %v708 = vsub.s32 1, %v707
    %v709 = vrot.slane %v326, %v708
    %v710 = vlaneseq
    %v711 = vshrl.u32 %v710, 7
    %v712 = vsub.s32 2, %v711
    %v713 = vrot.slane %v326, %v712
    %v714 = vlaneseq
    %v715 = vshrl.u32 %v714, 7
    %v716 = vsub.s32 3, %v715
    %v717 = vrot.slane %v326, %v716
    %v718 = vlaneseq
    %v719 = vshrl.u32 %v718, 7
    %v720 = vsub.s32 4, %v719
    %v721 = vrot.slane %v326, %v720
    %v722 = vlaneseq
    %v723 = vshrl.u32 %v722, 7
    %v724 = vsub.s32 5, %v723
    %v725 = vrot.slane %v326, %v724
    %v726 = vlaneseq
    %v727 = vshrl.u32 %v726, 7
    %v728 = vsub.s32 6, %v727
    %v729 = vrot.slane %v326, %v728
    %v730 = vlaneseq
    %v731 = vshrl.u32 %v730, 7
    %v732 = vsub.s32 7, %v731
    %v733 = vrot.slane %v326, %v732
    %v742 = vadd.f32 %v484, %v705
    %v743 = vadd.f32 %v486, %v709
    %v744 = vadd.f32 %v555, %v713
    %v745 = vadd.f32 %v557, %v717
    %v746 = vadd.f32 %v626, %v721
    %v747 = vadd.f32 %v628, %v725
    %v748 = vadd.f32 %v697, %v729
    %v749 = vadd.f32 %v699, %v733
    %v750 = vmul.f32 %v742, 0.5
    %v751 = vmul.f32 %v743, 0.5
    %v752 = vtanh.pop %v750
    %v753 = vtanh.pop %v751
    %v754 = vmul.f32 %v752, 0.5
    %v755 = vmul.f32 %v753, 0.5
    %v756 = vadd.f32 %v754, 0.5
    %v757 = vadd.f32 %v755, 0.5
    %v758 = vmul.f32 %v744, 0.5
    %v759 = vmul.f32 %v745, 0.5
    %v760 = vtanh.pop %v758
    %v761 = vtanh.pop %v759
    %v762 = vmul.f32 %v760, 0.5
    %v763 = vmul.f32 %v761, 0.5
    %v764 = vadd.f32 %v762, 0.5
    %v765 = vadd.f32 %v763, 0.5
    %v766 = vtanh.pop %v746
    %v767 = vtanh.pop %v747
    %v768 = vmul.f32 %v748, 0.5
    %v769 = vmul.f32 %v749, 0.5
    %v770 = vtanh.pop %v768
    %v771 = vtanh.pop %v769
    %v772 = vmul.f32 %v770, 0.5
    %v773 = vmul.f32 %v771, 0.5
    %v774 = vadd.f32 %v772, 0.5
    %v775 = vadd.f32 %v773, 0.5
    %v778 = vunpack.c.l.s4 1983009808
    %v779 = vunpack.c.0.s8 %v778
    %v780 = vlaneseq
    %v781 = vshrl.u32 %v780, 7
    %v782 = vsub.s32 %v779, %v781
    %v783 = vrot.slane %v350, %v782
    %v784 = vcombine.high %v783, %v783
    %v787 = vmul.f32 %v764, %v783
    %v788 = vmul.f32 %v765, %v784
    %v789 = vmul.f32 %v756, %v766
    %v790 = vmul.f32 %v757, %v767
    %v791 = vadd.f32 %v787, %v789
    %v792 = vadd.f32 %v788, %v790
    %v793 = vtanh.pop %v791
    %v794 = vtanh.pop %v792
    %v795 = vmul.f32 %v774, %v793
    %v796 = vmul.f32 %v775, %v794
    %v797 = vmul.f32 %v795, %v332
    %v798 = vmul.f32 %v796, %v336
    %vm799 = vcmask 1041408
    %v800 = vsel %vm799, %v797, 0.0
    %v801 = vsel %vm799, %v798, 0.0
    %v802 = vadd.f32 %v800, %v801
    %803 = vadd.xlane.f32.xlu0 %v802
    %v804 = vpop.xlane.xlu0 %803
    %v805 = vadd.f32 %v804, %v344
    %807 = vset.pattern.permute.xlu0 0
    %808 = vperm.xlu0 %807, %v805
    %v809 = vpop.permute.xlu0 %808
    %v811 = vsel %vm351, %v809, 0.0
    %vm812 = vcmp.eq.s32.totalorder %v348, 1
    %v813 = vsel %vm812, %v346, 0.0
    %v814 = vsel %vm353, %v813, 0.0
    %815 = vadd.xlane.f32.xlu0 %v814
    %v816 = vpop.xlane.xlu0 %815
    %v817 = vmul.f32 %v816, %v361
    %v818 = vmul.f32 %v816, %v365
    %v819 = vmul.f32 %v816, %v369
    %v820 = vmul.f32 %v816, %v373
    %v821 = vmul.f32 %v816, %v377
    %v822 = vmul.f32 %v816, %v381
    %v823 = vmul.f32 %v816, %v385
    %v824 = vmul.f32 %v816, %v389
    %825 = vmatprep.subr.mxu0 %v190
    %826 = vmatpush1.msra.mxu0 %v189
    %827 = vmatprep.subr.mxu0 %v182
    %828 = vmatpush1.msra.mxu0 %v181
    %829 = vmatprep.subr.mxu0 %v174
    %830 = vmatpush1.msra.mxu0 %v173
    %831 = vmatprep.subr.mxu0 %v166
    %832 = vmatpush1.msra.mxu0 %v165
    %833 = vmatprep.subr.mxu0 %v158
    %834 = vmatpush1.msra.mxu0 %v157
    %835 = vmatprep.subr.mxu0 %v150
    %836 = vmatpush1.msra.mxu0 %v149
    %837 = vmatprep.subr.mxu0 %v142
    %838 = vmatpush1.msra.mxu0 %v141
    %839 = vmatprep.subr.mxu0 %v134
    %840 = vmatpush1.msra.mxu0 %v133
    %841 = vmatprep.subr.mxu0 %v126
    %842 = vmatpush1.msra.mxu0 %v125
    %843 = vmatprep.subr.mxu0 %v118
    %844 = vmatpush1.msra.mxu0 %v117
    %845 = vmatprep.subr.mxu0 %v110
    %846 = vmatpush1.msra.mxu0 %v109
    %847 = vmatprep.subr.mxu0 %v102
    %848 = vmatpush1.msra.mxu0 %v101
    %849 = vmatprep.subr.mxu0 %v94
    %850 = vmatpush1.msra.mxu0 %v93
    %851 = vmatprep.subr.mxu0 %v86
    %852 = vmatpush1.msra.mxu0 %v85
    %853 = vmatprep.subr.mxu0 %v78
    %854 = vmatpush1.msra.mxu0 %v77
    %855 = vmatprep.subr.mxu0 %v70
    %856 = vmatpush1.msra.mxu0 %v69
    %857 = vmatprep.subr.mxu0 %v318
    %858 = vmatpush2.msra.mxu0 %v317
    %859 = vmatprep.subr.mxu0 %v310
    %860 = vmatpush2.msra.mxu0 %v309
    %861 = vmatprep.subr.mxu0 %v302
    %862 = vmatpush2.msra.mxu0 %v301
    %863 = vmatprep.subr.mxu0 %v294
    %864 = vmatpush2.msra.mxu0 %v293
    %865 = vmatprep.subr.mxu0 %v286
    %866 = vmatpush2.msra.mxu0 %v285
    %867 = vmatprep.subr.mxu0 %v278
    %868 = vmatpush2.msra.mxu0 %v277
    %869 = vmatprep.subr.mxu0 %v270
    %870 = vmatpush2.msra.mxu0 %v269
    %871 = vmatprep.subr.mxu0 %v262
    %872 = vmatpush2.msra.mxu0 %v261
    %873 = vmatprep.subr.mxu0 %v254
    %874 = vmatpush2.msra.mxu0 %v253
    %875 = vmatprep.subr.mxu0 %v246
    %876 = vmatpush2.msra.mxu0 %v245
    %877 = vmatprep.subr.mxu0 %v238
    %878 = vmatpush2.msra.mxu0 %v237
    %879 = vmatprep.subr.mxu0 %v230
    %880 = vmatpush2.msra.mxu0 %v229
    %881 = vmatprep.subr.mxu0 %v222
    %882 = vmatpush2.msra.mxu0 %v221
    %883 = vmatprep.subr.mxu0 %v214
    %884 = vmatpush2.msra.mxu0 %v213
    %885 = vmatprep.subr.mxu0 %v206
    %886 = vmatpush2.msra.mxu0 %v205
    %887 = vmatprep.subr.mxu0 %v198
    %888 = vmatpush2.msra.mxu0 %v197
    %889 = vmatprep.mubr.f32.mxu0 %v796
    %890 = vmatmul.mubr.f32.gmra.mxu0 %v795
    %v891 = vpop.f32.mrf.mxu0
    %v892 = vadd.f32 %v817, %v891
    %v893 = vpop.f32.mrf.mxu0
    %v894 = vadd.f32 %v818, %v893
    %895 = vdwg.mxu0
    %896 = vmatprep.subr.mxu0 %v192
    %897 = vmatpush1.msra.mxu0 %v191
    %898 = vmatprep.subr.mxu0 %v184
    %899 = vmatpush1.msra.mxu0 %v183
    %900 = vmatprep.subr.mxu0 %v176
    %901 = vmatpush1.msra.mxu0 %v175
    %902 = vmatprep.subr.mxu0 %v168
    %903 = vmatpush1.msra.mxu0 %v167
    %904 = vmatprep.subr.mxu0 %v160
    %905 = vmatpush1.msra.mxu0 %v159
    %906 = vmatprep.subr.mxu0 %v152
    %907 = vmatpush1.msra.mxu0 %v151
    %908 = vmatprep.subr.mxu0 %v144
    %909 = vmatpush1.msra.mxu0 %v143
    %910 = vmatprep.subr.mxu0 %v136
    %911 = vmatpush1.msra.mxu0 %v135
    %912 = vmatprep.subr.mxu0 %v128
    %913 = vmatpush1.msra.mxu0 %v127
    %914 = vmatprep.subr.mxu0 %v120
    %915 = vmatpush1.msra.mxu0 %v119
    %916 = vmatprep.subr.mxu0 %v112
    %917 = vmatpush1.msra.mxu0 %v111
    %918 = vmatprep.subr.mxu0 %v104
    %919 = vmatpush1.msra.mxu0 %v103
    %920 = vmatprep.subr.mxu0 %v96
    %921 = vmatpush1.msra.mxu0 %v95
    %922 = vmatprep.subr.mxu0 %v88
    %923 = vmatpush1.msra.mxu0 %v87
    %924 = vmatprep.subr.mxu0 %v80
    %925 = vmatpush1.msra.mxu0 %v79
    %926 = vmatprep.subr.mxu0 %v72
    %927 = vmatpush1.msra.mxu0 %v71
    %928 = vmatprep.subr.mxu0 %v320
    %929 = vmatpush2.msra.mxu0 %v319
    %930 = vmatprep.subr.mxu0 %v312
    %931 = vmatpush2.msra.mxu0 %v311
    %932 = vmatprep.subr.mxu0 %v304
    %933 = vmatpush2.msra.mxu0 %v303
    %934 = vmatprep.subr.mxu0 %v296
    %935 = vmatpush2.msra.mxu0 %v295
    %936 = vmatprep.subr.mxu0 %v288
    %937 = vmatpush2.msra.mxu0 %v287
    %938 = vmatprep.subr.mxu0 %v280
    %939 = vmatpush2.msra.mxu0 %v279
    %940 = vmatprep.subr.mxu0 %v272
    %941 = vmatpush2.msra.mxu0 %v271
    %942 = vmatprep.subr.mxu0 %v264
    %943 = vmatpush2.msra.mxu0 %v263
    %944 = vmatprep.subr.mxu0 %v256
    %945 = vmatpush2.msra.mxu0 %v255
    %946 = vmatprep.subr.mxu0 %v248
    %947 = vmatpush2.msra.mxu0 %v247
    %948 = vmatprep.subr.mxu0 %v240
    %949 = vmatpush2.msra.mxu0 %v239
    %950 = vmatprep.subr.mxu0 %v232
    %951 = vmatpush2.msra.mxu0 %v231
    %952 = vmatprep.subr.mxu0 %v224
    %953 = vmatpush2.msra.mxu0 %v223
    %954 = vmatprep.subr.mxu0 %v216
    %955 = vmatpush2.msra.mxu0 %v215
    %956 = vmatprep.subr.mxu0 %v208
    %957 = vmatpush2.msra.mxu0 %v207
    %958 = vmatprep.subr.mxu0 %v200
    %959 = vmatpush2.msra.mxu0 %v199
    %960 = vmatprep.mubr.f32.mxu0 %v796
    %961 = vmatmul.mubr.f32.gmra.mxu0 %v795
    %v962 = vpop.f32.mrf.mxu0
    %v963 = vadd.f32 %v819, %v962
    %v964 = vpop.f32.mrf.mxu0
    %v965 = vadd.f32 %v820, %v964
    %966 = vdwg.mxu0
    %967 = vmatprep.subr.mxu0 %v194
    %968 = vmatpush1.msra.mxu0 %v193
    %969 = vmatprep.subr.mxu0 %v186
    %970 = vmatpush1.msra.mxu0 %v185
    %971 = vmatprep.subr.mxu0 %v178
    %972 = vmatpush1.msra.mxu0 %v177
    %973 = vmatprep.subr.mxu0 %v170
    %974 = vmatpush1.msra.mxu0 %v169
    %975 = vmatprep.subr.mxu0 %v162
    %976 = vmatpush1.msra.mxu0 %v161
    %977 = vmatprep.subr.mxu0 %v154
    %978 = vmatpush1.msra.mxu0 %v153
    %979 = vmatprep.subr.mxu0 %v146
    %980 = vmatpush1.msra.mxu0 %v145
    %981 = vmatprep.subr.mxu0 %v138
    %982 = vmatpush1.msra.mxu0 %v137
    %983 = vmatprep.subr.mxu0 %v130
    %984 = vmatpush1.msra.mxu0 %v129
    %985 = vmatprep.subr.mxu0 %v122
    %986 = vmatpush1.msra.mxu0 %v121
    %987 = vmatprep.subr.mxu0 %v114
    %988 = vmatpush1.msra.mxu0 %v113
    %989 = vmatprep.subr.mxu0 %v106
    %990 = vmatpush1.msra.mxu0 %v105
    %991 = vmatprep.subr.mxu0 %v98
    %992 = vmatpush1.msra.mxu0 %v97
    %993 = vmatprep.subr.mxu0 %v90
    %994 = vmatpush1.msra.mxu0 %v89
    %995 = vmatprep.subr.mxu0 %v82
    %996 = vmatpush1.msra.mxu0 %v81
    %997 = vmatprep.subr.mxu0 %v74
    %998 = vmatpush1.msra.mxu0 %v73
    %999 = vmatprep.subr.mxu0 %v322
    %1000 = vmatpush2.msra.mxu0 %v321
    %1001 = vmatprep.subr.mxu0 %v314
    %1002 = vmatpush2.msra.mxu0 %v313
    %1003 = vmatprep.subr.mxu0 %v306
    %1004 = vmatpush2.msra.mxu0 %v305
    %1005 = vmatprep.subr.mxu0 %v298
    %1006 = vmatpush2.msra.mxu0 %v297
    %1007 = vmatprep.subr.mxu0 %v290
    %1008 = vmatpush2.msra.mxu0 %v289
    %1009 = vmatprep.subr.mxu0 %v282
    %1010 = vmatpush2.msra.mxu0 %v281
    %1011 = vmatprep.subr.mxu0 %v274
    %1012 = vmatpush2.msra.mxu0 %v273
    %1013 = vmatprep.subr.mxu0 %v266
    %1014 = vmatpush2.msra.mxu0 %v265
    %1015 = vmatprep.subr.mxu0 %v258
    %1016 = vmatpush2.msra.mxu0 %v257
    %1017 = vmatprep.subr.mxu0 %v250
    %1018 = vmatpush2.msra.mxu0 %v249
    %1019 = vmatprep.subr.mxu0 %v242
    %1020 = vmatpush2.msra.mxu0 %v241
    %1021 = vmatprep.subr.mxu0 %v234
    %1022 = vmatpush2.msra.mxu0 %v233
    %1023 = vmatprep.subr.mxu0 %v226
    %1024 = vmatpush2.msra.mxu0 %v225
    %1025 = vmatprep.subr.mxu0 %v218
    %1026 = vmatpush2.msra.mxu0 %v217
    %1027 = vmatprep.subr.mxu0 %v210
    %1028 = vmatpush2.msra.mxu0 %v209
    %1029 = vmatprep.subr.mxu0 %v202
    %1030 = vmatpush2.msra.mxu0 %v201
    %1031 = vmatprep.mubr.f32.mxu0 %v796
    %1032 = vmatmul.mubr.f32.gmra.mxu0 %v795
    %v1033 = vpop.f32.mrf.mxu0
    %v1034 = vadd.f32 %v821, %v1033
    %v1035 = vpop.f32.mrf.mxu0
    %v1036 = vadd.f32 %v822, %v1035
    %1037 = vdwg.mxu0
    %1038 = vmatprep.subr.mxu0 %v196
    %1039 = vmatpush1.msra.mxu0 %v195
    %1040 = vmatprep.subr.mxu0 %v188
    %1041 = vmatpush1.msra.mxu0 %v187
    %1042 = vmatprep.subr.mxu0 %v180
    %1043 = vmatpush1.msra.mxu0 %v179
    %1044 = vmatprep.subr.mxu0 %v172
    %1045 = vmatpush1.msra.mxu0 %v171
    %1046 = vmatprep.subr.mxu0 %v164
    %1047 = vmatpush1.msra.mxu0 %v163
    %1048 = vmatprep.subr.mxu0 %v156
    %1049 = vmatpush1.msra.mxu0 %v155
    %1050 = vmatprep.subr.mxu0 %v148
    %1051 = vmatpush1.msra.mxu0 %v147
    %1052 = vmatprep.subr.mxu0 %v140
    %1053 = vmatpush1.msra.mxu0 %v139
    %1054 = vmatprep.subr.mxu0 %v132
    %1055 = vmatpush1.msra.mxu0 %v131
    %1056 = vmatprep.subr.mxu0 %v124
    %1057 = vmatpush1.msra.mxu0 %v123
    %1058 = vmatprep.subr.mxu0 %v116
    %1059 = vmatpush1.msra.mxu0 %v115
    %1060 = vmatprep.subr.mxu0 %v108
    %1061 = vmatpush1.msra.mxu0 %v107
    %1062 = vmatprep.subr.mxu0 %v100
    %1063 = vmatpush1.msra.mxu0 %v99
    %1064 = vmatprep.subr.mxu0 %v92
    %1065 = vmatpush1.msra.mxu0 %v91
    %1066 = vmatprep.subr.mxu0 %v84
    %1067 = vmatpush1.msra.mxu0 %v83
    %1068 = vmatprep.subr.mxu0 %v76
    %1069 = vmatpush1.msra.mxu0 %v75
    %1070 = vmatprep.subr.mxu0 %v324
    %1071 = vmatpush2.msra.mxu0 %v323
    %1072 = vmatprep.subr.mxu0 %v316
    %1073 = vmatpush2.msra.mxu0 %v315
    %1074 = vmatprep.subr.mxu0 %v308
    %1075 = vmatpush2.msra.mxu0 %v307
    %1076 = vmatprep.subr.mxu0 %v300
    %1077 = vmatpush2.msra.mxu0 %v299
    %1078 = vmatprep.subr.mxu0 %v292
    %1079 = vmatpush2.msra.mxu0 %v291
    %1080 = vmatprep.subr.mxu0 %v284
    %1081 = vmatpush2.msra.mxu0 %v283
    %1082 = vmatprep.subr.mxu0 %v276
    %1083 = vmatpush2.msra.mxu0 %v275
    %1084 = vmatprep.subr.mxu0 %v268
    %1085 = vmatpush2.msra.mxu0 %v267
    %1086 = vmatprep.subr.mxu0 %v260
    %1087 = vmatpush2.msra.mxu0 %v259
    %1088 = vmatprep.subr.mxu0 %v252
    %1089 = vmatpush2.msra.mxu0 %v251
    %1090 = vmatprep.subr.mxu0 %v244
    %1091 = vmatpush2.msra.mxu0 %v243
    %1092 = vmatprep.subr.mxu0 %v236
    %1093 = vmatpush2.msra.mxu0 %v235
    %1094 = vmatprep.subr.mxu0 %v228
    %1095 = vmatpush2.msra.mxu0 %v227
    %1096 = vmatprep.subr.mxu0 %v220
    %1097 = vmatpush2.msra.mxu0 %v219
    %1098 = vmatprep.subr.mxu0 %v212
    %1099 = vmatpush2.msra.mxu0 %v211
    %1100 = vmatprep.subr.mxu0 %v204
    %1101 = vmatpush2.msra.mxu0 %v203
    %1102 = vmatprep.mubr.f32.mxu0 %v796
    %1103 = vmatmul.mubr.f32.gmra.mxu0 %v795
    %v1104 = vpop.f32.mrf.mxu0
    %v1105 = vadd.f32 %v823, %v1104
    %v1106 = vpop.f32.mrf.mxu0
    %v1107 = vadd.f32 %v824, %v1106
    %1108 = vdwg.mxu0
    %v1109 = vadd.f32 %v892, %v705
    %v1110 = vadd.f32 %v894, %v709
    %v1111 = vadd.f32 %v963, %v713
    %v1112 = vadd.f32 %v965, %v717
    %v1113 = vadd.f32 %v1034, %v721
    %v1114 = vadd.f32 %v1036, %v725
    %v1115 = vadd.f32 %v1105, %v729
    %v1116 = vadd.f32 %v1107, %v733
    %v1117 = vmul.f32 %v1109, 0.5
    %v1118 = vmul.f32 %v1110, 0.5
    %v1119 = vtanh.pop %v1117
    %v1120 = vtanh.pop %v1118
    %v1121 = vmul.f32 %v1119, 0.5
    %v1122 = vmul.f32 %v1120, 0.5
    %v1123 = vadd.f32 %v1121, 0.5
    %v1124 = vadd.f32 %v1122, 0.5
    %v1125 = vmul.f32 %v1111, 0.5
    %v1126 = vmul.f32 %v1112, 0.5
    %v1127 = vtanh.pop %v1125
    %v1128 = vtanh.pop %v1126
    %v1129 = vmul.f32 %v1127, 0.5
    %v1130 = vmul.f32 %v1128, 0.5
    %v1131 = vadd.f32 %v1129, 0.5
    %v1132 = vadd.f32 %v1130, 0.5
    %v1133 = vtanh.pop %v1113
    %v1134 = vtanh.pop %v1114
    %v1135 = vmul.f32 %v1115, 0.5
    %v1136 = vmul.f32 %v1116, 0.5
    %v1137 = vtanh.pop %v1135
    %v1138 = vtanh.pop %v1136
    %v1139 = vmul.f32 %v1137, 0.5
    %v1140 = vmul.f32 %v1138, 0.5
    %v1141 = vadd.f32 %v1139, 0.5
    %v1142 = vadd.f32 %v1140, 0.5
    %v1143 = vmul.f32 %v1131, %v791
    %v1144 = vmul.f32 %v1132, %v792
    %v1145 = vmul.f32 %v1123, %v1133
    %v1146 = vmul.f32 %v1124, %v1134
    %v1147 = vadd.f32 %v1143, %v1145
    %v1148 = vadd.f32 %v1144, %v1146
    %v1149 = vtanh.pop %v1147
    %v1150 = vtanh.pop %v1148
    %v1151 = vmul.f32 %v1141, %v1149
    %v1152 = vmul.f32 %v1142, %v1150
    %v1153 = vmul.f32 %v1151, %v332
    %v1154 = vmul.f32 %v1152, %v336
    %v1155 = vsel %vm799, %v1153, 0.0
    %v1156 = vsel %vm799, %v1154, 0.0
    %v1157 = vadd.f32 %v1155, %v1156
    %1158 = vadd.xlane.f32.xlu0 %v1157
    %v1159 = vpop.xlane.xlu0 %1158
    %v1160 = vadd.f32 %v1159, %v344
    %1162 = vset.pattern.permute.xlu0 0
    %1163 = vperm.xlu0 %1162, %v1160
    %v1164 = vpop.permute.xlu0 %1163
    %v1166 = vsel %vm812, %v1164, %v811
    %vm1167 = vcmp.eq.s32.totalorder %v348, 2
    %v1168 = vsel %vm1167, %v346, 0.0
    %v1169 = vsel %vm353, %v1168, 0.0
    %1170 = vadd.xlane.f32.xlu0 %v1169
    %v1171 = vpop.xlane.xlu0 %1170
    %v1172 = vmul.f32 %v1171, %v361
    %v1173 = vmul.f32 %v1171, %v365
    %v1174 = vmul.f32 %v1171, %v369
    %v1175 = vmul.f32 %v1171, %v373
    %v1176 = vmul.f32 %v1171, %v377
    %v1177 = vmul.f32 %v1171, %v381
    %v1178 = vmul.f32 %v1171, %v385
    %v1179 = vmul.f32 %v1171, %v389
    %1180 = vmatprep.subr.mxu0 %v190
    %1181 = vmatpush1.msra.mxu0 %v189
    %1182 = vmatprep.subr.mxu0 %v182
    %1183 = vmatpush1.msra.mxu0 %v181
    %1184 = vmatprep.subr.mxu0 %v174
    %1185 = vmatpush1.msra.mxu0 %v173
    %1186 = vmatprep.subr.mxu0 %v166
    %1187 = vmatpush1.msra.mxu0 %v165
    %1188 = vmatprep.subr.mxu0 %v158
    %1189 = vmatpush1.msra.mxu0 %v157
    %1190 = vmatprep.subr.mxu0 %v150
    %1191 = vmatpush1.msra.mxu0 %v149
    %1192 = vmatprep.subr.mxu0 %v142
    %1193 = vmatpush1.msra.mxu0 %v141
    %1194 = vmatprep.subr.mxu0 %v134
    %1195 = vmatpush1.msra.mxu0 %v133
    %1196 = vmatprep.subr.mxu0 %v126
    %1197 = vmatpush1.msra.mxu0 %v125
    %1198 = vmatprep.subr.mxu0 %v118
    %1199 = vmatpush1.msra.mxu0 %v117
    %1200 = vmatprep.subr.mxu0 %v110
    %1201 = vmatpush1.msra.mxu0 %v109
    %1202 = vmatprep.subr.mxu0 %v102
    %1203 = vmatpush1.msra.mxu0 %v101
    %1204 = vmatprep.subr.mxu0 %v94
    %1205 = vmatpush1.msra.mxu0 %v93
    %1206 = vmatprep.subr.mxu0 %v86
    %1207 = vmatpush1.msra.mxu0 %v85
    %1208 = vmatprep.subr.mxu0 %v78
    %1209 = vmatpush1.msra.mxu0 %v77
    %1210 = vmatprep.subr.mxu0 %v70
    %1211 = vmatpush1.msra.mxu0 %v69
    %1212 = vmatprep.subr.mxu0 %v318
    %1213 = vmatpush2.msra.mxu0 %v317
    %1214 = vmatprep.subr.mxu0 %v310
    %1215 = vmatpush2.msra.mxu0 %v309
    %1216 = vmatprep.subr.mxu0 %v302
    %1217 = vmatpush2.msra.mxu0 %v301
    %1218 = vmatprep.subr.mxu0 %v294
    %1219 = vmatpush2.msra.mxu0 %v293
    %1220 = vmatprep.subr.mxu0 %v286
    %1221 = vmatpush2.msra.mxu0 %v285
    %1222 = vmatprep.subr.mxu0 %v278
    %1223 = vmatpush2.msra.mxu0 %v277
    %1224 = vmatprep.subr.mxu0 %v270
    %1225 = vmatpush2.msra.mxu0 %v269
    %1226 = vmatprep.subr.mxu0 %v262
    %1227 = vmatpush2.msra.mxu0 %v261
    %1228 = vmatprep.subr.mxu0 %v254
    %1229 = vmatpush2.msra.mxu0 %v253
    %1230 = vmatprep.subr.mxu0 %v246
    %1231 = vmatpush2.msra.mxu0 %v245
    %1232 = vmatprep.subr.mxu0 %v238
    %1233 = vmatpush2.msra.mxu0 %v237
    %1234 = vmatprep.subr.mxu0 %v230
    %1235 = vmatpush2.msra.mxu0 %v229
    %1236 = vmatprep.subr.mxu0 %v222
    %1237 = vmatpush2.msra.mxu0 %v221
    %1238 = vmatprep.subr.mxu0 %v214
    %1239 = vmatpush2.msra.mxu0 %v213
    %1240 = vmatprep.subr.mxu0 %v206
    %1241 = vmatpush2.msra.mxu0 %v205
    %1242 = vmatprep.subr.mxu0 %v198
    %1243 = vmatpush2.msra.mxu0 %v197
    %1244 = vmatprep.mubr.f32.mxu0 %v1152
    %1245 = vmatmul.mubr.f32.gmra.mxu0 %v1151
    %v1246 = vpop.f32.mrf.mxu0
    %v1247 = vadd.f32 %v1172, %v1246
    %v1248 = vpop.f32.mrf.mxu0
    %v1249 = vadd.f32 %v1173, %v1248
    %1250 = vdwg.mxu0
    %1251 = vmatprep.subr.mxu0 %v192
    %1252 = vmatpush1.msra.mxu0 %v191
    %1253 = vmatprep.subr.mxu0 %v184
    %1254 = vmatpush1.msra.mxu0 %v183
    %1255 = vmatprep.subr.mxu0 %v176
    %1256 = vmatpush1.msra.mxu0 %v175
    %1257 = vmatprep.subr.mxu0 %v168
    %1258 = vmatpush1.msra.mxu0 %v167
    %1259 = vmatprep.subr.mxu0 %v160
    %1260 = vmatpush1.msra.mxu0 %v159
    %1261 = vmatprep.subr.mxu0 %v152
    %1262 = vmatpush1.msra.mxu0 %v151
    %1263 = vmatprep.subr.mxu0 %v144
    %1264 = vmatpush1.msra.mxu0 %v143
    %1265 = vmatprep.subr.mxu0 %v136
    %1266 = vmatpush1.msra.mxu0 %v135
    %1267 = vmatprep.subr.mxu0 %v128
    %1268 = vmatpush1.msra.mxu0 %v127
    %1269 = vmatprep.subr.mxu0 %v120
    %1270 = vmatpush1.msra.mxu0 %v119
    %1271 = vmatprep.subr.mxu0 %v112
    %1272 = vmatpush1.msra.mxu0 %v111
    %1273 = vmatprep.subr.mxu0 %v104
    %1274 = vmatpush1.msra.mxu0 %v103
    %1275 = vmatprep.subr.mxu0 %v96
    %1276 = vmatpush1.msra.mxu0 %v95
    %1277 = vmatprep.subr.mxu0 %v88
    %1278 = vmatpush1.msra.mxu0 %v87
    %1279 = vmatprep.subr.mxu0 %v80
    %1280 = vmatpush1.msra.mxu0 %v79
    %1281 = vmatprep.subr.mxu0 %v72
    %1282 = vmatpush1.msra.mxu0 %v71
    %1283 = vmatprep.subr.mxu0 %v320
    %1284 = vmatpush2.msra.mxu0 %v319
    %1285 = vmatprep.subr.mxu0 %v312
    %1286 = vmatpush2.msra.mxu0 %v311
    %1287 = vmatprep.subr.mxu0 %v304
    %1288 = vmatpush2.msra.mxu0 %v303
    %1289 = vmatprep.subr.mxu0 %v296
    %1290 = vmatpush2.msra.mxu0 %v295
    %1291 = vmatprep.subr.mxu0 %v288
    %1292 = vmatpush2.msra.mxu0 %v287
    %1293 = vmatprep.subr.mxu0 %v280
    %1294 = vmatpush2.msra.mxu0 %v279
    %1295 = vmatprep.subr.mxu0 %v272
    %1296 = vmatpush2.msra.mxu0 %v271
    %1297 = vmatprep.subr.mxu0 %v264
    %1298 = vmatpush2.msra.mxu0 %v263
    %1299 = vmatprep.subr.mxu0 %v256
    %1300 = vmatpush2.msra.mxu0 %v255
    %1301 = vmatprep.subr.mxu0 %v248
    %1302 = vmatpush2.msra.mxu0 %v247
    %1303 = vmatprep.subr.mxu0 %v240
    %1304 = vmatpush2.msra.mxu0 %v239
    %1305 = vmatprep.subr.mxu0 %v232
    %1306 = vmatpush2.msra.mxu0 %v231
    %1307 = vmatprep.subr.mxu0 %v224
    %1308 = vmatpush2.msra.mxu0 %v223
    %1309 = vmatprep.subr.mxu0 %v216
    %1310 = vmatpush2.msra.mxu0 %v215
    %1311 = vmatprep.subr.mxu0 %v208
    %1312 = vmatpush2.msra.mxu0 %v207
    %1313 = vmatprep.subr.mxu0 %v200
    %1314 = vmatpush2.msra.mxu0 %v199
    %1315 = vmatprep.mubr.f32.mxu0 %v1152
    %1316 = vmatmul.mubr.f32.gmra.mxu0 %v1151
    %v1317 = vpop.f32.mrf.mxu0
    %v1318 = vadd.f32 %v1174, %v1317
    %v1319 = vpop.f32.mrf.mxu0
    %v1320 = vadd.f32 %v1175, %v1319
    %1321 = vdwg.mxu0
    %1322 = vmatprep.subr.mxu0 %v194
    %1323 = vmatpush1.msra.mxu0 %v193
    %1324 = vmatprep.subr.mxu0 %v186
    %1325 = vmatpush1.msra.mxu0 %v185
    %1326 = vmatprep.subr.mxu0 %v178
    %1327 = vmatpush1.msra.mxu0 %v177
    %1328 = vmatprep.subr.mxu0 %v170
    %1329 = vmatpush1.msra.mxu0 %v169
    %1330 = vmatprep.subr.mxu0 %v162
    %1331 = vmatpush1.msra.mxu0 %v161
    %1332 = vmatprep.subr.mxu0 %v154
    %1333 = vmatpush1.msra.mxu0 %v153
    %1334 = vmatprep.subr.mxu0 %v146
    %1335 = vmatpush1.msra.mxu0 %v145
    %1336 = vmatprep.subr.mxu0 %v138
    %1337 = vmatpush1.msra.mxu0 %v137
    %1338 = vmatprep.subr.mxu0 %v130
    %1339 = vmatpush1.msra.mxu0 %v129
    %1340 = vmatprep.subr.mxu0 %v122
    %1341 = vmatpush1.msra.mxu0 %v121
    %1342 = vmatprep.subr.mxu0 %v114
    %1343 = vmatpush1.msra.mxu0 %v113
    %1344 = vmatprep.subr.mxu0 %v106
    %1345 = vmatpush1.msra.mxu0 %v105
    %1346 = vmatprep.subr.mxu0 %v98
    %1347 = vmatpush1.msra.mxu0 %v97
    %1348 = vmatprep.subr.mxu0 %v90
    %1349 = vmatpush1.msra.mxu0 %v89
    %1350 = vmatprep.subr.mxu0 %v82
    %1351 = vmatpush1.msra.mxu0 %v81
    %1352 = vmatprep.subr.mxu0 %v74
    %1353 = vmatpush1.msra.mxu0 %v73
    %1354 = vmatprep.subr.mxu0 %v322
    %1355 = vmatpush2.msra.mxu0 %v321
    %1356 = vmatprep.subr.mxu0 %v314
    %1357 = vmatpush2.msra.mxu0 %v313
    %1358 = vmatprep.subr.mxu0 %v306
    %1359 = vmatpush2.msra.mxu0 %v305
    %1360 = vmatprep.subr.mxu0 %v298
    %1361 = vmatpush2.msra.mxu0 %v297
    %1362 = vmatprep.subr.mxu0 %v290
    %1363 = vmatpush2.msra.mxu0 %v289
    %1364 = vmatprep.subr.mxu0 %v282
    %1365 = vmatpush2.msra.mxu0 %v281
    %1366 = vmatprep.subr.mxu0 %v274
    %1367 = vmatpush2.msra.mxu0 %v273
    %1368 = vmatprep.subr.mxu0 %v266
    %1369 = vmatpush2.msra.mxu0 %v265
    %1370 = vmatprep.subr.mxu0 %v258
    %1371 = vmatpush2.msra.mxu0 %v257
    %1372 = vmatprep.subr.mxu0 %v250
    %1373 = vmatpush2.msra.mxu0 %v249
    %1374 = vmatprep.subr.mxu0 %v242
    %1375 = vmatpush2.msra.mxu0 %v241
    %1376 = vmatprep.subr.mxu0 %v234
    %1377 = vmatpush2.msra.mxu0 %v233
    %1378 = vmatprep.subr.mxu0 %v226
    %1379 = vmatpush2.msra.mxu0 %v225
    %1380 = vmatprep.subr.mxu0 %v218
    %1381 = vmatpush2.msra.mxu0 %v217
    %1382 = vmatprep.subr.mxu0 %v210
    %1383 = vmatpush2.msra.mxu0 %v209
    %1384 = vmatprep.subr.mxu0 %v202
    %1385 = vmatpush2.msra.mxu0 %v201
    %1386 = vmatprep.mubr.f32.mxu0 %v1152
    %1387 = vmatmul.mubr.f32.gmra.mxu0 %v1151
    %v1388 = vpop.f32.mrf.mxu0
    %v1389 = vadd.f32 %v1176, %v1388
    %v1390 = vpop.f32.mrf.mxu0
    %v1391 = vadd.f32 %v1177, %v1390
    %1392 = vdwg.mxu0
    %1393 = vmatprep.subr.mxu0 %v196
    %1394 = vmatpush1.msra.mxu0 %v195
    %1395 = vmatprep.subr.mxu0 %v188
    %1396 = vmatpush1.msra.mxu0 %v187
    %1397 = vmatprep.subr.mxu0 %v180
    %1398 = vmatpush1.msra.mxu0 %v179
    %1399 = vmatprep.subr.mxu0 %v172
    %1400 = vmatpush1.msra.mxu0 %v171
    %1401 = vmatprep.subr.mxu0 %v164
    %1402 = vmatpush1.msra.mxu0 %v163
    %1403 = vmatprep.subr.mxu0 %v156
    %1404 = vmatpush1.msra.mxu0 %v155
    %1405 = vmatprep.subr.mxu0 %v148
    %1406 = vmatpush1.msra.mxu0 %v147
    %1407 = vmatprep.subr.mxu0 %v140
    %1408 = vmatpush1.msra.mxu0 %v139
    %1409 = vmatprep.subr.mxu0 %v132
    %1410 = vmatpush1.msra.mxu0 %v131
    %1411 = vmatprep.subr.mxu0 %v124
    %1412 = vmatpush1.msra.mxu0 %v123
    %1413 = vmatprep.subr.mxu0 %v116
    %1414 = vmatpush1.msra.mxu0 %v115
    %1415 = vmatprep.subr.mxu0 %v108
    %1416 = vmatpush1.msra.mxu0 %v107
    %1417 = vmatprep.subr.mxu0 %v100
    %1418 = vmatpush1.msra.mxu0 %v99
    %1419 = vmatprep.subr.mxu0 %v92
    %1420 = vmatpush1.msra.mxu0 %v91
    %1421 = vmatprep.subr.mxu0 %v84
    %1422 = vmatpush1.msra.mxu0 %v83
    %1423 = vmatprep.subr.mxu0 %v76
    %1424 = vmatpush1.msra.mxu0 %v75
    %1425 = vmatprep.subr.mxu0 %v324
    %1426 = vmatpush2.msra.mxu0 %v323
    %1427 = vmatprep.subr.mxu0 %v316
    %1428 = vmatpush2.msra.mxu0 %v315
    %1429 = vmatprep.subr.mxu0 %v308
    %1430 = vmatpush2.msra.mxu0 %v307
    %1431 = vmatprep.subr.mxu0 %v300
    %1432 = vmatpush2.msra.mxu0 %v299
    %1433 = vmatprep.subr.mxu0 %v292
    %1434 = vmatpush2.msra.mxu0 %v291
    %1435 = vmatprep.subr.mxu0 %v284
    %1436 = vmatpush2.msra.mxu0 %v283
    %1437 = vmatprep.subr.mxu0 %v276
    %1438 = vmatpush2.msra.mxu0 %v275
    %1439 = vmatprep.subr.mxu0 %v268
    %1440 = vmatpush2.msra.mxu0 %v267
    %1441 = vmatprep.subr.mxu0 %v260
    %1442 = vmatpush2.msra.mxu0 %v259
    %1443 = vmatprep.subr.mxu0 %v252
    %1444 = vmatpush2.msra.mxu0 %v251
    %1445 = vmatprep.subr.mxu0 %v244
    %1446 = vmatpush2.msra.mxu0 %v243
    %1447 = vmatprep.subr.mxu0 %v236
    %1448 = vmatpush2.msra.mxu0 %v235
    %1449 = vmatprep.subr.mxu0 %v228
    %1450 = vmatpush2.msra.mxu0 %v227
    %1451 = vmatprep.subr.mxu0 %v220
    %1452 = vmatpush2.msra.mxu0 %v219
    %1453 = vmatprep.subr.mxu0 %v212
    %1454 = vmatpush2.msra.mxu0 %v211
    %1455 = vmatprep.subr.mxu0 %v204
    %1456 = vmatpush2.msra.mxu0 %v203
    %1457 = vmatprep.mubr.f32.mxu0 %v1152
    %1458 = vmatmul.mubr.f32.gmra.mxu0 %v1151
    %v1459 = vpop.f32.mrf.mxu0
    %v1460 = vadd.f32 %v1178, %v1459
    %v1461 = vpop.f32.mrf.mxu0
    %v1462 = vadd.f32 %v1179, %v1461
    %1463 = vdwg.mxu0
    %v1464 = vadd.f32 %v1247, %v705
    %v1465 = vadd.f32 %v1249, %v709
    %v1466 = vadd.f32 %v1318, %v713
    %v1467 = vadd.f32 %v1320, %v717
    %v1468 = vadd.f32 %v1389, %v721
    %v1469 = vadd.f32 %v1391, %v725
    %v1470 = vadd.f32 %v1460, %v729
    %v1471 = vadd.f32 %v1462, %v733
    %v1472 = vmul.f32 %v1464, 0.5
    %v1473 = vmul.f32 %v1465, 0.5
    %v1474 = vtanh.pop %v1472
    %v1475 = vtanh.pop %v1473
    %v1476 = vmul.f32 %v1474, 0.5
    %v1477 = vmul.f32 %v1475, 0.5
    %v1478 = vadd.f32 %v1476, 0.5
    %v1479 = vadd.f32 %v1477, 0.5
    %v1480 = vmul.f32 %v1466, 0.5
    %v1481 = vmul.f32 %v1467, 0.5
    %v1482 = vtanh.pop %v1480
    %v1483 = vtanh.pop %v1481
    %v1484 = vmul.f32 %v1482, 0.5
    %v1485 = vmul.f32 %v1483, 0.5
    %v1486 = vadd.f32 %v1484, 0.5
    %v1487 = vadd.f32 %v1485, 0.5
    %v1488 = vtanh.pop %v1468
    %v1489 = vtanh.pop %v1469
    %v1490 = vmul.f32 %v1470, 0.5
    %v1491 = vmul.f32 %v1471, 0.5
    %v1492 = vtanh.pop %v1490
    %v1493 = vtanh.pop %v1491
    %v1494 = vmul.f32 %v1492, 0.5
    %v1495 = vmul.f32 %v1493, 0.5
    %v1496 = vadd.f32 %v1494, 0.5
    %v1497 = vadd.f32 %v1495, 0.5
    %v1498 = vmul.f32 %v1486, %v1147
    %v1499 = vmul.f32 %v1487, %v1148
    %v1500 = vmul.f32 %v1478, %v1488
    %v1501 = vmul.f32 %v1479, %v1489
    %v1502 = vadd.f32 %v1498, %v1500
    %v1503 = vadd.f32 %v1499, %v1501
    %v1504 = vtanh.pop %v1502
    %v1505 = vtanh.pop %v1503
    %v1506 = vmul.f32 %v1496, %v1504
    %v1507 = vmul.f32 %v1497, %v1505
    %v1508 = vmul.f32 %v1506, %v332
    %v1509 = vmul.f32 %v1507, %v336
    %v1510 = vsel %vm799, %v1508, 0.0
    %v1511 = vsel %vm799, %v1509, 0.0
    %v1512 = vadd.f32 %v1510, %v1511
    %1513 = vadd.xlane.f32.xlu0 %v1512
    %v1514 = vpop.xlane.xlu0 %1513
    %v1515 = vadd.f32 %v1514, %v344
    %1517 = vset.pattern.permute.xlu0 0
    %1518 = vperm.xlu0 %1517, %v1515
    %v1519 = vpop.permute.xlu0 %1518
    %v1521 = vsel %vm1167, %v1519, %v1166
    %vm1522 = vcmp.eq.s32.totalorder %v348, 3
    %v1523 = vsel %vm1522, %v346, 0.0
    %v1524 = vsel %vm353, %v1523, 0.0
    %1525 = vadd.xlane.f32.xlu0 %v1524
    %v1526 = vpop.xlane.xlu0 %1525
    %v1527 = vmul.f32 %v1526, %v361
    %v1528 = vmul.f32 %v1526, %v365
    %v1529 = vmul.f32 %v1526, %v369
    %v1530 = vmul.f32 %v1526, %v373
    %v1531 = vmul.f32 %v1526, %v377
    %v1532 = vmul.f32 %v1526, %v381
    %v1533 = vmul.f32 %v1526, %v385
    %v1534 = vmul.f32 %v1526, %v389
    %1535 = vmatprep.subr.mxu0 %v190
    %1536 = vmatpush1.msra.mxu0 %v189
    %1537 = vmatprep.subr.mxu0 %v182
    %1538 = vmatpush1.msra.mxu0 %v181
    %1539 = vmatprep.subr.mxu0 %v174
    %1540 = vmatpush1.msra.mxu0 %v173
    %1541 = vmatprep.subr.mxu0 %v166
    %1542 = vmatpush1.msra.mxu0 %v165
    %1543 = vmatprep.subr.mxu0 %v158
    %1544 = vmatpush1.msra.mxu0 %v157
    %1545 = vmatprep.subr.mxu0 %v150
    %1546 = vmatpush1.msra.mxu0 %v149
    %1547 = vmatprep.subr.mxu0 %v142
    %1548 = vmatpush1.msra.mxu0 %v141
    %1549 = vmatprep.subr.mxu0 %v134
    %1550 = vmatpush1.msra.mxu0 %v133
    %1551 = vmatprep.subr.mxu0 %v126
    %1552 = vmatpush1.msra.mxu0 %v125
    %1553 = vmatprep.subr.mxu0 %v118
    %1554 = vmatpush1.msra.mxu0 %v117
    %1555 = vmatprep.subr.mxu0 %v110
    %1556 = vmatpush1.msra.mxu0 %v109
    %1557 = vmatprep.subr.mxu0 %v102
    %1558 = vmatpush1.msra.mxu0 %v101
    %1559 = vmatprep.subr.mxu0 %v94
    %1560 = vmatpush1.msra.mxu0 %v93
    %1561 = vmatprep.subr.mxu0 %v86
    %1562 = vmatpush1.msra.mxu0 %v85
    %1563 = vmatprep.subr.mxu0 %v78
    %1564 = vmatpush1.msra.mxu0 %v77
    %1565 = vmatprep.subr.mxu0 %v70
    %1566 = vmatpush1.msra.mxu0 %v69
    %1567 = vmatprep.subr.mxu0 %v318
    %1568 = vmatpush2.msra.mxu0 %v317
    %1569 = vmatprep.subr.mxu0 %v310
    %1570 = vmatpush2.msra.mxu0 %v309
    %1571 = vmatprep.subr.mxu0 %v302
    %1572 = vmatpush2.msra.mxu0 %v301
    %1573 = vmatprep.subr.mxu0 %v294
    %1574 = vmatpush2.msra.mxu0 %v293
    %1575 = vmatprep.subr.mxu0 %v286
    %1576 = vmatpush2.msra.mxu0 %v285
    %1577 = vmatprep.subr.mxu0 %v278
    %1578 = vmatpush2.msra.mxu0 %v277
    %1579 = vmatprep.subr.mxu0 %v270
    %1580 = vmatpush2.msra.mxu0 %v269
    %1581 = vmatprep.subr.mxu0 %v262
    %1582 = vmatpush2.msra.mxu0 %v261
    %1583 = vmatprep.subr.mxu0 %v254
    %1584 = vmatpush2.msra.mxu0 %v253
    %1585 = vmatprep.subr.mxu0 %v246
    %1586 = vmatpush2.msra.mxu0 %v245
    %1587 = vmatprep.subr.mxu0 %v238
    %1588 = vmatpush2.msra.mxu0 %v237
    %1589 = vmatprep.subr.mxu0 %v230
    %1590 = vmatpush2.msra.mxu0 %v229
    %1591 = vmatprep.subr.mxu0 %v222
    %1592 = vmatpush2.msra.mxu0 %v221
    %1593 = vmatprep.subr.mxu0 %v214
    %1594 = vmatpush2.msra.mxu0 %v213
    %1595 = vmatprep.subr.mxu0 %v206
    %1596 = vmatpush2.msra.mxu0 %v205
    %1597 = vmatprep.subr.mxu0 %v198
    %1598 = vmatpush2.msra.mxu0 %v197
    %1599 = vmatprep.mubr.f32.mxu0 %v1507
    %1600 = vmatmul.mubr.f32.gmra.mxu0 %v1506
    %v1601 = vpop.f32.mrf.mxu0
    %v1602 = vadd.f32 %v1527, %v1601
    %v1603 = vpop.f32.mrf.mxu0
    %v1604 = vadd.f32 %v1528, %v1603
    %1605 = vdwg.mxu0
    %1606 = vmatprep.subr.mxu0 %v192
    %1607 = vmatpush1.msra.mxu0 %v191
    %1608 = vmatprep.subr.mxu0 %v184
    %1609 = vmatpush1.msra.mxu0 %v183
    %1610 = vmatprep.subr.mxu0 %v176
    %1611 = vmatpush1.msra.mxu0 %v175
    %1612 = vmatprep.subr.mxu0 %v168
    %1613 = vmatpush1.msra.mxu0 %v167
    %1614 = vmatprep.subr.mxu0 %v160
    %1615 = vmatpush1.msra.mxu0 %v159
    %1616 = vmatprep.subr.mxu0 %v152
    %1617 = vmatpush1.msra.mxu0 %v151
    %1618 = vmatprep.subr.mxu0 %v144
    %1619 = vmatpush1.msra.mxu0 %v143
    %1620 = vmatprep.subr.mxu0 %v136
    %1621 = vmatpush1.msra.mxu0 %v135
    %1622 = vmatprep.subr.mxu0 %v128
    %1623 = vmatpush1.msra.mxu0 %v127
    %1624 = vmatprep.subr.mxu0 %v120
    %1625 = vmatpush1.msra.mxu0 %v119
    %1626 = vmatprep.subr.mxu0 %v112
    %1627 = vmatpush1.msra.mxu0 %v111
    %1628 = vmatprep.subr.mxu0 %v104
    %1629 = vmatpush1.msra.mxu0 %v103
    %1630 = vmatprep.subr.mxu0 %v96
    %1631 = vmatpush1.msra.mxu0 %v95
    %1632 = vmatprep.subr.mxu0 %v88
    %1633 = vmatpush1.msra.mxu0 %v87
    %1634 = vmatprep.subr.mxu0 %v80
    %1635 = vmatpush1.msra.mxu0 %v79
    %1636 = vmatprep.subr.mxu0 %v72
    %1637 = vmatpush1.msra.mxu0 %v71
    %1638 = vmatprep.subr.mxu0 %v320
    %1639 = vmatpush2.msra.mxu0 %v319
    %1640 = vmatprep.subr.mxu0 %v312
    %1641 = vmatpush2.msra.mxu0 %v311
    %1642 = vmatprep.subr.mxu0 %v304
    %1643 = vmatpush2.msra.mxu0 %v303
    %1644 = vmatprep.subr.mxu0 %v296
    %1645 = vmatpush2.msra.mxu0 %v295
    %1646 = vmatprep.subr.mxu0 %v288
    %1647 = vmatpush2.msra.mxu0 %v287
    %1648 = vmatprep.subr.mxu0 %v280
    %1649 = vmatpush2.msra.mxu0 %v279
    %1650 = vmatprep.subr.mxu0 %v272
    %1651 = vmatpush2.msra.mxu0 %v271
    %1652 = vmatprep.subr.mxu0 %v264
    %1653 = vmatpush2.msra.mxu0 %v263
    %1654 = vmatprep.subr.mxu0 %v256
    %1655 = vmatpush2.msra.mxu0 %v255
    %1656 = vmatprep.subr.mxu0 %v248
    %1657 = vmatpush2.msra.mxu0 %v247
    %1658 = vmatprep.subr.mxu0 %v240
    %1659 = vmatpush2.msra.mxu0 %v239
    %1660 = vmatprep.subr.mxu0 %v232
    %1661 = vmatpush2.msra.mxu0 %v231
    %1662 = vmatprep.subr.mxu0 %v224
    %1663 = vmatpush2.msra.mxu0 %v223
    %1664 = vmatprep.subr.mxu0 %v216
    %1665 = vmatpush2.msra.mxu0 %v215
    %1666 = vmatprep.subr.mxu0 %v208
    %1667 = vmatpush2.msra.mxu0 %v207
    %1668 = vmatprep.subr.mxu0 %v200
    %1669 = vmatpush2.msra.mxu0 %v199
    %1670 = vmatprep.mubr.f32.mxu0 %v1507
    %1671 = vmatmul.mubr.f32.gmra.mxu0 %v1506
    %v1672 = vpop.f32.mrf.mxu0
    %v1673 = vadd.f32 %v1529, %v1672
    %v1674 = vpop.f32.mrf.mxu0
    %v1675 = vadd.f32 %v1530, %v1674
    %1676 = vdwg.mxu0
    %1677 = vmatprep.subr.mxu0 %v194
    %1678 = vmatpush1.msra.mxu0 %v193
    %1679 = vmatprep.subr.mxu0 %v186
    %1680 = vmatpush1.msra.mxu0 %v185
    %1681 = vmatprep.subr.mxu0 %v178
    %1682 = vmatpush1.msra.mxu0 %v177
    %1683 = vmatprep.subr.mxu0 %v170
    %1684 = vmatpush1.msra.mxu0 %v169
    %1685 = vmatprep.subr.mxu0 %v162
    %1686 = vmatpush1.msra.mxu0 %v161
    %1687 = vmatprep.subr.mxu0 %v154
    %1688 = vmatpush1.msra.mxu0 %v153
    %1689 = vmatprep.subr.mxu0 %v146
    %1690 = vmatpush1.msra.mxu0 %v145
    %1691 = vmatprep.subr.mxu0 %v138
    %1692 = vmatpush1.msra.mxu0 %v137
    %1693 = vmatprep.subr.mxu0 %v130
    %1694 = vmatpush1.msra.mxu0 %v129
    %1695 = vmatprep.subr.mxu0 %v122
    %1696 = vmatpush1.msra.mxu0 %v121
    %1697 = vmatprep.subr.mxu0 %v114
    %1698 = vmatpush1.msra.mxu0 %v113
    %1699 = vmatprep.subr.mxu0 %v106
    %1700 = vmatpush1.msra.mxu0 %v105
    %1701 = vmatprep.subr.mxu0 %v98
    %1702 = vmatpush1.msra.mxu0 %v97
    %1703 = vmatprep.subr.mxu0 %v90
    %1704 = vmatpush1.msra.mxu0 %v89
    %1705 = vmatprep.subr.mxu0 %v82
    %1706 = vmatpush1.msra.mxu0 %v81
    %1707 = vmatprep.subr.mxu0 %v74
    %1708 = vmatpush1.msra.mxu0 %v73
    %1709 = vmatprep.subr.mxu0 %v322
    %1710 = vmatpush2.msra.mxu0 %v321
    %1711 = vmatprep.subr.mxu0 %v314
    %1712 = vmatpush2.msra.mxu0 %v313
    %1713 = vmatprep.subr.mxu0 %v306
    %1714 = vmatpush2.msra.mxu0 %v305
    %1715 = vmatprep.subr.mxu0 %v298
    %1716 = vmatpush2.msra.mxu0 %v297
    %1717 = vmatprep.subr.mxu0 %v290
    %1718 = vmatpush2.msra.mxu0 %v289
    %1719 = vmatprep.subr.mxu0 %v282
    %1720 = vmatpush2.msra.mxu0 %v281
    %1721 = vmatprep.subr.mxu0 %v274
    %1722 = vmatpush2.msra.mxu0 %v273
    %1723 = vmatprep.subr.mxu0 %v266
    %1724 = vmatpush2.msra.mxu0 %v265
    %1725 = vmatprep.subr.mxu0 %v258
    %1726 = vmatpush2.msra.mxu0 %v257
    %1727 = vmatprep.subr.mxu0 %v250
    %1728 = vmatpush2.msra.mxu0 %v249
    %1729 = vmatprep.subr.mxu0 %v242
    %1730 = vmatpush2.msra.mxu0 %v241
    %1731 = vmatprep.subr.mxu0 %v234
    %1732 = vmatpush2.msra.mxu0 %v233
    %1733 = vmatprep.subr.mxu0 %v226
    %1734 = vmatpush2.msra.mxu0 %v225
    %1735 = vmatprep.subr.mxu0 %v218
    %1736 = vmatpush2.msra.mxu0 %v217
    %1737 = vmatprep.subr.mxu0 %v210
    %1738 = vmatpush2.msra.mxu0 %v209
    %1739 = vmatprep.subr.mxu0 %v202
    %1740 = vmatpush2.msra.mxu0 %v201
    %1741 = vmatprep.mubr.f32.mxu0 %v1507
    %1742 = vmatmul.mubr.f32.gmra.mxu0 %v1506
    %v1743 = vpop.f32.mrf.mxu0
    %v1744 = vadd.f32 %v1531, %v1743
    %v1745 = vpop.f32.mrf.mxu0
    %v1746 = vadd.f32 %v1532, %v1745
    %1747 = vdwg.mxu0
    %1748 = vmatprep.subr.mxu0 %v196
    %1749 = vmatpush1.msra.mxu0 %v195
    %1750 = vmatprep.subr.mxu0 %v188
    %1751 = vmatpush1.msra.mxu0 %v187
    %1752 = vmatprep.subr.mxu0 %v180
    %1753 = vmatpush1.msra.mxu0 %v179
    %1754 = vmatprep.subr.mxu0 %v172
    %1755 = vmatpush1.msra.mxu0 %v171
    %1756 = vmatprep.subr.mxu0 %v164
    %1757 = vmatpush1.msra.mxu0 %v163
    %1758 = vmatprep.subr.mxu0 %v156
    %1759 = vmatpush1.msra.mxu0 %v155
    %1760 = vmatprep.subr.mxu0 %v148
    %1761 = vmatpush1.msra.mxu0 %v147
    %1762 = vmatprep.subr.mxu0 %v140
    %1763 = vmatpush1.msra.mxu0 %v139
    %1764 = vmatprep.subr.mxu0 %v132
    %1765 = vmatpush1.msra.mxu0 %v131
    %1766 = vmatprep.subr.mxu0 %v124
    %1767 = vmatpush1.msra.mxu0 %v123
    %1768 = vmatprep.subr.mxu0 %v116
    %1769 = vmatpush1.msra.mxu0 %v115
    %1770 = vmatprep.subr.mxu0 %v108
    %1771 = vmatpush1.msra.mxu0 %v107
    %1772 = vmatprep.subr.mxu0 %v100
    %1773 = vmatpush1.msra.mxu0 %v99
    %1774 = vmatprep.subr.mxu0 %v92
    %1775 = vmatpush1.msra.mxu0 %v91
    %1776 = vmatprep.subr.mxu0 %v84
    %1777 = vmatpush1.msra.mxu0 %v83
    %1778 = vmatprep.subr.mxu0 %v76
    %1779 = vmatpush1.msra.mxu0 %v75
    %1780 = vmatprep.subr.mxu0 %v324
    %1781 = vmatpush2.msra.mxu0 %v323
    %1782 = vmatprep.subr.mxu0 %v316
    %1783 = vmatpush2.msra.mxu0 %v315
    %1784 = vmatprep.subr.mxu0 %v308
    %1785 = vmatpush2.msra.mxu0 %v307
    %1786 = vmatprep.subr.mxu0 %v300
    %1787 = vmatpush2.msra.mxu0 %v299
    %1788 = vmatprep.subr.mxu0 %v292
    %1789 = vmatpush2.msra.mxu0 %v291
    %1790 = vmatprep.subr.mxu0 %v284
    %1791 = vmatpush2.msra.mxu0 %v283
    %1792 = vmatprep.subr.mxu0 %v276
    %1793 = vmatpush2.msra.mxu0 %v275
    %1794 = vmatprep.subr.mxu0 %v268
    %1795 = vmatpush2.msra.mxu0 %v267
    %1796 = vmatprep.subr.mxu0 %v260
    %1797 = vmatpush2.msra.mxu0 %v259
    %1798 = vmatprep.subr.mxu0 %v252
    %1799 = vmatpush2.msra.mxu0 %v251
    %1800 = vmatprep.subr.mxu0 %v244
    %1801 = vmatpush2.msra.mxu0 %v243
    %1802 = vmatprep.subr.mxu0 %v236
    %1803 = vmatpush2.msra.mxu0 %v235
    %1804 = vmatprep.subr.mxu0 %v228
    %1805 = vmatpush2.msra.mxu0 %v227
    %1806 = vmatprep.subr.mxu0 %v220
    %1807 = vmatpush2.msra.mxu0 %v219
    %1808 = vmatprep.subr.mxu0 %v212
    %1809 = vmatpush2.msra.mxu0 %v211
    %1810 = vmatprep.subr.mxu0 %v204
    %1811 = vmatpush2.msra.mxu0 %v203
    %1812 = vmatprep.mubr.f32.mxu0 %v1507
    %1813 = vmatmul.mubr.f32.gmra.mxu0 %v1506
    %v1814 = vpop.f32.mrf.mxu0
    %v1815 = vadd.f32 %v1533, %v1814
    %v1816 = vpop.f32.mrf.mxu0
    %v1817 = vadd.f32 %v1534, %v1816
    %1818 = vdwg.mxu0
    %v1819 = vadd.f32 %v1602, %v705
    %v1820 = vadd.f32 %v1604, %v709
    %v1821 = vadd.f32 %v1673, %v713
    %v1822 = vadd.f32 %v1675, %v717
    %v1823 = vadd.f32 %v1744, %v721
    %v1824 = vadd.f32 %v1746, %v725
    %v1825 = vadd.f32 %v1815, %v729
    %v1826 = vadd.f32 %v1817, %v733
    %v1827 = vmul.f32 %v1819, 0.5
    %v1828 = vmul.f32 %v1820, 0.5
    %v1829 = vtanh.pop %v1827
    %v1830 = vtanh.pop %v1828
    %v1831 = vmul.f32 %v1829, 0.5
    %v1832 = vmul.f32 %v1830, 0.5
    %v1833 = vadd.f32 %v1831, 0.5
    %v1834 = vadd.f32 %v1832, 0.5
    %v1835 = vmul.f32 %v1821, 0.5
    %v1836 = vmul.f32 %v1822, 0.5
    %v1837 = vtanh.pop %v1835
    %v1838 = vtanh.pop %v1836
    %v1839 = vmul.f32 %v1837, 0.5
    %v1840 = vmul.f32 %v1838, 0.5
    %v1841 = vadd.f32 %v1839, 0.5
    %v1842 = vadd.f32 %v1840, 0.5
    %v1843 = vtanh.pop %v1823
    %v1844 = vtanh.pop %v1824
    %v1845 = vmul.f32 %v1825, 0.5
    %v1846 = vmul.f32 %v1826, 0.5
    %v1847 = vtanh.pop %v1845
    %v1848 = vtanh.pop %v1846
    %v1849 = vmul.f32 %v1847, 0.5
    %v1850 = vmul.f32 %v1848, 0.5
    %v1851 = vadd.f32 %v1849, 0.5
    %v1852 = vadd.f32 %v1850, 0.5
    %v1853 = vmul.f32 %v1841, %v1502
    %v1854 = vmul.f32 %v1842, %v1503
    %v1855 = vmul.f32 %v1833, %v1843
    %v1856 = vmul.f32 %v1834, %v1844
    %v1857 = vadd.f32 %v1853, %v1855
    %v1858 = vadd.f32 %v1854, %v1856
    %v1859 = vtanh.pop %v1857
    %v1860 = vtanh.pop %v1858
    %v1861 = vmul.f32 %v1851, %v1859
    %v1862 = vmul.f32 %v1852, %v1860
    %v1863 = vmul.f32 %v1861, %v332
    %v1864 = vmul.f32 %v1862, %v336
    %v1865 = vsel %vm799, %v1863, 0.0
    %v1866 = vsel %vm799, %v1864, 0.0
    %v1867 = vadd.f32 %v1865, %v1866
    %1868 = vadd.xlane.f32.xlu0 %v1867
    %v1869 = vpop.xlane.xlu0 %1868
    %v1870 = vadd.f32 %v1869, %v344
    %1872 = vset.pattern.permute.xlu0 0
    %1873 = vperm.xlu0 %1872, %v1870
    %v1874 = vpop.permute.xlu0 %1873
    %v1876 = vsel %vm1522, %v1874, %v1521
    %vm1877 = vcmp.eq.s32.totalorder %v348, 4
    %v1878 = vsel %vm1877, %v346, 0.0
    %v1879 = vsel %vm353, %v1878, 0.0
    %1880 = vadd.xlane.f32.xlu0 %v1879
    %v1881 = vpop.xlane.xlu0 %1880
    %v1882 = vmul.f32 %v1881, %v361
    %v1883 = vmul.f32 %v1881, %v365
    %v1884 = vmul.f32 %v1881, %v369
    %v1885 = vmul.f32 %v1881, %v373
    %v1886 = vmul.f32 %v1881, %v377
    %v1887 = vmul.f32 %v1881, %v381
    %v1888 = vmul.f32 %v1881, %v385
    %v1889 = vmul.f32 %v1881, %v389
    %1890 = vmatprep.subr.mxu0 %v190
    %1891 = vmatpush1.msra.mxu0 %v189
    %1892 = vmatprep.subr.mxu0 %v182
    %1893 = vmatpush1.msra.mxu0 %v181
    %1894 = vmatprep.subr.mxu0 %v174
    %1895 = vmatpush1.msra.mxu0 %v173
    %1896 = vmatprep.subr.mxu0 %v166
    %1897 = vmatpush1.msra.mxu0 %v165
    %1898 = vmatprep.subr.mxu0 %v158
    %1899 = vmatpush1.msra.mxu0 %v157
    %1900 = vmatprep.subr.mxu0 %v150
    %1901 = vmatpush1.msra.mxu0 %v149
    %1902 = vmatprep.subr.mxu0 %v142
    %1903 = vmatpush1.msra.mxu0 %v141
    %1904 = vmatprep.subr.mxu0 %v134
    %1905 = vmatpush1.msra.mxu0 %v133
    %1906 = vmatprep.subr.mxu0 %v126
    %1907 = vmatpush1.msra.mxu0 %v125
    %1908 = vmatprep.subr.mxu0 %v118
    %1909 = vmatpush1.msra.mxu0 %v117
    %1910 = vmatprep.subr.mxu0 %v110
    %1911 = vmatpush1.msra.mxu0 %v109
    %1912 = vmatprep.subr.mxu0 %v102
    %1913 = vmatpush1.msra.mxu0 %v101
    %1914 = vmatprep.subr.mxu0 %v94
    %1915 = vmatpush1.msra.mxu0 %v93
    %1916 = vmatprep.subr.mxu0 %v86
    %1917 = vmatpush1.msra.mxu0 %v85
    %1918 = vmatprep.subr.mxu0 %v78
    %1919 = vmatpush1.msra.mxu0 %v77
    %1920 = vmatprep.subr.mxu0 %v70
    %1921 = vmatpush1.msra.mxu0 %v69
    %1922 = vmatprep.subr.mxu0 %v318
    %1923 = vmatpush2.msra.mxu0 %v317
    %1924 = vmatprep.subr.mxu0 %v310
    %1925 = vmatpush2.msra.mxu0 %v309
    %1926 = vmatprep.subr.mxu0 %v302
    %1927 = vmatpush2.msra.mxu0 %v301
    %1928 = vmatprep.subr.mxu0 %v294
    %1929 = vmatpush2.msra.mxu0 %v293
    %1930 = vmatprep.subr.mxu0 %v286
    %1931 = vmatpush2.msra.mxu0 %v285
    %1932 = vmatprep.subr.mxu0 %v278
    %1933 = vmatpush2.msra.mxu0 %v277
    %1934 = vmatprep.subr.mxu0 %v270
    %1935 = vmatpush2.msra.mxu0 %v269
    %1936 = vmatprep.subr.mxu0 %v262
    %1937 = vmatpush2.msra.mxu0 %v261
    %1938 = vmatprep.subr.mxu0 %v254
    %1939 = vmatpush2.msra.mxu0 %v253
    %1940 = vmatprep.subr.mxu0 %v246
    %1941 = vmatpush2.msra.mxu0 %v245
    %1942 = vmatprep.subr.mxu0 %v238
    %1943 = vmatpush2.msra.mxu0 %v237
    %1944 = vmatprep.subr.mxu0 %v230
    %1945 = vmatpush2.msra.mxu0 %v229
    %1946 = vmatprep.subr.mxu0 %v222
    %1947 = vmatpush2.msra.mxu0 %v221
    %1948 = vmatprep.subr.mxu0 %v214
    %1949 = vmatpush2.msra.mxu0 %v213
    %1950 = vmatprep.subr.mxu0 %v206
    %1951 = vmatpush2.msra.mxu0 %v205
    %1952 = vmatprep.subr.mxu0 %v198
    %1953 = vmatpush2.msra.mxu0 %v197
    %1954 = vmatprep.mubr.f32.mxu0 %v1862
    %1955 = vmatmul.mubr.f32.gmra.mxu0 %v1861
    %v1956 = vpop.f32.mrf.mxu0
    %v1957 = vadd.f32 %v1882, %v1956
    %v1958 = vpop.f32.mrf.mxu0
    %v1959 = vadd.f32 %v1883, %v1958
    %1960 = vdwg.mxu0
    %1961 = vmatprep.subr.mxu0 %v192
    %1962 = vmatpush1.msra.mxu0 %v191
    %1963 = vmatprep.subr.mxu0 %v184
    %1964 = vmatpush1.msra.mxu0 %v183
    %1965 = vmatprep.subr.mxu0 %v176
    %1966 = vmatpush1.msra.mxu0 %v175
    %1967 = vmatprep.subr.mxu0 %v168
    %1968 = vmatpush1.msra.mxu0 %v167
    %1969 = vmatprep.subr.mxu0 %v160
    %1970 = vmatpush1.msra.mxu0 %v159
    %1971 = vmatprep.subr.mxu0 %v152
    %1972 = vmatpush1.msra.mxu0 %v151
    %1973 = vmatprep.subr.mxu0 %v144
    %1974 = vmatpush1.msra.mxu0 %v143
    %1975 = vmatprep.subr.mxu0 %v136
    %1976 = vmatpush1.msra.mxu0 %v135
    %1977 = vmatprep.subr.mxu0 %v128
    %1978 = vmatpush1.msra.mxu0 %v127
    %1979 = vmatprep.subr.mxu0 %v120
    %1980 = vmatpush1.msra.mxu0 %v119
    %1981 = vmatprep.subr.mxu0 %v112
    %1982 = vmatpush1.msra.mxu0 %v111
    %1983 = vmatprep.subr.mxu0 %v104
    %1984 = vmatpush1.msra.mxu0 %v103
    %1985 = vmatprep.subr.mxu0 %v96
    %1986 = vmatpush1.msra.mxu0 %v95
    %1987 = vmatprep.subr.mxu0 %v88
    %1988 = vmatpush1.msra.mxu0 %v87
    %1989 = vmatprep.subr.mxu0 %v80
    %1990 = vmatpush1.msra.mxu0 %v79
    %1991 = vmatprep.subr.mxu0 %v72
    %1992 = vmatpush1.msra.mxu0 %v71
    %1993 = vmatprep.subr.mxu0 %v320
    %1994 = vmatpush2.msra.mxu0 %v319
    %1995 = vmatprep.subr.mxu0 %v312
    %1996 = vmatpush2.msra.mxu0 %v311
    %1997 = vmatprep.subr.mxu0 %v304
    %1998 = vmatpush2.msra.mxu0 %v303
    %1999 = vmatprep.subr.mxu0 %v296
    %2000 = vmatpush2.msra.mxu0 %v295
    %2001 = vmatprep.subr.mxu0 %v288
    %2002 = vmatpush2.msra.mxu0 %v287
    %2003 = vmatprep.subr.mxu0 %v280
    %2004 = vmatpush2.msra.mxu0 %v279
    %2005 = vmatprep.subr.mxu0 %v272
    %2006 = vmatpush2.msra.mxu0 %v271
    %2007 = vmatprep.subr.mxu0 %v264
    %2008 = vmatpush2.msra.mxu0 %v263
    %2009 = vmatprep.subr.mxu0 %v256
    %2010 = vmatpush2.msra.mxu0 %v255
    %2011 = vmatprep.subr.mxu0 %v248
    %2012 = vmatpush2.msra.mxu0 %v247
    %2013 = vmatprep.subr.mxu0 %v240
    %2014 = vmatpush2.msra.mxu0 %v239
    %2015 = vmatprep.subr.mxu0 %v232
    %2016 = vmatpush2.msra.mxu0 %v231
    %2017 = vmatprep.subr.mxu0 %v224
    %2018 = vmatpush2.msra.mxu0 %v223
    %2019 = vmatprep.subr.mxu0 %v216
    %2020 = vmatpush2.msra.mxu0 %v215
    %2021 = vmatprep.subr.mxu0 %v208
    %2022 = vmatpush2.msra.mxu0 %v207
    %2023 = vmatprep.subr.mxu0 %v200
    %2024 = vmatpush2.msra.mxu0 %v199
    %2025 = vmatprep.mubr.f32.mxu0 %v1862
    %2026 = vmatmul.mubr.f32.gmra.mxu0 %v1861
    %v2027 = vpop.f32.mrf.mxu0
    %v2028 = vadd.f32 %v1884, %v2027
    %v2029 = vpop.f32.mrf.mxu0
    %v2030 = vadd.f32 %v1885, %v2029
    %2031 = vdwg.mxu0
    %2032 = vmatprep.subr.mxu0 %v194
    %2033 = vmatpush1.msra.mxu0 %v193
    %2034 = vmatprep.subr.mxu0 %v186
    %2035 = vmatpush1.msra.mxu0 %v185
    %2036 = vmatprep.subr.mxu0 %v178
    %2037 = vmatpush1.msra.mxu0 %v177
    %2038 = vmatprep.subr.mxu0 %v170
    %2039 = vmatpush1.msra.mxu0 %v169
    %2040 = vmatprep.subr.mxu0 %v162
    %2041 = vmatpush1.msra.mxu0 %v161
    %2042 = vmatprep.subr.mxu0 %v154
    %2043 = vmatpush1.msra.mxu0 %v153
    %2044 = vmatprep.subr.mxu0 %v146
    %2045 = vmatpush1.msra.mxu0 %v145
    %2046 = vmatprep.subr.mxu0 %v138
    %2047 = vmatpush1.msra.mxu0 %v137
    %2048 = vmatprep.subr.mxu0 %v130
    %2049 = vmatpush1.msra.mxu0 %v129
    %2050 = vmatprep.subr.mxu0 %v122
    %2051 = vmatpush1.msra.mxu0 %v121
    %2052 = vmatprep.subr.mxu0 %v114
    %2053 = vmatpush1.msra.mxu0 %v113
    %2054 = vmatprep.subr.mxu0 %v106
    %2055 = vmatpush1.msra.mxu0 %v105
    %2056 = vmatprep.subr.mxu0 %v98
    %2057 = vmatpush1.msra.mxu0 %v97
    %2058 = vmatprep.subr.mxu0 %v90
    %2059 = vmatpush1.msra.mxu0 %v89
    %2060 = vmatprep.subr.mxu0 %v82
    %2061 = vmatpush1.msra.mxu0 %v81
    %2062 = vmatprep.subr.mxu0 %v74
    %2063 = vmatpush1.msra.mxu0 %v73
    %2064 = vmatprep.subr.mxu0 %v322
    %2065 = vmatpush2.msra.mxu0 %v321
    %2066 = vmatprep.subr.mxu0 %v314
    %2067 = vmatpush2.msra.mxu0 %v313
    %2068 = vmatprep.subr.mxu0 %v306
    %2069 = vmatpush2.msra.mxu0 %v305
    %2070 = vmatprep.subr.mxu0 %v298
    %2071 = vmatpush2.msra.mxu0 %v297
    %2072 = vmatprep.subr.mxu0 %v290
    %2073 = vmatpush2.msra.mxu0 %v289
    %2074 = vmatprep.subr.mxu0 %v282
    %2075 = vmatpush2.msra.mxu0 %v281
    %2076 = vmatprep.subr.mxu0 %v274
    %2077 = vmatpush2.msra.mxu0 %v273
    %2078 = vmatprep.subr.mxu0 %v266
    %2079 = vmatpush2.msra.mxu0 %v265
    %2080 = vmatprep.subr.mxu0 %v258
    %2081 = vmatpush2.msra.mxu0 %v257
    %2082 = vmatprep.subr.mxu0 %v250
    %2083 = vmatpush2.msra.mxu0 %v249
    %2084 = vmatprep.subr.mxu0 %v242
    %2085 = vmatpush2.msra.mxu0 %v241
    %2086 = vmatprep.subr.mxu0 %v234
    %2087 = vmatpush2.msra.mxu0 %v233
    %2088 = vmatprep.subr.mxu0 %v226
    %2089 = vmatpush2.msra.mxu0 %v225
    %2090 = vmatprep.subr.mxu0 %v218
    %2091 = vmatpush2.msra.mxu0 %v217
    %2092 = vmatprep.subr.mxu0 %v210
    %2093 = vmatpush2.msra.mxu0 %v209
    %2094 = vmatprep.subr.mxu0 %v202
    %2095 = vmatpush2.msra.mxu0 %v201
    %2096 = vmatprep.mubr.f32.mxu0 %v1862
    %2097 = vmatmul.mubr.f32.gmra.mxu0 %v1861
    %v2098 = vpop.f32.mrf.mxu0
    %v2099 = vadd.f32 %v1886, %v2098
    %v2100 = vpop.f32.mrf.mxu0
    %v2101 = vadd.f32 %v1887, %v2100
    %2102 = vdwg.mxu0
    %2103 = vmatprep.subr.mxu0 %v196
    %2104 = vmatpush1.msra.mxu0 %v195
    %2105 = vmatprep.subr.mxu0 %v188
    %2106 = vmatpush1.msra.mxu0 %v187
    %2107 = vmatprep.subr.mxu0 %v180
    %2108 = vmatpush1.msra.mxu0 %v179
    %2109 = vmatprep.subr.mxu0 %v172
    %2110 = vmatpush1.msra.mxu0 %v171
    %2111 = vmatprep.subr.mxu0 %v164
    %2112 = vmatpush1.msra.mxu0 %v163
    %2113 = vmatprep.subr.mxu0 %v156
    %2114 = vmatpush1.msra.mxu0 %v155
    %2115 = vmatprep.subr.mxu0 %v148
    %2116 = vmatpush1.msra.mxu0 %v147
    %2117 = vmatprep.subr.mxu0 %v140
    %2118 = vmatpush1.msra.mxu0 %v139
    %2119 = vmatprep.subr.mxu0 %v132
    %2120 = vmatpush1.msra.mxu0 %v131
    %2121 = vmatprep.subr.mxu0 %v124
    %2122 = vmatpush1.msra.mxu0 %v123
    %2123 = vmatprep.subr.mxu0 %v116
    %2124 = vmatpush1.msra.mxu0 %v115
    %2125 = vmatprep.subr.mxu0 %v108
    %2126 = vmatpush1.msra.mxu0 %v107
    %2127 = vmatprep.subr.mxu0 %v100
    %2128 = vmatpush1.msra.mxu0 %v99
    %2129 = vmatprep.subr.mxu0 %v92
    %2130 = vmatpush1.msra.mxu0 %v91
    %2131 = vmatprep.subr.mxu0 %v84
    %2132 = vmatpush1.msra.mxu0 %v83
    %2133 = vmatprep.subr.mxu0 %v76
    %2134 = vmatpush1.msra.mxu0 %v75
    %2135 = vmatprep.subr.mxu0 %v324
    %2136 = vmatpush2.msra.mxu0 %v323
    %2137 = vmatprep.subr.mxu0 %v316
    %2138 = vmatpush2.msra.mxu0 %v315
    %2139 = vmatprep.subr.mxu0 %v308
    %2140 = vmatpush2.msra.mxu0 %v307
    %2141 = vmatprep.subr.mxu0 %v300
    %2142 = vmatpush2.msra.mxu0 %v299
    %2143 = vmatprep.subr.mxu0 %v292
    %2144 = vmatpush2.msra.mxu0 %v291
    %2145 = vmatprep.subr.mxu0 %v284
    %2146 = vmatpush2.msra.mxu0 %v283
    %2147 = vmatprep.subr.mxu0 %v276
    %2148 = vmatpush2.msra.mxu0 %v275
    %2149 = vmatprep.subr.mxu0 %v268
    %2150 = vmatpush2.msra.mxu0 %v267
    %2151 = vmatprep.subr.mxu0 %v260
    %2152 = vmatpush2.msra.mxu0 %v259
    %2153 = vmatprep.subr.mxu0 %v252
    %2154 = vmatpush2.msra.mxu0 %v251
    %2155 = vmatprep.subr.mxu0 %v244
    %2156 = vmatpush2.msra.mxu0 %v243
    %2157 = vmatprep.subr.mxu0 %v236
    %2158 = vmatpush2.msra.mxu0 %v235
    %2159 = vmatprep.subr.mxu0 %v228
    %2160 = vmatpush2.msra.mxu0 %v227
    %2161 = vmatprep.subr.mxu0 %v220
    %2162 = vmatpush2.msra.mxu0 %v219
    %2163 = vmatprep.subr.mxu0 %v212
    %2164 = vmatpush2.msra.mxu0 %v211
    %2165 = vmatprep.subr.mxu0 %v204
    %2166 = vmatpush2.msra.mxu0 %v203
    %2167 = vmatprep.mubr.f32.mxu0 %v1862
    %2168 = vmatmul.mubr.f32.gmra.mxu0 %v1861
    %v2169 = vpop.f32.mrf.mxu0
    %v2170 = vadd.f32 %v1888, %v2169
    %v2171 = vpop.f32.mrf.mxu0
    %v2172 = vadd.f32 %v1889, %v2171
    %2173 = vdwg.mxu0
    %v2174 = vadd.f32 %v1957, %v705
    %v2175 = vadd.f32 %v1959, %v709
    %v2176 = vadd.f32 %v2028, %v713
    %v2177 = vadd.f32 %v2030, %v717
    %v2178 = vadd.f32 %v2099, %v721
    %v2179 = vadd.f32 %v2101, %v725
    %v2180 = vadd.f32 %v2170, %v729
    %v2181 = vadd.f32 %v2172, %v733
    %v2182 = vmul.f32 %v2174, 0.5
    %v2183 = vmul.f32 %v2175, 0.5
    %v2184 = vtanh.pop %v2182
    %v2185 = vtanh.pop %v2183
    %v2186 = vmul.f32 %v2184, 0.5
    %v2187 = vmul.f32 %v2185, 0.5
    %v2188 = vadd.f32 %v2186, 0.5
    %v2189 = vadd.f32 %v2187, 0.5
    %v2190 = vmul.f32 %v2176, 0.5
    %v2191 = vmul.f32 %v2177, 0.5
    %v2192 = vtanh.pop %v2190
    %v2193 = vtanh.pop %v2191
    %v2194 = vmul.f32 %v2192, 0.5
    %v2195 = vmul.f32 %v2193, 0.5
    %v2196 = vadd.f32 %v2194, 0.5
    %v2197 = vadd.f32 %v2195, 0.5
    %v2198 = vtanh.pop %v2178
    %v2199 = vtanh.pop %v2179
    %v2200 = vmul.f32 %v2180, 0.5
    %v2201 = vmul.f32 %v2181, 0.5
    %v2202 = vtanh.pop %v2200
    %v2203 = vtanh.pop %v2201
    %v2204 = vmul.f32 %v2202, 0.5
    %v2205 = vmul.f32 %v2203, 0.5
    %v2206 = vadd.f32 %v2204, 0.5
    %v2207 = vadd.f32 %v2205, 0.5
    %v2208 = vmul.f32 %v2196, %v1857
    %v2209 = vmul.f32 %v2197, %v1858
    %v2210 = vmul.f32 %v2188, %v2198
    %v2211 = vmul.f32 %v2189, %v2199
    %v2212 = vadd.f32 %v2208, %v2210
    %v2213 = vadd.f32 %v2209, %v2211
    %v2214 = vtanh.pop %v2212
    %v2215 = vtanh.pop %v2213
    %v2216 = vmul.f32 %v2206, %v2214
    %v2217 = vmul.f32 %v2207, %v2215
    %v2218 = vmul.f32 %v2216, %v332
    %v2219 = vmul.f32 %v2217, %v336
    %v2220 = vsel %vm799, %v2218, 0.0
    %v2221 = vsel %vm799, %v2219, 0.0
    %v2222 = vadd.f32 %v2220, %v2221
    %2223 = vadd.xlane.f32.xlu0 %v2222
    %v2224 = vpop.xlane.xlu0 %2223
    %v2225 = vadd.f32 %v2224, %v344
    %2227 = vset.pattern.permute.xlu0 0
    %2228 = vperm.xlu0 %2227, %v2225
    %v2229 = vpop.permute.xlu0 %2228
    %v2231 = vsel %vm1877, %v2229, %v1876
    %vm2232 = vcmp.eq.s32.totalorder %v348, 5
    %v2233 = vsel %vm2232, %v346, 0.0
    %v2234 = vsel %vm353, %v2233, 0.0
    %2235 = vadd.xlane.f32.xlu0 %v2234
    %v2236 = vpop.xlane.xlu0 %2235
    %v2237 = vmul.f32 %v2236, %v361
    %v2238 = vmul.f32 %v2236, %v365
    %v2239 = vmul.f32 %v2236, %v369
    %v2240 = vmul.f32 %v2236, %v373
    %v2241 = vmul.f32 %v2236, %v377
    %v2242 = vmul.f32 %v2236, %v381
    %v2243 = vmul.f32 %v2236, %v385
    %v2244 = vmul.f32 %v2236, %v389
    %2245 = vmatprep.subr.mxu0 %v190
    %2246 = vmatpush1.msra.mxu0 %v189
    %2247 = vmatprep.subr.mxu0 %v182
    %2248 = vmatpush1.msra.mxu0 %v181
    %2249 = vmatprep.subr.mxu0 %v174
    %2250 = vmatpush1.msra.mxu0 %v173
    %2251 = vmatprep.subr.mxu0 %v166
    %2252 = vmatpush1.msra.mxu0 %v165
    %2253 = vmatprep.subr.mxu0 %v158
    %2254 = vmatpush1.msra.mxu0 %v157
    %2255 = vmatprep.subr.mxu0 %v150
    %2256 = vmatpush1.msra.mxu0 %v149
    %2257 = vmatprep.subr.mxu0 %v142
    %2258 = vmatpush1.msra.mxu0 %v141
    %2259 = vmatprep.subr.mxu0 %v134
    %2260 = vmatpush1.msra.mxu0 %v133
    %2261 = vmatprep.subr.mxu0 %v126
    %2262 = vmatpush1.msra.mxu0 %v125
    %2263 = vmatprep.subr.mxu0 %v118
    %2264 = vmatpush1.msra.mxu0 %v117
    %2265 = vmatprep.subr.mxu0 %v110
    %2266 = vmatpush1.msra.mxu0 %v109
    %2267 = vmatprep.subr.mxu0 %v102
    %2268 = vmatpush1.msra.mxu0 %v101
    %2269 = vmatprep.subr.mxu0 %v94
    %2270 = vmatpush1.msra.mxu0 %v93
    %2271 = vmatprep.subr.mxu0 %v86
    %2272 = vmatpush1.msra.mxu0 %v85
    %2273 = vmatprep.subr.mxu0 %v78
    %2274 = vmatpush1.msra.mxu0 %v77
    %2275 = vmatprep.subr.mxu0 %v70
    %2276 = vmatpush1.msra.mxu0 %v69
    %2277 = vmatprep.subr.mxu0 %v318
    %2278 = vmatpush2.msra.mxu0 %v317
    %2279 = vmatprep.subr.mxu0 %v310
    %2280 = vmatpush2.msra.mxu0 %v309
    %2281 = vmatprep.subr.mxu0 %v302
    %2282 = vmatpush2.msra.mxu0 %v301
    %2283 = vmatprep.subr.mxu0 %v294
    %2284 = vmatpush2.msra.mxu0 %v293
    %2285 = vmatprep.subr.mxu0 %v286
    %2286 = vmatpush2.msra.mxu0 %v285
    %2287 = vmatprep.subr.mxu0 %v278
    %2288 = vmatpush2.msra.mxu0 %v277
    %2289 = vmatprep.subr.mxu0 %v270
    %2290 = vmatpush2.msra.mxu0 %v269
    %2291 = vmatprep.subr.mxu0 %v262
    %2292 = vmatpush2.msra.mxu0 %v261
    %2293 = vmatprep.subr.mxu0 %v254
    %2294 = vmatpush2.msra.mxu0 %v253
    %2295 = vmatprep.subr.mxu0 %v246
    %2296 = vmatpush2.msra.mxu0 %v245
    %2297 = vmatprep.subr.mxu0 %v238
    %2298 = vmatpush2.msra.mxu0 %v237
    %2299 = vmatprep.subr.mxu0 %v230
    %2300 = vmatpush2.msra.mxu0 %v229
    %2301 = vmatprep.subr.mxu0 %v222
    %2302 = vmatpush2.msra.mxu0 %v221
    %2303 = vmatprep.subr.mxu0 %v214
    %2304 = vmatpush2.msra.mxu0 %v213
    %2305 = vmatprep.subr.mxu0 %v206
    %2306 = vmatpush2.msra.mxu0 %v205
    %2307 = vmatprep.subr.mxu0 %v198
    %2308 = vmatpush2.msra.mxu0 %v197
    %2309 = vmatprep.mubr.f32.mxu0 %v2217
    %2310 = vmatmul.mubr.f32.gmra.mxu0 %v2216
    %v2311 = vpop.f32.mrf.mxu0
    %v2312 = vadd.f32 %v2237, %v2311
    %v2313 = vpop.f32.mrf.mxu0
    %v2314 = vadd.f32 %v2238, %v2313
    %2315 = vdwg.mxu0
    %2316 = vmatprep.subr.mxu0 %v192
    %2317 = vmatpush1.msra.mxu0 %v191
    %2318 = vmatprep.subr.mxu0 %v184
    %2319 = vmatpush1.msra.mxu0 %v183
    %2320 = vmatprep.subr.mxu0 %v176
    %2321 = vmatpush1.msra.mxu0 %v175
    %2322 = vmatprep.subr.mxu0 %v168
    %2323 = vmatpush1.msra.mxu0 %v167
    %2324 = vmatprep.subr.mxu0 %v160
    %2325 = vmatpush1.msra.mxu0 %v159
    %2326 = vmatprep.subr.mxu0 %v152
    %2327 = vmatpush1.msra.mxu0 %v151
    %2328 = vmatprep.subr.mxu0 %v144
    %2329 = vmatpush1.msra.mxu0 %v143
    %2330 = vmatprep.subr.mxu0 %v136
    %2331 = vmatpush1.msra.mxu0 %v135
    %2332 = vmatprep.subr.mxu0 %v128
    %2333 = vmatpush1.msra.mxu0 %v127
    %2334 = vmatprep.subr.mxu0 %v120
    %2335 = vmatpush1.msra.mxu0 %v119
    %2336 = vmatprep.subr.mxu0 %v112
    %2337 = vmatpush1.msra.mxu0 %v111
    %2338 = vmatprep.subr.mxu0 %v104
    %2339 = vmatpush1.msra.mxu0 %v103
    %2340 = vmatprep.subr.mxu0 %v96
    %2341 = vmatpush1.msra.mxu0 %v95
    %2342 = vmatprep.subr.mxu0 %v88
    %2343 = vmatpush1.msra.mxu0 %v87
    %2344 = vmatprep.subr.mxu0 %v80
    %2345 = vmatpush1.msra.mxu0 %v79
    %2346 = vmatprep.subr.mxu0 %v72
    %2347 = vmatpush1.msra.mxu0 %v71
    %2348 = vmatprep.subr.mxu0 %v320
    %2349 = vmatpush2.msra.mxu0 %v319
    %2350 = vmatprep.subr.mxu0 %v312
    %2351 = vmatpush2.msra.mxu0 %v311
    %2352 = vmatprep.subr.mxu0 %v304
    %2353 = vmatpush2.msra.mxu0 %v303
    %2354 = vmatprep.subr.mxu0 %v296
    %2355 = vmatpush2.msra.mxu0 %v295
    %2356 = vmatprep.subr.mxu0 %v288
    %2357 = vmatpush2.msra.mxu0 %v287
    %2358 = vmatprep.subr.mxu0 %v280
    %2359 = vmatpush2.msra.mxu0 %v279
    %2360 = vmatprep.subr.mxu0 %v272
    %2361 = vmatpush2.msra.mxu0 %v271
    %2362 = vmatprep.subr.mxu0 %v264
    %2363 = vmatpush2.msra.mxu0 %v263
    %2364 = vmatprep.subr.mxu0 %v256
    %2365 = vmatpush2.msra.mxu0 %v255
    %2366 = vmatprep.subr.mxu0 %v248
    %2367 = vmatpush2.msra.mxu0 %v247
    %2368 = vmatprep.subr.mxu0 %v240
    %2369 = vmatpush2.msra.mxu0 %v239
    %2370 = vmatprep.subr.mxu0 %v232
    %2371 = vmatpush2.msra.mxu0 %v231
    %2372 = vmatprep.subr.mxu0 %v224
    %2373 = vmatpush2.msra.mxu0 %v223
    %2374 = vmatprep.subr.mxu0 %v216
    %2375 = vmatpush2.msra.mxu0 %v215
    %2376 = vmatprep.subr.mxu0 %v208
    %2377 = vmatpush2.msra.mxu0 %v207
    %2378 = vmatprep.subr.mxu0 %v200
    %2379 = vmatpush2.msra.mxu0 %v199
    %2380 = vmatprep.mubr.f32.mxu0 %v2217
    %2381 = vmatmul.mubr.f32.gmra.mxu0 %v2216
    %v2382 = vpop.f32.mrf.mxu0
    %v2383 = vadd.f32 %v2239, %v2382
    %v2384 = vpop.f32.mrf.mxu0
    %v2385 = vadd.f32 %v2240, %v2384
    %2386 = vdwg.mxu0
    %2387 = vmatprep.subr.mxu0 %v194
    %2388 = vmatpush1.msra.mxu0 %v193
    %2389 = vmatprep.subr.mxu0 %v186
    %2390 = vmatpush1.msra.mxu0 %v185
    %2391 = vmatprep.subr.mxu0 %v178
    %2392 = vmatpush1.msra.mxu0 %v177
    %2393 = vmatprep.subr.mxu0 %v170
    %2394 = vmatpush1.msra.mxu0 %v169
    %2395 = vmatprep.subr.mxu0 %v162
    %2396 = vmatpush1.msra.mxu0 %v161
    %2397 = vmatprep.subr.mxu0 %v154
    %2398 = vmatpush1.msra.mxu0 %v153
    %2399 = vmatprep.subr.mxu0 %v146
    %2400 = vmatpush1.msra.mxu0 %v145
    %2401 = vmatprep.subr.mxu0 %v138
    %2402 = vmatpush1.msra.mxu0 %v137
    %2403 = vmatprep.subr.mxu0 %v130
    %2404 = vmatpush1.msra.mxu0 %v129
    %2405 = vmatprep.subr.mxu0 %v122
    %2406 = vmatpush1.msra.mxu0 %v121
    %2407 = vmatprep.subr.mxu0 %v114
    %2408 = vmatpush1.msra.mxu0 %v113
    %2409 = vmatprep.subr.mxu0 %v106
    %2410 = vmatpush1.msra.mxu0 %v105
    %2411 = vmatprep.subr.mxu0 %v98
    %2412 = vmatpush1.msra.mxu0 %v97
    %2413 = vmatprep.subr.mxu0 %v90
    %2414 = vmatpush1.msra.mxu0 %v89
    %2415 = vmatprep.subr.mxu0 %v82
    %2416 = vmatpush1.msra.mxu0 %v81
    %2417 = vmatprep.subr.mxu0 %v74
    %2418 = vmatpush1.msra.mxu0 %v73
    %2419 = vmatprep.subr.mxu0 %v322
    %2420 = vmatpush2.msra.mxu0 %v321
    %2421 = vmatprep.subr.mxu0 %v314
    %2422 = vmatpush2.msra.mxu0 %v313
    %2423 = vmatprep.subr.mxu0 %v306
    %2424 = vmatpush2.msra.mxu0 %v305
    %2425 = vmatprep.subr.mxu0 %v298
    %2426 = vmatpush2.msra.mxu0 %v297
    %2427 = vmatprep.subr.mxu0 %v290
    %2428 = vmatpush2.msra.mxu0 %v289
    %2429 = vmatprep.subr.mxu0 %v282
    %2430 = vmatpush2.msra.mxu0 %v281
    %2431 = vmatprep.subr.mxu0 %v274
    %2432 = vmatpush2.msra.mxu0 %v273
    %2433 = vmatprep.subr.mxu0 %v266
    %2434 = vmatpush2.msra.mxu0 %v265
    %2435 = vmatprep.subr.mxu0 %v258
    %2436 = vmatpush2.msra.mxu0 %v257
    %2437 = vmatprep.subr.mxu0 %v250
    %2438 = vmatpush2.msra.mxu0 %v249
    %2439 = vmatprep.subr.mxu0 %v242
    %2440 = vmatpush2.msra.mxu0 %v241
    %2441 = vmatprep.subr.mxu0 %v234
    %2442 = vmatpush2.msra.mxu0 %v233
    %2443 = vmatprep.subr.mxu0 %v226
    %2444 = vmatpush2.msra.mxu0 %v225
    %2445 = vmatprep.subr.mxu0 %v218
    %2446 = vmatpush2.msra.mxu0 %v217
    %2447 = vmatprep.subr.mxu0 %v210
    %2448 = vmatpush2.msra.mxu0 %v209
    %2449 = vmatprep.subr.mxu0 %v202
    %2450 = vmatpush2.msra.mxu0 %v201
    %2451 = vmatprep.mubr.f32.mxu0 %v2217
    %2452 = vmatmul.mubr.f32.gmra.mxu0 %v2216
    %v2453 = vpop.f32.mrf.mxu0
    %v2454 = vadd.f32 %v2241, %v2453
    %v2455 = vpop.f32.mrf.mxu0
    %v2456 = vadd.f32 %v2242, %v2455
    %2457 = vdwg.mxu0
    %2458 = vmatprep.subr.mxu0 %v196
    %2459 = vmatpush1.msra.mxu0 %v195
    %2460 = vmatprep.subr.mxu0 %v188
    %2461 = vmatpush1.msra.mxu0 %v187
    %2462 = vmatprep.subr.mxu0 %v180
    %2463 = vmatpush1.msra.mxu0 %v179
    %2464 = vmatprep.subr.mxu0 %v172
    %2465 = vmatpush1.msra.mxu0 %v171
    %2466 = vmatprep.subr.mxu0 %v164
    %2467 = vmatpush1.msra.mxu0 %v163
    %2468 = vmatprep.subr.mxu0 %v156
    %2469 = vmatpush1.msra.mxu0 %v155
    %2470 = vmatprep.subr.mxu0 %v148
    %2471 = vmatpush1.msra.mxu0 %v147
    %2472 = vmatprep.subr.mxu0 %v140
    %2473 = vmatpush1.msra.mxu0 %v139
    %2474 = vmatprep.subr.mxu0 %v132
    %2475 = vmatpush1.msra.mxu0 %v131
    %2476 = vmatprep.subr.mxu0 %v124
    %2477 = vmatpush1.msra.mxu0 %v123
    %2478 = vmatprep.subr.mxu0 %v116
    %2479 = vmatpush1.msra.mxu0 %v115
    %2480 = vmatprep.subr.mxu0 %v108
    %2481 = vmatpush1.msra.mxu0 %v107
    %2482 = vmatprep.subr.mxu0 %v100
    %2483 = vmatpush1.msra.mxu0 %v99
    %2484 = vmatprep.subr.mxu0 %v92
    %2485 = vmatpush1.msra.mxu0 %v91
    %2486 = vmatprep.subr.mxu0 %v84
    %2487 = vmatpush1.msra.mxu0 %v83
    %2488 = vmatprep.subr.mxu0 %v76
    %2489 = vmatpush1.msra.mxu0 %v75
    %2490 = vmatprep.subr.mxu0 %v324
    %2491 = vmatpush2.msra.mxu0 %v323
    %2492 = vmatprep.subr.mxu0 %v316
    %2493 = vmatpush2.msra.mxu0 %v315
    %2494 = vmatprep.subr.mxu0 %v308
    %2495 = vmatpush2.msra.mxu0 %v307
    %2496 = vmatprep.subr.mxu0 %v300
    %2497 = vmatpush2.msra.mxu0 %v299
    %2498 = vmatprep.subr.mxu0 %v292
    %2499 = vmatpush2.msra.mxu0 %v291
    %2500 = vmatprep.subr.mxu0 %v284
    %2501 = vmatpush2.msra.mxu0 %v283
    %2502 = vmatprep.subr.mxu0 %v276
    %2503 = vmatpush2.msra.mxu0 %v275
    %2504 = vmatprep.subr.mxu0 %v268
    %2505 = vmatpush2.msra.mxu0 %v267
    %2506 = vmatprep.subr.mxu0 %v260
    %2507 = vmatpush2.msra.mxu0 %v259
    %2508 = vmatprep.subr.mxu0 %v252
    %2509 = vmatpush2.msra.mxu0 %v251
    %2510 = vmatprep.subr.mxu0 %v244
    %2511 = vmatpush2.msra.mxu0 %v243
    %2512 = vmatprep.subr.mxu0 %v236
    %2513 = vmatpush2.msra.mxu0 %v235
    %2514 = vmatprep.subr.mxu0 %v228
    %2515 = vmatpush2.msra.mxu0 %v227
    %2516 = vmatprep.subr.mxu0 %v220
    %2517 = vmatpush2.msra.mxu0 %v219
    %2518 = vmatprep.subr.mxu0 %v212
    %2519 = vmatpush2.msra.mxu0 %v211
    %2520 = vmatprep.subr.mxu0 %v204
    %2521 = vmatpush2.msra.mxu0 %v203
    %2522 = vmatprep.mubr.f32.mxu0 %v2217
    %2523 = vmatmul.mubr.f32.gmra.mxu0 %v2216
    %v2524 = vpop.f32.mrf.mxu0
    %v2525 = vadd.f32 %v2243, %v2524
    %v2526 = vpop.f32.mrf.mxu0
    %v2527 = vadd.f32 %v2244, %v2526
    %2528 = vdwg.mxu0
    %v2529 = vadd.f32 %v2312, %v705
    %v2530 = vadd.f32 %v2314, %v709
    %v2531 = vadd.f32 %v2383, %v713
    %v2532 = vadd.f32 %v2385, %v717
    %v2533 = vadd.f32 %v2454, %v721
    %v2534 = vadd.f32 %v2456, %v725
    %v2535 = vadd.f32 %v2525, %v729
    %v2536 = vadd.f32 %v2527, %v733
    %v2537 = vmul.f32 %v2529, 0.5
    %v2538 = vmul.f32 %v2530, 0.5
    %v2539 = vtanh.pop %v2537
    %v2540 = vtanh.pop %v2538
    %v2541 = vmul.f32 %v2539, 0.5
    %v2542 = vmul.f32 %v2540, 0.5
    %v2543 = vadd.f32 %v2541, 0.5
    %v2544 = vadd.f32 %v2542, 0.5
    %v2545 = vmul.f32 %v2531, 0.5
    %v2546 = vmul.f32 %v2532, 0.5
    %v2547 = vtanh.pop %v2545
    %v2548 = vtanh.pop %v2546
    %v2549 = vmul.f32 %v2547, 0.5
    %v2550 = vmul.f32 %v2548, 0.5
    %v2551 = vadd.f32 %v2549, 0.5
    %v2552 = vadd.f32 %v2550, 0.5
    %v2553 = vtanh.pop %v2533
    %v2554 = vtanh.pop %v2534
    %v2555 = vmul.f32 %v2535, 0.5
    %v2556 = vmul.f32 %v2536, 0.5
    %v2557 = vtanh.pop %v2555
    %v2558 = vtanh.pop %v2556
    %v2559 = vmul.f32 %v2557, 0.5
    %v2560 = vmul.f32 %v2558, 0.5
    %v2561 = vadd.f32 %v2559, 0.5
    %v2562 = vadd.f32 %v2560, 0.5
    %v2563 = vmul.f32 %v2551, %v2212
    %v2564 = vmul.f32 %v2552, %v2213
    %v2565 = vmul.f32 %v2543, %v2553
    %v2566 = vmul.f32 %v2544, %v2554
    %v2567 = vadd.f32 %v2563, %v2565
    %v2568 = vadd.f32 %v2564, %v2566
    %v2569 = vtanh.pop %v2567
    %v2570 = vtanh.pop %v2568
    %v2571 = vmul.f32 %v2561, %v2569
    %v2572 = vmul.f32 %v2562, %v2570
    %v2573 = vmul.f32 %v2571, %v332
    %v2574 = vmul.f32 %v2572, %v336
    %v2575 = vsel %vm799, %v2573, 0.0
    %v2576 = vsel %vm799, %v2574, 0.0
    %v2577 = vadd.f32 %v2575, %v2576
    %2578 = vadd.xlane.f32.xlu0 %v2577
    %v2579 = vpop.xlane.xlu0 %2578
    %v2580 = vadd.f32 %v2579, %v344
    %2582 = vset.pattern.permute.xlu0 0
    %2583 = vperm.xlu0 %2582, %v2580
    %v2584 = vpop.permute.xlu0 %2583
    %v2586 = vsel %vm2232, %v2584, %v2231
    %vm2587 = vcmp.eq.s32.totalorder %v348, 6
    %v2588 = vsel %vm2587, %v346, 0.0
    %v2589 = vsel %vm353, %v2588, 0.0
    %2590 = vadd.xlane.f32.xlu0 %v2589
    %v2591 = vpop.xlane.xlu0 %2590
    %v2592 = vmul.f32 %v2591, %v361
    %v2593 = vmul.f32 %v2591, %v365
    %v2594 = vmul.f32 %v2591, %v369
    %v2595 = vmul.f32 %v2591, %v373
    %v2596 = vmul.f32 %v2591, %v377
    %v2597 = vmul.f32 %v2591, %v381
    %v2598 = vmul.f32 %v2591, %v385
    %v2599 = vmul.f32 %v2591, %v389
    %2600 = vmatprep.subr.mxu0 %v190
    %2601 = vmatpush1.msra.mxu0 %v189
    %2602 = vmatprep.subr.mxu0 %v182
    %2603 = vmatpush1.msra.mxu0 %v181
    %2604 = vmatprep.subr.mxu0 %v174
    %2605 = vmatpush1.msra.mxu0 %v173
    %2606 = vmatprep.subr.mxu0 %v166
    %2607 = vmatpush1.msra.mxu0 %v165
    %2608 = vmatprep.subr.mxu0 %v158
    %2609 = vmatpush1.msra.mxu0 %v157
    %2610 = vmatprep.subr.mxu0 %v150
    %2611 = vmatpush1.msra.mxu0 %v149
    %2612 = vmatprep.subr.mxu0 %v142
    %2613 = vmatpush1.msra.mxu0 %v141
    %2614 = vmatprep.subr.mxu0 %v134
    %2615 = vmatpush1.msra.mxu0 %v133
    %2616 = vmatprep.subr.mxu0 %v126
    %2617 = vmatpush1.msra.mxu0 %v125
    %2618 = vmatprep.subr.mxu0 %v118
    %2619 = vmatpush1.msra.mxu0 %v117
    %2620 = vmatprep.subr.mxu0 %v110
    %2621 = vmatpush1.msra.mxu0 %v109
    %2622 = vmatprep.subr.mxu0 %v102
    %2623 = vmatpush1.msra.mxu0 %v101
    %2624 = vmatprep.subr.mxu0 %v94
    %2625 = vmatpush1.msra.mxu0 %v93
    %2626 = vmatprep.subr.mxu0 %v86
    %2627 = vmatpush1.msra.mxu0 %v85
    %2628 = vmatprep.subr.mxu0 %v78
    %2629 = vmatpush1.msra.mxu0 %v77
    %2630 = vmatprep.subr.mxu0 %v70
    %2631 = vmatpush1.msra.mxu0 %v69
    %2632 = vmatprep.subr.mxu0 %v318
    %2633 = vmatpush2.msra.mxu0 %v317
    %2634 = vmatprep.subr.mxu0 %v310
    %2635 = vmatpush2.msra.mxu0 %v309
    %2636 = vmatprep.subr.mxu0 %v302
    %2637 = vmatpush2.msra.mxu0 %v301
    %2638 = vmatprep.subr.mxu0 %v294
    %2639 = vmatpush2.msra.mxu0 %v293
    %2640 = vmatprep.subr.mxu0 %v286
    %2641 = vmatpush2.msra.mxu0 %v285
    %2642 = vmatprep.subr.mxu0 %v278
    %2643 = vmatpush2.msra.mxu0 %v277
    %2644 = vmatprep.subr.mxu0 %v270
    %2645 = vmatpush2.msra.mxu0 %v269
    %2646 = vmatprep.subr.mxu0 %v262
    %2647 = vmatpush2.msra.mxu0 %v261
    %2648 = vmatprep.subr.mxu0 %v254
    %2649 = vmatpush2.msra.mxu0 %v253
    %2650 = vmatprep.subr.mxu0 %v246
    %2651 = vmatpush2.msra.mxu0 %v245
    %2652 = vmatprep.subr.mxu0 %v238
    %2653 = vmatpush2.msra.mxu0 %v237
    %2654 = vmatprep.subr.mxu0 %v230
    %2655 = vmatpush2.msra.mxu0 %v229
    %2656 = vmatprep.subr.mxu0 %v222
    %2657 = vmatpush2.msra.mxu0 %v221
    %2658 = vmatprep.subr.mxu0 %v214
    %2659 = vmatpush2.msra.mxu0 %v213
    %2660 = vmatprep.subr.mxu0 %v206
    %2661 = vmatpush2.msra.mxu0 %v205
    %2662 = vmatprep.subr.mxu0 %v198
    %2663 = vmatpush2.msra.mxu0 %v197
    %2664 = vmatprep.mubr.f32.mxu0 %v2572
    %2665 = vmatmul.mubr.f32.gmra.mxu0 %v2571
    %v2666 = vpop.f32.mrf.mxu0
    %v2667 = vadd.f32 %v2592, %v2666
    %v2668 = vpop.f32.mrf.mxu0
    %v2669 = vadd.f32 %v2593, %v2668
    %2670 = vdwg.mxu0
    %2671 = vmatprep.subr.mxu0 %v192
    %2672 = vmatpush1.msra.mxu0 %v191
    %2673 = vmatprep.subr.mxu0 %v184
    %2674 = vmatpush1.msra.mxu0 %v183
    %2675 = vmatprep.subr.mxu0 %v176
    %2676 = vmatpush1.msra.mxu0 %v175
    %2677 = vmatprep.subr.mxu0 %v168
    %2678 = vmatpush1.msra.mxu0 %v167
    %2679 = vmatprep.subr.mxu0 %v160
    %2680 = vmatpush1.msra.mxu0 %v159
    %2681 = vmatprep.subr.mxu0 %v152
    %2682 = vmatpush1.msra.mxu0 %v151
    %2683 = vmatprep.subr.mxu0 %v144
    %2684 = vmatpush1.msra.mxu0 %v143
    %2685 = vmatprep.subr.mxu0 %v136
    %2686 = vmatpush1.msra.mxu0 %v135
    %2687 = vmatprep.subr.mxu0 %v128
    %2688 = vmatpush1.msra.mxu0 %v127
    %2689 = vmatprep.subr.mxu0 %v120
    %2690 = vmatpush1.msra.mxu0 %v119
    %2691 = vmatprep.subr.mxu0 %v112
    %2692 = vmatpush1.msra.mxu0 %v111
    %2693 = vmatprep.subr.mxu0 %v104
    %2694 = vmatpush1.msra.mxu0 %v103
    %2695 = vmatprep.subr.mxu0 %v96
    %2696 = vmatpush1.msra.mxu0 %v95
    %2697 = vmatprep.subr.mxu0 %v88
    %2698 = vmatpush1.msra.mxu0 %v87
    %2699 = vmatprep.subr.mxu0 %v80
    %2700 = vmatpush1.msra.mxu0 %v79
    %2701 = vmatprep.subr.mxu0 %v72
    %2702 = vmatpush1.msra.mxu0 %v71
    %2703 = vmatprep.subr.mxu0 %v320
    %2704 = vmatpush2.msra.mxu0 %v319
    %2705 = vmatprep.subr.mxu0 %v312
    %2706 = vmatpush2.msra.mxu0 %v311
    %2707 = vmatprep.subr.mxu0 %v304
    %2708 = vmatpush2.msra.mxu0 %v303
    %2709 = vmatprep.subr.mxu0 %v296
    %2710 = vmatpush2.msra.mxu0 %v295
    %2711 = vmatprep.subr.mxu0 %v288
    %2712 = vmatpush2.msra.mxu0 %v287
    %2713 = vmatprep.subr.mxu0 %v280
    %2714 = vmatpush2.msra.mxu0 %v279
    %2715 = vmatprep.subr.mxu0 %v272
    %2716 = vmatpush2.msra.mxu0 %v271
    %2717 = vmatprep.subr.mxu0 %v264
    %2718 = vmatpush2.msra.mxu0 %v263
    %2719 = vmatprep.subr.mxu0 %v256
    %2720 = vmatpush2.msra.mxu0 %v255
    %2721 = vmatprep.subr.mxu0 %v248
    %2722 = vmatpush2.msra.mxu0 %v247
    %2723 = vmatprep.subr.mxu0 %v240
    %2724 = vmatpush2.msra.mxu0 %v239
    %2725 = vmatprep.subr.mxu0 %v232
    %2726 = vmatpush2.msra.mxu0 %v231
    %2727 = vmatprep.subr.mxu0 %v224
    %2728 = vmatpush2.msra.mxu0 %v223
    %2729 = vmatprep.subr.mxu0 %v216
    %2730 = vmatpush2.msra.mxu0 %v215
    %2731 = vmatprep.subr.mxu0 %v208
    %2732 = vmatpush2.msra.mxu0 %v207
    %2733 = vmatprep.subr.mxu0 %v200
    %2734 = vmatpush2.msra.mxu0 %v199
    %2735 = vmatprep.mubr.f32.mxu0 %v2572
    %2736 = vmatmul.mubr.f32.gmra.mxu0 %v2571
    %v2737 = vpop.f32.mrf.mxu0
    %v2738 = vadd.f32 %v2594, %v2737
    %v2739 = vpop.f32.mrf.mxu0
    %v2740 = vadd.f32 %v2595, %v2739
    %2741 = vdwg.mxu0
    %2742 = vmatprep.subr.mxu0 %v194
    %2743 = vmatpush1.msra.mxu0 %v193
    %2744 = vmatprep.subr.mxu0 %v186
    %2745 = vmatpush1.msra.mxu0 %v185
    %2746 = vmatprep.subr.mxu0 %v178
    %2747 = vmatpush1.msra.mxu0 %v177
    %2748 = vmatprep.subr.mxu0 %v170
    %2749 = vmatpush1.msra.mxu0 %v169
    %2750 = vmatprep.subr.mxu0 %v162
    %2751 = vmatpush1.msra.mxu0 %v161
    %2752 = vmatprep.subr.mxu0 %v154
    %2753 = vmatpush1.msra.mxu0 %v153
    %2754 = vmatprep.subr.mxu0 %v146
    %2755 = vmatpush1.msra.mxu0 %v145
    %2756 = vmatprep.subr.mxu0 %v138
    %2757 = vmatpush1.msra.mxu0 %v137
    %2758 = vmatprep.subr.mxu0 %v130
    %2759 = vmatpush1.msra.mxu0 %v129
    %2760 = vmatprep.subr.mxu0 %v122
    %2761 = vmatpush1.msra.mxu0 %v121
    %2762 = vmatprep.subr.mxu0 %v114
    %2763 = vmatpush1.msra.mxu0 %v113
    %2764 = vmatprep.subr.mxu0 %v106
    %2765 = vmatpush1.msra.mxu0 %v105
    %2766 = vmatprep.subr.mxu0 %v98
    %2767 = vmatpush1.msra.mxu0 %v97
    %2768 = vmatprep.subr.mxu0 %v90
    %2769 = vmatpush1.msra.mxu0 %v89
    %2770 = vmatprep.subr.mxu0 %v82
    %2771 = vmatpush1.msra.mxu0 %v81
    %2772 = vmatprep.subr.mxu0 %v74
    %2773 = vmatpush1.msra.mxu0 %v73
    %2774 = vmatprep.subr.mxu0 %v322
    %2775 = vmatpush2.msra.mxu0 %v321
    %2776 = vmatprep.subr.mxu0 %v314
    %2777 = vmatpush2.msra.mxu0 %v313
    %2778 = vmatprep.subr.mxu0 %v306
    %2779 = vmatpush2.msra.mxu0 %v305
    %2780 = vmatprep.subr.mxu0 %v298
    %2781 = vmatpush2.msra.mxu0 %v297
    %2782 = vmatprep.subr.mxu0 %v290
    %2783 = vmatpush2.msra.mxu0 %v289
    %2784 = vmatprep.subr.mxu0 %v282
    %2785 = vmatpush2.msra.mxu0 %v281
    %2786 = vmatprep.subr.mxu0 %v274
    %2787 = vmatpush2.msra.mxu0 %v273
    %2788 = vmatprep.subr.mxu0 %v266
    %2789 = vmatpush2.msra.mxu0 %v265
    %2790 = vmatprep.subr.mxu0 %v258
    %2791 = vmatpush2.msra.mxu0 %v257
    %2792 = vmatprep.subr.mxu0 %v250
    %2793 = vmatpush2.msra.mxu0 %v249
    %2794 = vmatprep.subr.mxu0 %v242
    %2795 = vmatpush2.msra.mxu0 %v241
    %2796 = vmatprep.subr.mxu0 %v234
    %2797 = vmatpush2.msra.mxu0 %v233
    %2798 = vmatprep.subr.mxu0 %v226
    %2799 = vmatpush2.msra.mxu0 %v225
    %2800 = vmatprep.subr.mxu0 %v218
    %2801 = vmatpush2.msra.mxu0 %v217
    %2802 = vmatprep.subr.mxu0 %v210
    %2803 = vmatpush2.msra.mxu0 %v209
    %2804 = vmatprep.subr.mxu0 %v202
    %2805 = vmatpush2.msra.mxu0 %v201
    %2806 = vmatprep.mubr.f32.mxu0 %v2572
    %2807 = vmatmul.mubr.f32.gmra.mxu0 %v2571
    %v2808 = vpop.f32.mrf.mxu0
    %v2809 = vadd.f32 %v2596, %v2808
    %v2810 = vpop.f32.mrf.mxu0
    %v2811 = vadd.f32 %v2597, %v2810
    %2812 = vdwg.mxu0
    %2813 = vmatprep.subr.mxu0 %v196
    %2814 = vmatpush1.msra.mxu0 %v195
    %2815 = vmatprep.subr.mxu0 %v188
    %2816 = vmatpush1.msra.mxu0 %v187
    %2817 = vmatprep.subr.mxu0 %v180
    %2818 = vmatpush1.msra.mxu0 %v179
    %2819 = vmatprep.subr.mxu0 %v172
    %2820 = vmatpush1.msra.mxu0 %v171
    %2821 = vmatprep.subr.mxu0 %v164
    %2822 = vmatpush1.msra.mxu0 %v163
    %2823 = vmatprep.subr.mxu0 %v156
    %2824 = vmatpush1.msra.mxu0 %v155
    %2825 = vmatprep.subr.mxu0 %v148
    %2826 = vmatpush1.msra.mxu0 %v147
    %2827 = vmatprep.subr.mxu0 %v140
    %2828 = vmatpush1.msra.mxu0 %v139
    %2829 = vmatprep.subr.mxu0 %v132
    %2830 = vmatpush1.msra.mxu0 %v131
    %2831 = vmatprep.subr.mxu0 %v124
    %2832 = vmatpush1.msra.mxu0 %v123
    %2833 = vmatprep.subr.mxu0 %v116
    %2834 = vmatpush1.msra.mxu0 %v115
    %2835 = vmatprep.subr.mxu0 %v108
    %2836 = vmatpush1.msra.mxu0 %v107
    %2837 = vmatprep.subr.mxu0 %v100
    %2838 = vmatpush1.msra.mxu0 %v99
    %2839 = vmatprep.subr.mxu0 %v92
    %2840 = vmatpush1.msra.mxu0 %v91
    %2841 = vmatprep.subr.mxu0 %v84
    %2842 = vmatpush1.msra.mxu0 %v83
    %2843 = vmatprep.subr.mxu0 %v76
    %2844 = vmatpush1.msra.mxu0 %v75
    %2845 = vmatprep.subr.mxu0 %v324
    %2846 = vmatpush2.msra.mxu0 %v323
    %2847 = vmatprep.subr.mxu0 %v316
    %2848 = vmatpush2.msra.mxu0 %v315
    %2849 = vmatprep.subr.mxu0 %v308
    %2850 = vmatpush2.msra.mxu0 %v307
    %2851 = vmatprep.subr.mxu0 %v300
    %2852 = vmatpush2.msra.mxu0 %v299
    %2853 = vmatprep.subr.mxu0 %v292
    %2854 = vmatpush2.msra.mxu0 %v291
    %2855 = vmatprep.subr.mxu0 %v284
    %2856 = vmatpush2.msra.mxu0 %v283
    %2857 = vmatprep.subr.mxu0 %v276
    %2858 = vmatpush2.msra.mxu0 %v275
    %2859 = vmatprep.subr.mxu0 %v268
    %2860 = vmatpush2.msra.mxu0 %v267
    %2861 = vmatprep.subr.mxu0 %v260
    %2862 = vmatpush2.msra.mxu0 %v259
    %2863 = vmatprep.subr.mxu0 %v252
    %2864 = vmatpush2.msra.mxu0 %v251
    %2865 = vmatprep.subr.mxu0 %v244
    %2866 = vmatpush2.msra.mxu0 %v243
    %2867 = vmatprep.subr.mxu0 %v236
    %2868 = vmatpush2.msra.mxu0 %v235
    %2869 = vmatprep.subr.mxu0 %v228
    %2870 = vmatpush2.msra.mxu0 %v227
    %2871 = vmatprep.subr.mxu0 %v220
    %2872 = vmatpush2.msra.mxu0 %v219
    %2873 = vmatprep.subr.mxu0 %v212
    %2874 = vmatpush2.msra.mxu0 %v211
    %2875 = vmatprep.subr.mxu0 %v204
    %2876 = vmatpush2.msra.mxu0 %v203
    %2877 = vmatprep.mubr.f32.mxu0 %v2572
    %2878 = vmatmul.mubr.f32.gmra.mxu0 %v2571
    %v2879 = vpop.f32.mrf.mxu0
    %v2880 = vadd.f32 %v2598, %v2879
    %v2881 = vpop.f32.mrf.mxu0
    %v2882 = vadd.f32 %v2599, %v2881
    %2883 = vdwg.mxu0
    %v2884 = vadd.f32 %v2667, %v705
    %v2885 = vadd.f32 %v2669, %v709
    %v2886 = vadd.f32 %v2738, %v713
    %v2887 = vadd.f32 %v2740, %v717
    %v2888 = vadd.f32 %v2809, %v721
    %v2889 = vadd.f32 %v2811, %v725
    %v2890 = vadd.f32 %v2880, %v729
    %v2891 = vadd.f32 %v2882, %v733
    %v2892 = vmul.f32 %v2884, 0.5
    %v2893 = vmul.f32 %v2885, 0.5
    %v2894 = vtanh.pop %v2892
    %v2895 = vtanh.pop %v2893
    %v2896 = vmul.f32 %v2894, 0.5
    %v2897 = vmul.f32 %v2895, 0.5
    %v2898 = vadd.f32 %v2896, 0.5
    %v2899 = vadd.f32 %v2897, 0.5
    %v2900 = vmul.f32 %v2886, 0.5
    %v2901 = vmul.f32 %v2887, 0.5
    %v2902 = vtanh.pop %v2900
    %v2903 = vtanh.pop %v2901
    %v2904 = vmul.f32 %v2902, 0.5
    %v2905 = vmul.f32 %v2903, 0.5
    %v2906 = vadd.f32 %v2904, 0.5
    %v2907 = vadd.f32 %v2905, 0.5
    %v2908 = vtanh.pop %v2888
    %v2909 = vtanh.pop %v2889
    %v2910 = vmul.f32 %v2890, 0.5
    %v2911 = vmul.f32 %v2891, 0.5
    %v2912 = vtanh.pop %v2910
    %v2913 = vtanh.pop %v2911
    %v2914 = vmul.f32 %v2912, 0.5
    %v2915 = vmul.f32 %v2913, 0.5
    %v2916 = vadd.f32 %v2914, 0.5
    %v2917 = vadd.f32 %v2915, 0.5
    %v2918 = vmul.f32 %v2906, %v2567
    %v2919 = vmul.f32 %v2907, %v2568
    %v2920 = vmul.f32 %v2898, %v2908
    %v2921 = vmul.f32 %v2899, %v2909
    %v2922 = vadd.f32 %v2918, %v2920
    %v2923 = vadd.f32 %v2919, %v2921
    %v2924 = vtanh.pop %v2922
    %v2925 = vtanh.pop %v2923
    %v2926 = vmul.f32 %v2916, %v2924
    %v2927 = vmul.f32 %v2917, %v2925
    %v2928 = vmul.f32 %v2926, %v332
    %v2929 = vmul.f32 %v2927, %v336
    %v2930 = vsel %vm799, %v2928, 0.0
    %v2931 = vsel %vm799, %v2929, 0.0
    %v2932 = vadd.f32 %v2930, %v2931
    %2933 = vadd.xlane.f32.xlu0 %v2932
    %v2934 = vpop.xlane.xlu0 %2933
    %v2935 = vadd.f32 %v2934, %v344
    %2937 = vset.pattern.permute.xlu0 0
    %2938 = vperm.xlu0 %2937, %v2935
    %v2939 = vpop.permute.xlu0 %2938
    %v2941 = vsel %vm2587, %v2939, %v2586
    %vm2942 = vcmp.eq.s32.totalorder %v348, 7
    %v2943 = vsel %vm2942, %v346, 0.0
    %v2944 = vsel %vm353, %v2943, 0.0
    %2945 = vadd.xlane.f32.xlu0 %v2944
    %v2946 = vpop.xlane.xlu0 %2945
    %v2947 = vmul.f32 %v2946, %v361
    %v2948 = vmul.f32 %v2946, %v365
    %v2949 = vmul.f32 %v2946, %v369
    %v2950 = vmul.f32 %v2946, %v373
    %v2951 = vmul.f32 %v2946, %v377
    %v2952 = vmul.f32 %v2946, %v381
    %v2953 = vmul.f32 %v2946, %v385
    %v2954 = vmul.f32 %v2946, %v389
    %2955 = vmatprep.subr.mxu0 %v190
    %2956 = vmatpush1.msra.mxu0 %v189
    %2957 = vmatprep.subr.mxu0 %v182
    %2958 = vmatpush1.msra.mxu0 %v181
    %2959 = vmatprep.subr.mxu0 %v174
    %2960 = vmatpush1.msra.mxu0 %v173
    %2961 = vmatprep.subr.mxu0 %v166
    %2962 = vmatpush1.msra.mxu0 %v165
    %2963 = vmatprep.subr.mxu0 %v158
    %2964 = vmatpush1.msra.mxu0 %v157
    %2965 = vmatprep.subr.mxu0 %v150
    %2966 = vmatpush1.msra.mxu0 %v149
    %2967 = vmatprep.subr.mxu0 %v142
    %2968 = vmatpush1.msra.mxu0 %v141
    %2969 = vmatprep.subr.mxu0 %v134
    %2970 = vmatpush1.msra.mxu0 %v133
    %2971 = vmatprep.subr.mxu0 %v126
    %2972 = vmatpush1.msra.mxu0 %v125
    %2973 = vmatprep.subr.mxu0 %v118
    %2974 = vmatpush1.msra.mxu0 %v117
    %2975 = vmatprep.subr.mxu0 %v110
    %2976 = vmatpush1.msra.mxu0 %v109
    %2977 = vmatprep.subr.mxu0 %v102
    %2978 = vmatpush1.msra.mxu0 %v101
    %2979 = vmatprep.subr.mxu0 %v94
    %2980 = vmatpush1.msra.mxu0 %v93
    %2981 = vmatprep.subr.mxu0 %v86
    %2982 = vmatpush1.msra.mxu0 %v85
    %2983 = vmatprep.subr.mxu0 %v78
    %2984 = vmatpush1.msra.mxu0 %v77
    %2985 = vmatprep.subr.mxu0 %v70
    %2986 = vmatpush1.msra.mxu0 %v69
    %2987 = vmatprep.subr.mxu0 %v318
    %2988 = vmatpush2.msra.mxu0 %v317
    %2989 = vmatprep.subr.mxu0 %v310
    %2990 = vmatpush2.msra.mxu0 %v309
    %2991 = vmatprep.subr.mxu0 %v302
    %2992 = vmatpush2.msra.mxu0 %v301
    %2993 = vmatprep.subr.mxu0 %v294
    %2994 = vmatpush2.msra.mxu0 %v293
    %2995 = vmatprep.subr.mxu0 %v286
    %2996 = vmatpush2.msra.mxu0 %v285
    %2997 = vmatprep.subr.mxu0 %v278
    %2998 = vmatpush2.msra.mxu0 %v277
    %2999 = vmatprep.subr.mxu0 %v270
    %3000 = vmatpush2.msra.mxu0 %v269
    %3001 = vmatprep.subr.mxu0 %v262
    %3002 = vmatpush2.msra.mxu0 %v261
    %3003 = vmatprep.subr.mxu0 %v254
    %3004 = vmatpush2.msra.mxu0 %v253
    %3005 = vmatprep.subr.mxu0 %v246
    %3006 = vmatpush2.msra.mxu0 %v245
    %3007 = vmatprep.subr.mxu0 %v238
    %3008 = vmatpush2.msra.mxu0 %v237
    %3009 = vmatprep.subr.mxu0 %v230
    %3010 = vmatpush2.msra.mxu0 %v229
    %3011 = vmatprep.subr.mxu0 %v222
    %3012 = vmatpush2.msra.mxu0 %v221
    %3013 = vmatprep.subr.mxu0 %v214
    %3014 = vmatpush2.msra.mxu0 %v213
    %3015 = vmatprep.subr.mxu0 %v206
    %3016 = vmatpush2.msra.mxu0 %v205
    %3017 = vmatprep.subr.mxu0 %v198
    %3018 = vmatpush2.msra.mxu0 %v197
    %3019 = vmatprep.mubr.f32.mxu0 %v2927
    %3020 = vmatmul.mubr.f32.gmra.mxu0 %v2926
    %v3021 = vpop.f32.mrf.mxu0
    %v3022 = vadd.f32 %v2947, %v3021
    %v3023 = vpop.f32.mrf.mxu0
    %v3024 = vadd.f32 %v2948, %v3023
    %3025 = vdwg.mxu0
    %3026 = vmatprep.subr.mxu0 %v192
    %3027 = vmatpush1.msra.mxu0 %v191
    %3028 = vmatprep.subr.mxu0 %v184
    %3029 = vmatpush1.msra.mxu0 %v183
    %3030 = vmatprep.subr.mxu0 %v176
    %3031 = vmatpush1.msra.mxu0 %v175
    %3032 = vmatprep.subr.mxu0 %v168
    %3033 = vmatpush1.msra.mxu0 %v167
    %3034 = vmatprep.subr.mxu0 %v160
    %3035 = vmatpush1.msra.mxu0 %v159
    %3036 = vmatprep.subr.mxu0 %v152
    %3037 = vmatpush1.msra.mxu0 %v151
    %3038 = vmatprep.subr.mxu0 %v144
    %3039 = vmatpush1.msra.mxu0 %v143
    %3040 = vmatprep.subr.mxu0 %v136
    %3041 = vmatpush1.msra.mxu0 %v135
    %3042 = vmatprep.subr.mxu0 %v128
    %3043 = vmatpush1.msra.mxu0 %v127
    %3044 = vmatprep.subr.mxu0 %v120
    %3045 = vmatpush1.msra.mxu0 %v119
    %3046 = vmatprep.subr.mxu0 %v112
    %3047 = vmatpush1.msra.mxu0 %v111
    %3048 = vmatprep.subr.mxu0 %v104
    %3049 = vmatpush1.msra.mxu0 %v103
    %3050 = vmatprep.subr.mxu0 %v96
    %3051 = vmatpush1.msra.mxu0 %v95
    %3052 = vmatprep.subr.mxu0 %v88
    %3053 = vmatpush1.msra.mxu0 %v87
    %3054 = vmatprep.subr.mxu0 %v80
    %3055 = vmatpush1.msra.mxu0 %v79
    %3056 = vmatprep.subr.mxu0 %v72
    %3057 = vmatpush1.msra.mxu0 %v71
    %3058 = vmatprep.subr.mxu0 %v320
    %3059 = vmatpush2.msra.mxu0 %v319
    %3060 = vmatprep.subr.mxu0 %v312
    %3061 = vmatpush2.msra.mxu0 %v311
    %3062 = vmatprep.subr.mxu0 %v304
    %3063 = vmatpush2.msra.mxu0 %v303
    %3064 = vmatprep.subr.mxu0 %v296
    %3065 = vmatpush2.msra.mxu0 %v295
    %3066 = vmatprep.subr.mxu0 %v288
    %3067 = vmatpush2.msra.mxu0 %v287
    %3068 = vmatprep.subr.mxu0 %v280
    %3069 = vmatpush2.msra.mxu0 %v279
    %3070 = vmatprep.subr.mxu0 %v272
    %3071 = vmatpush2.msra.mxu0 %v271
    %3072 = vmatprep.subr.mxu0 %v264
    %3073 = vmatpush2.msra.mxu0 %v263
    %3074 = vmatprep.subr.mxu0 %v256
    %3075 = vmatpush2.msra.mxu0 %v255
    %3076 = vmatprep.subr.mxu0 %v248
    %3077 = vmatpush2.msra.mxu0 %v247
    %3078 = vmatprep.subr.mxu0 %v240
    %3079 = vmatpush2.msra.mxu0 %v239
    %3080 = vmatprep.subr.mxu0 %v232
    %3081 = vmatpush2.msra.mxu0 %v231
    %3082 = vmatprep.subr.mxu0 %v224
    %3083 = vmatpush2.msra.mxu0 %v223
    %3084 = vmatprep.subr.mxu0 %v216
    %3085 = vmatpush2.msra.mxu0 %v215
    %3086 = vmatprep.subr.mxu0 %v208
    %3087 = vmatpush2.msra.mxu0 %v207
    %3088 = vmatprep.subr.mxu0 %v200
    %3089 = vmatpush2.msra.mxu0 %v199
    %3090 = vmatprep.mubr.f32.mxu0 %v2927
    %3091 = vmatmul.mubr.f32.gmra.mxu0 %v2926
    %v3092 = vpop.f32.mrf.mxu0
    %v3093 = vadd.f32 %v2949, %v3092
    %v3094 = vpop.f32.mrf.mxu0
    %v3095 = vadd.f32 %v2950, %v3094
    %3096 = vdwg.mxu0
    %3097 = vmatprep.subr.mxu0 %v194
    %3098 = vmatpush1.msra.mxu0 %v193
    %3099 = vmatprep.subr.mxu0 %v186
    %3100 = vmatpush1.msra.mxu0 %v185
    %3101 = vmatprep.subr.mxu0 %v178
    %3102 = vmatpush1.msra.mxu0 %v177
    %3103 = vmatprep.subr.mxu0 %v170
    %3104 = vmatpush1.msra.mxu0 %v169
    %3105 = vmatprep.subr.mxu0 %v162
    %3106 = vmatpush1.msra.mxu0 %v161
    %3107 = vmatprep.subr.mxu0 %v154
    %3108 = vmatpush1.msra.mxu0 %v153
    %3109 = vmatprep.subr.mxu0 %v146
    %3110 = vmatpush1.msra.mxu0 %v145
    %3111 = vmatprep.subr.mxu0 %v138
    %3112 = vmatpush1.msra.mxu0 %v137
    %3113 = vmatprep.subr.mxu0 %v130
    %3114 = vmatpush1.msra.mxu0 %v129
    %3115 = vmatprep.subr.mxu0 %v122
    %3116 = vmatpush1.msra.mxu0 %v121
    %3117 = vmatprep.subr.mxu0 %v114
    %3118 = vmatpush1.msra.mxu0 %v113
    %3119 = vmatprep.subr.mxu0 %v106
    %3120 = vmatpush1.msra.mxu0 %v105
    %3121 = vmatprep.subr.mxu0 %v98
    %3122 = vmatpush1.msra.mxu0 %v97
    %3123 = vmatprep.subr.mxu0 %v90
    %3124 = vmatpush1.msra.mxu0 %v89
    %3125 = vmatprep.subr.mxu0 %v82
    %3126 = vmatpush1.msra.mxu0 %v81
    %3127 = vmatprep.subr.mxu0 %v74
    %3128 = vmatpush1.msra.mxu0 %v73
    %3129 = vmatprep.subr.mxu0 %v322
    %3130 = vmatpush2.msra.mxu0 %v321
    %3131 = vmatprep.subr.mxu0 %v314
    %3132 = vmatpush2.msra.mxu0 %v313
    %3133 = vmatprep.subr.mxu0 %v306
    %3134 = vmatpush2.msra.mxu0 %v305
    %3135 = vmatprep.subr.mxu0 %v298
    %3136 = vmatpush2.msra.mxu0 %v297
    %3137 = vmatprep.subr.mxu0 %v290
    %3138 = vmatpush2.msra.mxu0 %v289
    %3139 = vmatprep.subr.mxu0 %v282
    %3140 = vmatpush2.msra.mxu0 %v281
    %3141 = vmatprep.subr.mxu0 %v274
    %3142 = vmatpush2.msra.mxu0 %v273
    %3143 = vmatprep.subr.mxu0 %v266
    %3144 = vmatpush2.msra.mxu0 %v265
    %3145 = vmatprep.subr.mxu0 %v258
    %3146 = vmatpush2.msra.mxu0 %v257
    %3147 = vmatprep.subr.mxu0 %v250
    %3148 = vmatpush2.msra.mxu0 %v249
    %3149 = vmatprep.subr.mxu0 %v242
    %3150 = vmatpush2.msra.mxu0 %v241
    %3151 = vmatprep.subr.mxu0 %v234
    %3152 = vmatpush2.msra.mxu0 %v233
    %3153 = vmatprep.subr.mxu0 %v226
    %3154 = vmatpush2.msra.mxu0 %v225
    %3155 = vmatprep.subr.mxu0 %v218
    %3156 = vmatpush2.msra.mxu0 %v217
    %3157 = vmatprep.subr.mxu0 %v210
    %3158 = vmatpush2.msra.mxu0 %v209
    %3159 = vmatprep.subr.mxu0 %v202
    %3160 = vmatpush2.msra.mxu0 %v201
    %3161 = vmatprep.mubr.f32.mxu0 %v2927
    %3162 = vmatmul.mubr.f32.gmra.mxu0 %v2926
    %v3163 = vpop.f32.mrf.mxu0
    %v3164 = vadd.f32 %v2951, %v3163
    %v3165 = vpop.f32.mrf.mxu0
    %v3166 = vadd.f32 %v2952, %v3165
    %3167 = vdwg.mxu0
    %3168 = vmatprep.subr.mxu0 %v196
    %3169 = vmatpush1.msra.mxu0 %v195
    %3170 = vmatprep.subr.mxu0 %v188
    %3171 = vmatpush1.msra.mxu0 %v187
    %3172 = vmatprep.subr.mxu0 %v180
    %3173 = vmatpush1.msra.mxu0 %v179
    %3174 = vmatprep.subr.mxu0 %v172
    %3175 = vmatpush1.msra.mxu0 %v171
    %3176 = vmatprep.subr.mxu0 %v164
    %3177 = vmatpush1.msra.mxu0 %v163
    %3178 = vmatprep.subr.mxu0 %v156
    %3179 = vmatpush1.msra.mxu0 %v155
    %3180 = vmatprep.subr.mxu0 %v148
    %3181 = vmatpush1.msra.mxu0 %v147
    %3182 = vmatprep.subr.mxu0 %v140
    %3183 = vmatpush1.msra.mxu0 %v139
    %3184 = vmatprep.subr.mxu0 %v132
    %3185 = vmatpush1.msra.mxu0 %v131
    %3186 = vmatprep.subr.mxu0 %v124
    %3187 = vmatpush1.msra.mxu0 %v123
    %3188 = vmatprep.subr.mxu0 %v116
    %3189 = vmatpush1.msra.mxu0 %v115
    %3190 = vmatprep.subr.mxu0 %v108
    %3191 = vmatpush1.msra.mxu0 %v107
    %3192 = vmatprep.subr.mxu0 %v100
    %3193 = vmatpush1.msra.mxu0 %v99
    %3194 = vmatprep.subr.mxu0 %v92
    %3195 = vmatpush1.msra.mxu0 %v91
    %3196 = vmatprep.subr.mxu0 %v84
    %3197 = vmatpush1.msra.mxu0 %v83
    %3198 = vmatprep.subr.mxu0 %v76
    %3199 = vmatpush1.msra.mxu0 %v75
    %3200 = vmatprep.subr.mxu0 %v324
    %3201 = vmatpush2.msra.mxu0 %v323
    %3202 = vmatprep.subr.mxu0 %v316
    %3203 = vmatpush2.msra.mxu0 %v315
    %3204 = vmatprep.subr.mxu0 %v308
    %3205 = vmatpush2.msra.mxu0 %v307
    %3206 = vmatprep.subr.mxu0 %v300
    %3207 = vmatpush2.msra.mxu0 %v299
    %3208 = vmatprep.subr.mxu0 %v292
    %3209 = vmatpush2.msra.mxu0 %v291
    %3210 = vmatprep.subr.mxu0 %v284
    %3211 = vmatpush2.msra.mxu0 %v283
    %3212 = vmatprep.subr.mxu0 %v276
    %3213 = vmatpush2.msra.mxu0 %v275
    %3214 = vmatprep.subr.mxu0 %v268
    %3215 = vmatpush2.msra.mxu0 %v267
    %3216 = vmatprep.subr.mxu0 %v260
    %3217 = vmatpush2.msra.mxu0 %v259
    %3218 = vmatprep.subr.mxu0 %v252
    %3219 = vmatpush2.msra.mxu0 %v251
    %3220 = vmatprep.subr.mxu0 %v244
    %3221 = vmatpush2.msra.mxu0 %v243
    %3222 = vmatprep.subr.mxu0 %v236
    %3223 = vmatpush2.msra.mxu0 %v235
    %3224 = vmatprep.subr.mxu0 %v228
    %3225 = vmatpush2.msra.mxu0 %v227
    %3226 = vmatprep.subr.mxu0 %v220
    %3227 = vmatpush2.msra.mxu0 %v219
    %3228 = vmatprep.subr.mxu0 %v212
    %3229 = vmatpush2.msra.mxu0 %v211
    %3230 = vmatprep.subr.mxu0 %v204
    %3231 = vmatpush2.msra.mxu0 %v203
    %3232 = vmatprep.mubr.f32.mxu0 %v2927
    %3233 = vmatmul.mubr.f32.gmra.mxu0 %v2926
    %v3234 = vpop.f32.mrf.mxu0
    %v3235 = vadd.f32 %v2953, %v3234
    %v3236 = vpop.f32.mrf.mxu0
    %v3237 = vadd.f32 %v2954, %v3236
    %3238 = vdwg.mxu0
    %v3239 = vadd.f32 %v3022, %v705
    %v3240 = vadd.f32 %v3024, %v709
    %v3241 = vadd.f32 %v3093, %v713
    %v3242 = vadd.f32 %v3095, %v717
    %v3243 = vadd.f32 %v3164, %v721
    %v3244 = vadd.f32 %v3166, %v725
    %v3245 = vadd.f32 %v3235, %v729
    %v3246 = vadd.f32 %v3237, %v733
    %v3247 = vmul.f32 %v3239, 0.5
    %v3248 = vmul.f32 %v3240, 0.5
    %v3249 = vtanh.pop %v3247
    %v3250 = vtanh.pop %v3248
    %v3251 = vmul.f32 %v3249, 0.5
    %v3252 = vmul.f32 %v3250, 0.5
    %v3253 = vadd.f32 %v3251, 0.5
    %v3254 = vadd.f32 %v3252, 0.5
    %v3255 = vmul.f32 %v3241, 0.5
    %v3256 = vmul.f32 %v3242, 0.5
    %v3257 = vtanh.pop %v3255
    %v3258 = vtanh.pop %v3256
    %v3259 = vmul.f32 %v3257, 0.5
    %v3260 = vmul.f32 %v3258, 0.5
    %v3261 = vadd.f32 %v3259, 0.5
    %v3262 = vadd.f32 %v3260, 0.5
    %v3263 = vtanh.pop %v3243
    %v3264 = vtanh.pop %v3244
    %v3265 = vmul.f32 %v3245, 0.5
    %v3266 = vmul.f32 %v3246, 0.5
    %v3267 = vtanh.pop %v3265
    %v3268 = vtanh.pop %v3266
    %v3269 = vmul.f32 %v3267, 0.5
    %v3270 = vmul.f32 %v3268, 0.5
    %v3271 = vadd.f32 %v3269, 0.5
    %v3272 = vadd.f32 %v3270, 0.5
    %v3273 = vmul.f32 %v3261, %v2922
    %v3274 = vmul.f32 %v3262, %v2923
    %v3275 = vmul.f32 %v3253, %v3263
    %v3276 = vmul.f32 %v3254, %v3264
    %v3277 = vadd.f32 %v3273, %v3275
    %v3278 = vadd.f32 %v3274, %v3276
    %v3279 = vtanh.pop %v3277
    %v3280 = vtanh.pop %v3278
    %v3281 = vmul.f32 %v3271, %v3279
    %v3282 = vmul.f32 %v3272, %v3280
    %v3283 = vmul.f32 %v3281, %v332
    %v3284 = vmul.f32 %v3282, %v336
    %v3285 = vsel %vm799, %v3283, 0.0
    %v3286 = vsel %vm799, %v3284, 0.0
    %v3287 = vadd.f32 %v3285, %v3286
    %3288 = vadd.xlane.f32.xlu0 %v3287
    %v3289 = vpop.xlane.xlu0 %3288
    %v3290 = vadd.f32 %v3289, %v344
    %3292 = vset.pattern.permute.xlu0 0
    %3293 = vperm.xlu0 %3292, %v3290
    %v3294 = vpop.permute.xlu0 %3293
    %v3296 = vsel %vm2942, %v3294, %v2941
    %v3299 = vcombine.low %v3281, %v3282
    %v3301 = vunpack.c.l.s4 1983009808
    %v3302 = vunpack.c.0.s8 %v3301
    %v3303 = vlaneseq
    %v3304 = vshrl.u32 %v3303, 7
    %v3305 = vsub.s32 %v3302, %v3304
    %v3306 = vrot.slane %v3299, %v3305
    %3308 = vst [vmem:[#allocation2] sm:$0xf] %v3306
    %v3311 = vcombine.low %v3277, %v3278
    %v3313 = vunpack.c.l.s4 1983009808
    %v3314 = vunpack.c.0.s8 %v3313
    %v3315 = vlaneseq
    %v3316 = vshrl.u32 %v3315, 7
    %v3317 = vsub.s32 %v3314, %v3316
    %v3318 = vrot.slane %v3311, %v3317
    %3320 = vst [vmem:[#allocation3] sm:$0xf] %v3318
    %3321 = vst.msk [vmem:[#allocation11] sm:$0x3] %vm353, %v3296
    // Predicated region
    $region42: #{tpu_custom_call.1} parent=1 // pred_check
      _
    $region43: #{tpu_custom_call.1} parent=1 // pred_check_branch
      %3323 = sbr.rel (0) target = $region45
    $region44: #{tpu_custom_call.1} parent=1 // pred_region
      %s3325 = ssub.s32 32, 32
      %3326 = vsyncadd [#allocation7], %s3325
      %s3328 = sshll.u32 [#allocation11], 4
      %s3329 = int_to_ptr.vmem [resolvable:$true] %s3328
      %3331 = dma.vmem_to_hbm [thread:$0]  %s3329, 32, %s6, [#allocation7]
    $region45: #{tpu_custom_call.1} parent=1 // pred_fallthru
      _
    // Predicated region
    $region46: #{tpu_custom_call.1} parent=1 // pred_check
      _
    $region47: #{tpu_custom_call.1} parent=1 // pred_check_branch
      %3333 = sbr.rel (0) target = $region49
    $region48: #{tpu_custom_call.1} parent=1 // pred_region
      %3334 = dma.done [#allocation7], 32
    $region49: #{tpu_custom_call.1} parent=1 // pred_fallthru
      _
    %3335 = vsyncpa [#allocation6], 1
    %3336 = vsyncpa [#allocation9], 1
    %3337 = vsyncpa [#allocation7], 1

</llo_original>
